<compile_context>
chip_gen: v5e
topology: v5e:2x2
jax: 0.10.0
libtpu: 0.0.40
codegen_flags: <defaults>
</compile_context>

<pallas_src>
import jax
import jax.numpy as jnp
from jax.experimental import pallas as pl
from jax.experimental.pallas import tpu as pltpu

BN_EPS = 1e-5
LANE = 128
_VMEM_LIMIT = 32 * 1024 * 1024  # <= scoped default on v6e/v7x, a raise on v5e


def _round_up(x, m):
    return (x + m - 1) // m * m


def _pick_tile_h(h, w, cin, cp, budget=8 * 1024 * 1024, row_cap=2048):
    """Largest divisor of H whose per-step working set fits a conservative VMEM budget."""
    divisors = [d for d in range(1, h + 1) if h % d == 0]
    for th in reversed(divisors):
        if th * w > row_cap and th != divisors[0]:
            continue  # keep several grid steps alive for pipelining
        slab_elems = (th + 2) * (w + 2) * max(cin, 8)
        blk_elems = th * w * cp
        bytes_needed = (2 * slab_elems * 2          # bf16 input slab, double-buffered
                        + slab_elems * 4            # in-kernel f32 slab copy
                        + blk_elems * 4             # f32 accumulator
                        + 2 * blk_elems * 2         # bf16 output block, double-buffered
                        + 9 * max(cin, 8) * cp * 2)  # resident bf16 weights
        if bytes_needed <= budget:
            return th
    return divisors[0]


def _pick_rows_tile(m, cap=2048):
    """Divisor of m (multiple of 16 preferred, else 8, else full extent) for BN/ReLU."""
    for step in (16, 8):
        for d in range(min(m, cap), step - 1, -1):
            if m % d == 0 and d % step == 0:
                return d
    return m  # full extent is always a legal block


def _conv_stats_kernel(x_ref, w_ref, y_ref, s_ref):
    """3x3 conv on one H-slab (9 accumulated bf16 MXU matmuls, f32 acc) plus
    per-channel sum / sum-of-squares of the (f32) conv output for this tile.

    x_ref: (1, TH+2, W+2, Cin)   bf16 padded activation slab (with halo)
    w_ref: (9, Cin, Cp)          bf16 per-tap weights (resident across the grid)
    y_ref: (1, TH, W, Cp)        bf16 raw conv output (f32 accumulation inside)
    s_ref: (1, 2, Cp)            f32 [sum, sumsq] for this tile
    """
    th, w, cp = y_ref.shape[1], y_ref.shape[2], y_ref.shape[3]
    cin = x_ref.shape[3]

    slab = x_ref[0].astype(jnp.float32)          # 32-bit-aligned halo slicing
    acc = jnp.zeros((th * w, cp), jnp.float32)
    for dy in range(3):
        for dx in range(3):
            xs = slab[dy:dy + th, dx:dx + w, :].reshape(th * w, cin)
            acc = acc + jnp.dot(xs.astype(jnp.bfloat16), w_ref[dy * 3 + dx],
                                preferred_element_type=jnp.float32)

    y_ref[0] = acc.reshape(th, w, cp).astype(y_ref.dtype)
    s_ref[0] = jnp.concatenate(
        [jnp.sum(acc, axis=0, keepdims=True),
         jnp.sum(acc * acc, axis=0, keepdims=True)], axis=0)


def _bn_relu_kernel(y_ref, scale_ref, shift_ref, o_ref):
    """Per-channel FMA (folded BatchNorm) + ReLU, lane-dense tiles."""
    y = y_ref[...].astype(jnp.float32)
    o_ref[...] = jnp.maximum(y * scale_ref[...] + shift_ref[...], 0.0).astype(o_ref.dtype)


def _conv_bn_relu(x, weight, gamma, beta, out_dtype):
    """One Conv2d(3x3, pad=1) + BatchNorm2d(train-mode stats) + ReLU layer.

    x:      (N, H, W, Cin)  (Cin may already be lane-padded by a previous layer)
    weight: (Cout, Cin_real, 3, 3)  PyTorch layout
    returns (N, H, W, Cp) with Cp = round_up(Cout, 128); padded channels are 0.
    """
    n, h, w, cin = x.shape
    cout, cin_w = weight.shape[0], weight.shape[1]
    cp = _round_up(cout, LANE)

    # Per-tap weight matrix (9, Cin, Cp), zero-padded, bf16 for the MXU.
    w_taps = jnp.transpose(weight, (2, 3, 1, 0)).reshape(9, cin_w, cout)
    w_taps = jnp.pad(w_taps, ((0, 0), (0, cin - cin_w), (0, cp - cout)))
    w_taps = w_taps.astype(jnp.bfloat16)

    th = _pick_tile_h(h, w, cin, cp)
    nt = h // th

    # Pad once with the conv halo and cut overlapping H-slabs (cheap vs 9x im2col).
    xp = jnp.pad(x.astype(jnp.bfloat16), ((0, 0), (1, 1), (1, 1), (0, 0)))
    slabs = jnp.stack([xp[:, t * th:t * th + th + 2] for t in range(nt)], axis=1)
    slabs = slabs.reshape(n * nt, th + 2, w + 2, cin)

    # --- phase 1: conv + per-tile channel stats (all grid steps independent) ---
    conv_raw, stats = pl.pallas_call(
        _conv_stats_kernel,
        out_shape=(jax.ShapeDtypeStruct((n * nt, th, w, cp), jnp.bfloat16),
                   jax.ShapeDtypeStruct((n * nt, 2, cp), jnp.float32)),
        grid=(n * nt,),
        in_specs=[
            pl.BlockSpec((1, th + 2, w + 2, cin), lambda i: (i, 0, 0, 0)),
            pl.BlockSpec((9, cin, cp), lambda i: (0, 0, 0)),   # resident weights
        ],
        out_specs=(
            pl.BlockSpec((1, th, w, cp), lambda i: (i, 0, 0, 0)),
            pl.BlockSpec((1, 2, cp), lambda i: (i, 0, 0)),
        ),
        compiler_params=pltpu.CompilerParams(
            dimension_semantics=("parallel",),
            vmem_limit_bytes=_VMEM_LIMIT),
    )(slabs, w_taps)

    # --- tiny glue: fold batch stats + gamma/beta into one scale/shift ---------
    m = n * h * w
    tot = jnp.sum(stats, axis=0)                       # (2, Cp)
    mean = tot[0] * (1.0 / m)
    var = jnp.maximum(tot[1] * (1.0 / m) - mean * mean, 0.0)   # biased variance
    gp = jnp.pad(gamma.astype(jnp.float32), (0, cp - cout))
    bp = jnp.pad(beta.astype(jnp.float32), (0, cp - cout))
    scale = gp * jax.lax.rsqrt(var + BN_EPS)
    shift = bp - mean * scale
    # (Conv bias is exactly cancelled by the batch-mean subtraction -> omitted.)

    # --- phase 2: tiled, lane-dense normalize + ReLU ---------------------------
    conv_flat = conv_raw.reshape(m, cp)
    tm = _pick_rows_tile(m)
    out2d = pl.pallas_call(
        _bn_relu_kernel,
        out_shape=jax.ShapeDtypeStruct((m, cp), out_dtype),
        grid=(m // tm,),
        in_specs=[
            pl.BlockSpec((tm, cp), lambda i: (i, 0)),
            pl.BlockSpec((1, cp), lambda i: (0, 0)),
            pl.BlockSpec((1, cp), lambda i: (0, 0)),
        ],
        out_specs=pl.BlockSpec((tm, cp), lambda i: (i, 0)),
        compiler_params=pltpu.CompilerParams(
            dimension_semantics=("parallel",),
            vmem_limit_bytes=_VMEM_LIMIT),
    )(conv_flat, scale.reshape(1, cp), shift.reshape(1, cp))

    return out2d.reshape(n, h, w, cp)


@jax.jit
def conv_block_forward(x_nchw, params):
    """ConvBlock.forward.  x_nchw: (N, Cin, H, W) -> (N, Cout, H, W)."""
    cout = params["w2"].shape[0]
    x = jnp.transpose(x_nchw, (0, 2, 3, 1))          # NCHW -> NHWC (channels on lanes)
    # b1/b2 are not applied: with training-mode BatchNorm the bias is exactly
    # cancelled by the batch-mean subtraction.
    h1 = _conv_bn_relu(x, params["w1"], params["g1"], params["beta1"], jnp.bfloat16)
    h2 = _conv_bn_relu(h1, params["w2"], params["g2"], params["beta2"], jnp.float32)
    y = h2[..., :cout]                               # strip lane padding
    return jnp.transpose(y, (0, 3, 1, 2))            # NHWC -> NCHW


def init_params(key, in_channels, out_channels):
    """Deterministic parameter init matching the shapes from ConvBlock.__init__."""
    k1, k2, k3, k4 = jax.random.split(key, 4)
    fan1 = in_channels * 9
    fan2 = out_channels * 9
    return {
        "w1": jax.random.normal(k1, (out_channels, in_channels, 3, 3), jnp.float32)
        * (1.0 / fan1) ** 0.5,
        "b1": jax.random.normal(k2, (out_channels,), jnp.float32) * 0.01,
        "g1": jnp.ones((out_channels,), jnp.float32),
        "beta1": jnp.zeros((out_channels,), jnp.float32),
        "w2": jax.random.normal(k3, (out_channels, out_channels, 3, 3), jnp.float32)
        * (1.0 / fan2) ** 0.5,
        "b2": jax.random.normal(k4, (out_channels,), jnp.float32) * 0.01,
        "g2": jnp.ones((out_channels,), jnp.float32),
        "beta2": jnp.zeros((out_channels,), jnp.float32),
    }


@jax.jit
def _reference_forward(x_nchw, params):
    """Plain-JAX f32 reference (conv + training-mode BN + ReLU) for validation."""
    def layer(x, w, b, g, beta):
        y = jax.lax.conv_general_dilated(
            x, w, window_strides=(1, 1), padding=((1, 1), (1, 1)),
            dimension_numbers=("NCHW", "OIHW", "NCHW"))
        y = y + b[None, :, None, None]
        mean = jnp.mean(y, axis=(0, 2, 3), keepdims=True)
        var = jnp.mean(jnp.square(y - mean), axis=(0, 2, 3), keepdims=True)
        y = (y - mean) * jax.lax.rsqrt(var + BN_EPS)
        y = y * g[None, :, None, None] + beta[None, :, None, None]
        return jnp.maximum(y, 0.0)

    x = layer(x_nchw, params["w1"], params["b1"], params["g1"], params["beta1"])
    x = layer(x, params["w2"], params["b2"], params["g2"], params["beta2"])
    return x


if __name__ == "__main__":
    key = jax.random.PRNGKey(0)
    k_x, k_p = jax.random.split(key)

    N, Cin, Cout, H, W = 2, 4, 8, 16, 16
    x = jax.random.normal(k_x, (N, Cin, H, W), jnp.float32)   # NCHW, like PyTorch
    params = init_params(k_p, Cin, Cout)

    y = conv_block_forward(x, params)
    jax.block_until_ready(y)

    assert y.shape == (N, Cout, H, W), y.shape
    assert bool(jnp.all(y >= 0.0)), "ReLU output must be non-negative"

    ref = _reference_forward(x, params)
    err = float(jnp.max(jnp.abs(y - ref)))
    assert err < 1e-1, f"mismatch vs plain-JAX reference: max abs err = {err}"

    print("KERNEL_OK")
</pallas_src>

<mosaic_0001>
module attributes {stable_mosaic.version = 11 : i64} {
  func.func @_conv_stats_kernel(%arg0: i32, %arg1: memref<1x18x18x4xbf16, #tpu.memory_space<vmem>>, %arg2: memref<9x4x128xbf16, #tpu.memory_space<vmem>>, %arg3: memref<1x16x16x128xbf16, #tpu.memory_space<vmem>>, %arg4: memref<1x2x128xf32, #tpu.memory_space<vmem>>) attributes {dimension_semantics = [#tpu.dimension_semantics<parallel>], iteration_bounds = array<i64: 2>, scalar_prefetch = 0 : i64, scratch_operands = 0 : i64, tpu.core_type = #tpu.core_type<tc>, window_params = [{transform_indices = @transform_0, window_bounds = array<i64: 1, 18, 18, 4>}, {pipeline_mode = #tpu.pipeline_mode<synchronous>, transform_indices = @transform_1, window_bounds = array<i64: 9, 4, 128>}, {transform_indices = @transform_2, window_bounds = array<i64: 1, 16, 16, 128>}, {transform_indices = @transform_3, window_bounds = array<i64: 1, 2, 128>}]} {
    %c0 = arith.constant 0 : index
    %c0_0 = arith.constant 0 : index
    %c0_1 = arith.constant 0 : index
    %c0_2 = arith.constant 0 : index
    %0 = vector.load %arg1[%c0, %c0_0, %c0_1, %c0_2] : memref<1x18x18x4xbf16, #tpu.memory_space<vmem>>, vector<1x18x18x4xbf16>
    %1 = vector.shape_cast %0 : vector<1x18x18x4xbf16> to vector<18x18x4xbf16>
    %2 = arith.extf %1 : vector<18x18x4xbf16> to vector<18x18x4xf32>
    %cst = arith.constant 0.000000e+00 : f32
    %3 = vector.broadcast %cst : f32 to vector<256x128xf32>
    %4 = vector.extract_strided_slice %2 {offsets = [0, 0, 0], sizes = [16, 16, 4], strides = [1, 1, 1]} : vector<18x18x4xf32> to vector<16x16x4xf32>
    %5 = vector.shape_cast %4 : vector<16x16x4xf32> to vector<256x4xf32>
    %6 = arith.truncf %5 : vector<256x4xf32> to vector<256x4xbf16>
    %c0_3 = arith.constant 0 : index
    %c0_4 = arith.constant 0 : index
    %c0_5 = arith.constant 0 : index
    %7 = vector.load %arg2[%c0_3, %c0_4, %c0_5] : memref<9x4x128xbf16, #tpu.memory_space<vmem>>, vector<1x4x128xbf16>
    %8 = vector.shape_cast %7 : vector<1x4x128xbf16> to vector<4x128xbf16>
    %cst_6 = arith.constant dense<0.000000e+00> : vector<256x128xf32>
    %9 = tpu.matmul %6, %8, %cst_6 {dimension_numbers = #tpu.dot_dimension_numbers<[1], [0], [0], [1], [0, 0, 1, 1], [], []>} : vector<256x4xbf16>, vector<4x128xbf16>, vector<256x128xf32> -> vector<256x128xf32>
    %10 = arith.addf %3, %9 : vector<256x128xf32>
    %11 = vector.extract_strided_slice %2 {offsets = [0, 1, 0], sizes = [16, 16, 4], strides = [1, 1, 1]} : vector<18x18x4xf32> to vector<16x16x4xf32>
    %12 = vector.shape_cast %11 : vector<16x16x4xf32> to vector<256x4xf32>
    %13 = arith.truncf %12 : vector<256x4xf32> to vector<256x4xbf16>
    %c1 = arith.constant 1 : index
    %c0_7 = arith.constant 0 : index
    %c0_8 = arith.constant 0 : index
    %14 = vector.load %arg2[%c1, %c0_7, %c0_8] : memref<9x4x128xbf16, #tpu.memory_space<vmem>>, vector<1x4x128xbf16>
    %15 = vector.shape_cast %14 : vector<1x4x128xbf16> to vector<4x128xbf16>
    %cst_9 = arith.constant dense<0.000000e+00> : vector<256x128xf32>
    %16 = tpu.matmul %13, %15, %cst_9 {dimension_numbers = #tpu.dot_dimension_numbers<[1], [0], [0], [1], [0, 0, 1, 1], [], []>} : vector<256x4xbf16>, vector<4x128xbf16>, vector<256x128xf32> -> vector<256x128xf32>
    %17 = arith.addf %10, %16 : vector<256x128xf32>
    %18 = vector.extract_strided_slice %2 {offsets = [0, 2, 0], sizes = [16, 16, 4], strides = [1, 1, 1]} : vector<18x18x4xf32> to vector<16x16x4xf32>
    %19 = vector.shape_cast %18 : vector<16x16x4xf32> to vector<256x4xf32>
    %20 = arith.truncf %19 : vector<256x4xf32> to vector<256x4xbf16>
    %c2 = arith.constant 2 : index
    %c0_10 = arith.constant 0 : index
    %c0_11 = arith.constant 0 : index
    %21 = vector.load %arg2[%c2, %c0_10, %c0_11] : memref<9x4x128xbf16, #tpu.memory_space<vmem>>, vector<1x4x128xbf16>
    %22 = vector.shape_cast %21 : vector<1x4x128xbf16> to vector<4x128xbf16>
    %cst_12 = arith.constant dense<0.000000e+00> : vector<256x128xf32>
    %23 = tpu.matmul %20, %22, %cst_12 {dimension_numbers = #tpu.dot_dimension_numbers<[1], [0], [0], [1], [0, 0, 1, 1], [], []>} : vector<256x4xbf16>, vector<4x128xbf16>, vector<256x128xf32> -> vector<256x128xf32>
    %24 = arith.addf %17, %23 : vector<256x128xf32>
    %25 = vector.extract_strided_slice %2 {offsets = [1, 0, 0], sizes = [16, 16, 4], strides = [1, 1, 1]} : vector<18x18x4xf32> to vector<16x16x4xf32>
    %26 = vector.shape_cast %25 : vector<16x16x4xf32> to vector<256x4xf32>
    %27 = arith.truncf %26 : vector<256x4xf32> to vector<256x4xbf16>
    %c3 = arith.constant 3 : index
    %c0_13 = arith.constant 0 : index
    %c0_14 = arith.constant 0 : index
    %28 = vector.load %arg2[%c3, %c0_13, %c0_14] : memref<9x4x128xbf16, #tpu.memory_space<vmem>>, vector<1x4x128xbf16>
    %29 = vector.shape_cast %28 : vector<1x4x128xbf16> to vector<4x128xbf16>
    %cst_15 = arith.constant dense<0.000000e+00> : vector<256x128xf32>
    %30 = tpu.matmul %27, %29, %cst_15 {dimension_numbers = #tpu.dot_dimension_numbers<[1], [0], [0], [1], [0, 0, 1, 1], [], []>} : vector<256x4xbf16>, vector<4x128xbf16>, vector<256x128xf32> -> vector<256x128xf32>
    %31 = arith.addf %24, %30 : vector<256x128xf32>
    %32 = vector.extract_strided_slice %2 {offsets = [1, 1, 0], sizes = [16, 16, 4], strides = [1, 1, 1]} : vector<18x18x4xf32> to vector<16x16x4xf32>
    %33 = vector.shape_cast %32 : vector<16x16x4xf32> to vector<256x4xf32>
    %34 = arith.truncf %33 : vector<256x4xf32> to vector<256x4xbf16>
    %c4 = arith.constant 4 : index
    %c0_16 = arith.constant 0 : index
    %c0_17 = arith.constant 0 : index
    %35 = vector.load %arg2[%c4, %c0_16, %c0_17] : memref<9x4x128xbf16, #tpu.memory_space<vmem>>, vector<1x4x128xbf16>
    %36 = vector.shape_cast %35 : vector<1x4x128xbf16> to vector<4x128xbf16>
    %cst_18 = arith.constant dense<0.000000e+00> : vector<256x128xf32>
    %37 = tpu.matmul %34, %36, %cst_18 {dimension_numbers = #tpu.dot_dimension_numbers<[1], [0], [0], [1], [0, 0, 1, 1], [], []>} : vector<256x4xbf16>, vector<4x128xbf16>, vector<256x128xf32> -> vector<256x128xf32>
    %38 = arith.addf %31, %37 : vector<256x128xf32>
    %39 = vector.extract_strided_slice %2 {offsets = [1, 2, 0], sizes = [16, 16, 4], strides = [1, 1, 1]} : vector<18x18x4xf32> to vector<16x16x4xf32>
    %40 = vector.shape_cast %39 : vector<16x16x4xf32> to vector<256x4xf32>
    %41 = arith.truncf %40 : vector<256x4xf32> to vector<256x4xbf16>
    %c5 = arith.constant 5 : index
    %c0_19 = arith.constant 0 : index
    %c0_20 = arith.constant 0 : index
    %42 = vector.load %arg2[%c5, %c0_19, %c0_20] : memref<9x4x128xbf16, #tpu.memory_space<vmem>>, vector<1x4x128xbf16>
    %43 = vector.shape_cast %42 : vector<1x4x128xbf16> to vector<4x128xbf16>
    %cst_21 = arith.constant dense<0.000000e+00> : vector<256x128xf32>
    %44 = tpu.matmul %41, %43, %cst_21 {dimension_numbers = #tpu.dot_dimension_numbers<[1], [0], [0], [1], [0, 0, 1, 1], [], []>} : vector<256x4xbf16>, vector<4x128xbf16>, vector<256x128xf32> -> vector<256x128xf32>
    %45 = arith.addf %38, %44 : vector<256x128xf32>
    %46 = vector.extract_strided_slice %2 {offsets = [2, 0, 0], sizes = [16, 16, 4], strides = [1, 1, 1]} : vector<18x18x4xf32> to vector<16x16x4xf32>
    %47 = vector.shape_cast %46 : vector<16x16x4xf32> to vector<256x4xf32>
    %48 = arith.truncf %47 : vector<256x4xf32> to vector<256x4xbf16>
    %c6 = arith.constant 6 : index
    %c0_22 = arith.constant 0 : index
    %c0_23 = arith.constant 0 : index
    %49 = vector.load %arg2[%c6, %c0_22, %c0_23] : memref<9x4x128xbf16, #tpu.memory_space<vmem>>, vector<1x4x128xbf16>
    %50 = vector.shape_cast %49 : vector<1x4x128xbf16> to vector<4x128xbf16>
    %cst_24 = arith.constant dense<0.000000e+00> : vector<256x128xf32>
    %51 = tpu.matmul %48, %50, %cst_24 {dimension_numbers = #tpu.dot_dimension_numbers<[1], [0], [0], [1], [0, 0, 1, 1], [], []>} : vector<256x4xbf16>, vector<4x128xbf16>, vector<256x128xf32> -> vector<256x128xf32>
    %52 = arith.addf %45, %51 : vector<256x128xf32>
    %53 = vector.extract_strided_slice %2 {offsets = [2, 1, 0], sizes = [16, 16, 4], strides = [1, 1, 1]} : vector<18x18x4xf32> to vector<16x16x4xf32>
    %54 = vector.shape_cast %53 : vector<16x16x4xf32> to vector<256x4xf32>
    %55 = arith.truncf %54 : vector<256x4xf32> to vector<256x4xbf16>
    %c7 = arith.constant 7 : index
    %c0_25 = arith.constant 0 : index
    %c0_26 = arith.constant 0 : index
    %56 = vector.load %arg2[%c7, %c0_25, %c0_26] : memref<9x4x128xbf16, #tpu.memory_space<vmem>>, vector<1x4x128xbf16>
    %57 = vector.shape_cast %56 : vector<1x4x128xbf16> to vector<4x128xbf16>
    %cst_27 = arith.constant dense<0.000000e+00> : vector<256x128xf32>
    %58 = tpu.matmul %55, %57, %cst_27 {dimension_numbers = #tpu.dot_dimension_numbers<[1], [0], [0], [1], [0, 0, 1, 1], [], []>} : vector<256x4xbf16>, vector<4x128xbf16>, vector<256x128xf32> -> vector<256x128xf32>
    %59 = arith.addf %52, %58 : vector<256x128xf32>
    %60 = vector.extract_strided_slice %2 {offsets = [2, 2, 0], sizes = [16, 16, 4], strides = [1, 1, 1]} : vector<18x18x4xf32> to vector<16x16x4xf32>
    %61 = vector.shape_cast %60 : vector<16x16x4xf32> to vector<256x4xf32>
    %62 = arith.truncf %61 : vector<256x4xf32> to vector<256x4xbf16>
    %c8 = arith.constant 8 : index
    %c0_28 = arith.constant 0 : index
    %c0_29 = arith.constant 0 : index
    %63 = vector.load %arg2[%c8, %c0_28, %c0_29] : memref<9x4x128xbf16, #tpu.memory_space<vmem>>, vector<1x4x128xbf16>
    %64 = vector.shape_cast %63 : vector<1x4x128xbf16> to vector<4x128xbf16>
    %cst_30 = arith.constant dense<0.000000e+00> : vector<256x128xf32>
    %65 = tpu.matmul %62, %64, %cst_30 {dimension_numbers = #tpu.dot_dimension_numbers<[1], [0], [0], [1], [0, 0, 1, 1], [], []>} : vector<256x4xbf16>, vector<4x128xbf16>, vector<256x128xf32> -> vector<256x128xf32>
    %66 = arith.addf %59, %65 : vector<256x128xf32>
    %67 = vector.shape_cast %66 : vector<256x128xf32> to vector<16x16x128xf32>
    %68 = arith.truncf %67 : vector<16x16x128xf32> to vector<16x16x128xbf16>
    %c0_31 = arith.constant 0 : index
    %c0_32 = arith.constant 0 : index
    %c0_33 = arith.constant 0 : index
    %c0_34 = arith.constant 0 : index
    %69 = vector.load %arg3[%c0_31, %c0_32, %c0_33, %c0_34] : memref<1x16x16x128xbf16, #tpu.memory_space<vmem>>, vector<1x16x16x128xbf16>
    %70 = vector.shape_cast %69 : vector<1x16x16x128xbf16> to vector<16x16x128xbf16>
    %71 = vector.shape_cast %68 : vector<16x16x128xbf16> to vector<1x16x16x128xbf16>
    tpu.vector_store %arg3[%c0_31, %c0_32, %c0_33, %c0_34], %71 {strides = array<i32>} : memref<1x16x16x128xbf16, #tpu.memory_space<vmem>>, vector<1x16x16x128xbf16>,
    %cst_35 = arith.constant dense<0.000000e+00> : vector<128xf32>
    %72 = vector.multi_reduction <add>, %66, %cst_35 [0] : vector<256x128xf32> to vector<128xf32>
    %73 = vector.shape_cast %72 : vector<128xf32> to vector<1x128xf32>
    %74 = arith.mulf %66, %66 : vector<256x128xf32>
    %cst_36 = arith.constant dense<0.000000e+00> : vector<128xf32>
    %75 = vector.multi_reduction <add>, %74, %cst_36 [0] : vector<256x128xf32> to vector<128xf32>
    %76 = vector.shape_cast %75 : vector<128xf32> to vector<1x128xf32>
    %77 = tpu.concatenate %73, %76 in 0 : vector<1x128xf32>, vector<1x128xf32> -> vector<2x128xf32>
    %c0_37 = arith.constant 0 : index
    %c0_38 = arith.constant 0 : index
    %c0_39 = arith.constant 0 : index
    %78 = vector.load %arg4[%c0_37, %c0_38, %c0_39] : memref<1x2x128xf32, #tpu.memory_space<vmem>>, vector<1x2x128xf32>
    %79 = vector.shape_cast %78 : vector<1x2x128xf32> to vector<2x128xf32>
    %80 = vector.shape_cast %77 : vector<2x128xf32> to vector<1x2x128xf32>
    tpu.vector_store %arg4[%c0_37, %c0_38, %c0_39], %80 {strides = array<i32>} : memref<1x2x128xf32, #tpu.memory_space<vmem>>, vector<1x2x128xf32>,
    return
  }
  func.func @transform_0(%arg0: i32) -> (i32, i32, i32, i32) {
    %c0_i32 = arith.constant 0 : i32
    %c0_i32_0 = arith.constant 0 : i32
    %c0_i32_1 = arith.constant 0 : i32
    %c0_i32_2 = arith.constant 0 : i32
    return %arg0, %c0_i32, %c0_i32_0, %c0_i32_1 : i32, i32, i32, i32
  }
  func.func @transform_1(%arg0: i32) -> (i32, i32, i32) {
    %c0_i32 = arith.constant 0 : i32
    %c0_i32_0 = arith.constant 0 : i32
    %c0_i32_1 = arith.constant 0 : i32
    %c0_i32_2 = arith.constant 0 : i32
    return %c0_i32, %c0_i32_0, %c0_i32_1 : i32, i32, i32
  }
  func.func @transform_2(%arg0: i32) -> (i32, i32, i32, i32) {
    %c0_i32 = arith.constant 0 : i32
    %c0_i32_0 = arith.constant 0 : i32
    %c0_i32_1 = arith.constant 0 : i32
    %c0_i32_2 = arith.constant 0 : i32
    return %arg0, %c0_i32, %c0_i32_0, %c0_i32_1 : i32, i32, i32, i32
  }
  func.func @transform_3(%arg0: i32) -> (i32, i32, i32) {
    %c0_i32 = arith.constant 0 : i32
    %c0_i32_0 = arith.constant 0 : i32
    %c0_i32_1 = arith.constant 0 : i32
    return %arg0, %c0_i32, %c0_i32_0 : i32, i32, i32
  }
}

module attributes {stable_mosaic.version = 11 : i64} {
  func.func @_bn_relu_kernel(%arg0: i32, %arg1: memref<512x128xbf16, #tpu.memory_space<vmem>>, %arg2: memref<1x128xf32, #tpu.memory_space<vmem>>, %arg3: memref<1x128xf32, #tpu.memory_space<vmem>>, %arg4: memref<512x128xbf16, #tpu.memory_space<vmem>>) attributes {dimension_semantics = [#tpu.dimension_semantics<parallel>], iteration_bounds = array<i64: 1>, scalar_prefetch = 0 : i64, scratch_operands = 0 : i64, tpu.core_type = #tpu.core_type<tc>, window_params = [{transform_indices = @transform_0, window_bounds = array<i64: 512, 128>}, {pipeline_mode = #tpu.pipeline_mode<synchronous>, transform_indices = @transform_1, window_bounds = array<i64: 1, 128>}, {pipeline_mode = #tpu.pipeline_mode<synchronous>, transform_indices = @transform_2, window_bounds = array<i64: 1, 128>}, {transform_indices = @transform_3, window_bounds = array<i64: 512, 128>}]} {
    %c0 = arith.constant 0 : index
    %c0_0 = arith.constant 0 : index
    %0 = vector.load %arg1[%c0, %c0_0] : memref<512x128xbf16, #tpu.memory_space<vmem>>, vector<512x128xbf16>
    %1 = arith.extf %0 : vector<512x128xbf16> to vector<512x128xf32>
    %c0_1 = arith.constant 0 : index
    %c0_2 = arith.constant 0 : index
    %2 = vector.load %arg2[%c0_1, %c0_2] : memref<1x128xf32, #tpu.memory_space<vmem>>, vector<1x128xf32>
    %3 = vector.broadcast %2 : vector<1x128xf32> to vector<512x128xf32>
    %4 = arith.mulf %1, %3 : vector<512x128xf32>
    %c0_3 = arith.constant 0 : index
    %c0_4 = arith.constant 0 : index
    %5 = vector.load %arg3[%c0_3, %c0_4] : memref<1x128xf32, #tpu.memory_space<vmem>>, vector<1x128xf32>
    %6 = vector.broadcast %5 : vector<1x128xf32> to vector<512x128xf32>
    %7 = arith.addf %4, %6 : vector<512x128xf32>
    %cst = arith.constant 0.000000e+00 : f32
    %8 = vector.broadcast %cst : f32 to vector<512x128xf32>
    %9 = arith.maximumf %7, %8 : vector<512x128xf32>
    %10 = arith.truncf %9 : vector<512x128xf32> to vector<512x128xbf16>
    %c0_5 = arith.constant 0 : index
    %c0_6 = arith.constant 0 : index
    %11 = vector.load %arg4[%c0_5, %c0_6] : memref<512x128xbf16, #tpu.memory_space<vmem>>, vector<512x128xbf16>
    tpu.vector_store %arg4[%c0_5, %c0_6], %10 {strides = array<i32>} : memref<512x128xbf16, #tpu.memory_space<vmem>>, vector<512x128xbf16>,
    return
  }
  func.func @transform_0(%arg0: i32) -> (i32, i32) {
    %c0_i32 = arith.constant 0 : i32
    %c0_i32_0 = arith.constant 0 : i32
    return %arg0, %c0_i32 : i32, i32
  }
  func.func @transform_1(%arg0: i32) -> (i32, i32) {
    %c0_i32 = arith.constant 0 : i32
    %c0_i32_0 = arith.constant 0 : i32
    %c0_i32_1 = arith.constant 0 : i32
    return %c0_i32, %c0_i32_0 : i32, i32
  }
  func.func @transform_2(%arg0: i32) -> (i32, i32) {
    %c0_i32 = arith.constant 0 : i32
    %c0_i32_0 = arith.constant 0 : i32
    %c0_i32_1 = arith.constant 0 : i32
    return %c0_i32, %c0_i32_0 : i32, i32
  }
  func.func @transform_3(%arg0: i32) -> (i32, i32) {
    %c0_i32 = arith.constant 0 : i32
    %c0_i32_0 = arith.constant 0 : i32
    return %arg0, %c0_i32 : i32, i32
  }
}

module attributes {stable_mosaic.version = 11 : i64} {
  func.func @_bn_relu_kernel(%arg0: i32, %arg1: memref<512x128xbf16, #tpu.memory_space<vmem>>, %arg2: memref<1x128xf32, #tpu.memory_space<vmem>>, %arg3: memref<1x128xf32, #tpu.memory_space<vmem>>, %arg4: memref<512x128xf32, #tpu.memory_space<vmem>>) attributes {dimension_semantics = [#tpu.dimension_semantics<parallel>], iteration_bounds = array<i64: 1>, scalar_prefetch = 0 : i64, scratch_operands = 0 : i64, tpu.core_type = #tpu.core_type<tc>, window_params = [{transform_indices = @transform_0, window_bounds = array<i64: 512, 128>}, {pipeline_mode = #tpu.pipeline_mode<synchronous>, transform_indices = @transform_1, window_bounds = array<i64: 1, 128>}, {pipeline_mode = #tpu.pipeline_mode<synchronous>, transform_indices = @transform_2, window_bounds = array<i64: 1, 128>}, {transform_indices = @transform_3, window_bounds = array<i64: 512, 128>}]} {
    %c0 = arith.constant 0 : index
    %c0_0 = arith.constant 0 : index
    %0 = vector.load %arg1[%c0, %c0_0] : memref<512x128xbf16, #tpu.memory_space<vmem>>, vector<512x128xbf16>
    %1 = arith.extf %0 : vector<512x128xbf16> to vector<512x128xf32>
    %c0_1 = arith.constant 0 : index
    %c0_2 = arith.constant 0 : index
    %2 = vector.load %arg2[%c0_1, %c0_2] : memref<1x128xf32, #tpu.memory_space<vmem>>, vector<1x128xf32>
    %3 = vector.broadcast %2 : vector<1x128xf32> to vector<512x128xf32>
    %4 = arith.mulf %1, %3 : vector<512x128xf32>
    %c0_3 = arith.constant 0 : index
    %c0_4 = arith.constant 0 : index
    %5 = vector.load %arg3[%c0_3, %c0_4] : memref<1x128xf32, #tpu.memory_space<vmem>>, vector<1x128xf32>
    %6 = vector.broadcast %5 : vector<1x128xf32> to vector<512x128xf32>
    %7 = arith.addf %4, %6 : vector<512x128xf32>
    %cst = arith.constant 0.000000e+00 : f32
    %8 = vector.broadcast %cst : f32 to vector<512x128xf32>
    %9 = arith.maximumf %7, %8 : vector<512x128xf32>
    %c0_5 = arith.constant 0 : index
    %c0_6 = arith.constant 0 : index
    %10 = vector.load %arg4[%c0_5, %c0_6] : memref<512x128xf32, #tpu.memory_space<vmem>>, vector<512x128xf32>
    tpu.vector_store %arg4[%c0_5, %c0_6], %9 {strides = array<i32>} : memref<512x128xf32, #tpu.memory_space<vmem>>, vector<512x128xf32>,
    return
  }
  func.func @transform_0(%arg0: i32) -> (i32, i32) {
    %c0_i32 = arith.constant 0 : i32
    %c0_i32_0 = arith.constant 0 : i32
    return %arg0, %c0_i32 : i32, i32
  }
  func.func @transform_1(%arg0: i32) -> (i32, i32) {
    %c0_i32 = arith.constant 0 : i32
    %c0_i32_0 = arith.constant 0 : i32
    %c0_i32_1 = arith.constant 0 : i32
    return %c0_i32, %c0_i32_0 : i32, i32
  }
  func.func @transform_2(%arg0: i32) -> (i32, i32) {
    %c0_i32 = arith.constant 0 : i32
    %c0_i32_0 = arith.constant 0 : i32
    %c0_i32_1 = arith.constant 0 : i32
    return %c0_i32, %c0_i32_0 : i32, i32
  }
  func.func @transform_3(%arg0: i32) -> (i32, i32) {
    %c0_i32 = arith.constant 0 : i32
    %c0_i32_0 = arith.constant 0 : i32
    return %arg0, %c0_i32 : i32, i32
  }
}

module attributes {stable_mosaic.version = 11 : i64} {
  func.func @_conv_stats_kernel(%arg0: i32, %arg1: memref<1x18x18x128xbf16, #tpu.memory_space<vmem>>, %arg2: memref<9x128x128xbf16, #tpu.memory_space<vmem>>, %arg3: memref<1x16x16x128xbf16, #tpu.memory_space<vmem>>, %arg4: memref<1x2x128xf32, #tpu.memory_space<vmem>>) attributes {dimension_semantics = [#tpu.dimension_semantics<parallel>], iteration_bounds = array<i64: 2>, scalar_prefetch = 0 : i64, scratch_operands = 0 : i64, tpu.core_type = #tpu.core_type<tc>, window_params = [{transform_indices = @transform_0, window_bounds = array<i64: 1, 18, 18, 128>}, {pipeline_mode = #tpu.pipeline_mode<synchronous>, transform_indices = @transform_1, window_bounds = array<i64: 9, 128, 128>}, {transform_indices = @transform_2, window_bounds = array<i64: 1, 16, 16, 128>}, {transform_indices = @transform_3, window_bounds = array<i64: 1, 2, 128>}]} {
    %c0 = arith.constant 0 : index
    %c0_0 = arith.constant 0 : index
    %c0_1 = arith.constant 0 : index
    %c0_2 = arith.constant 0 : index
    %0 = vector.load %arg1[%c0, %c0_0, %c0_1, %c0_2] : memref<1x18x18x128xbf16, #tpu.memory_space<vmem>>, vector<1x18x18x128xbf16>
    %1 = vector.shape_cast %0 : vector<1x18x18x128xbf16> to vector<18x18x128xbf16>
    %2 = arith.extf %1 : vector<18x18x128xbf16> to vector<18x18x128xf32>
    %cst = arith.constant 0.000000e+00 : f32
    %3 = vector.broadcast %cst : f32 to vector<256x128xf32>
    %4 = vector.extract_strided_slice %2 {offsets = [0, 0, 0], sizes = [16, 16, 128], strides = [1, 1, 1]} : vector<18x18x128xf32> to vector<16x16x128xf32>
    %5 = vector.shape_cast %4 : vector<16x16x128xf32> to vector<256x128xf32>
    %6 = arith.truncf %5 : vector<256x128xf32> to vector<256x128xbf16>
    %c0_3 = arith.constant 0 : index
    %c0_4 = arith.constant 0 : index
    %c0_5 = arith.constant 0 : index
    %7 = vector.load %arg2[%c0_3, %c0_4, %c0_5] : memref<9x128x128xbf16, #tpu.memory_space<vmem>>, vector<1x128x128xbf16>
    %8 = vector.shape_cast %7 : vector<1x128x128xbf16> to vector<128x128xbf16>
    %cst_6 = arith.constant dense<0.000000e+00> : vector<256x128xf32>
    %9 = tpu.matmul %6, %8, %cst_6 {dimension_numbers = #tpu.dot_dimension_numbers<[1], [0], [0], [1], [0, 0, 1, 1], [], []>} : vector<256x128xbf16>, vector<128x128xbf16>, vector<256x128xf32> -> vector<256x128xf32>
    %10 = arith.addf %3, %9 : vector<256x128xf32>
    %11 = vector.extract_strided_slice %2 {offsets = [0, 1, 0], sizes = [16, 16, 128], strides = [1, 1, 1]} : vector<18x18x128xf32> to vector<16x16x128xf32>
    %12 = vector.shape_cast %11 : vector<16x16x128xf32> to vector<256x128xf32>
    %13 = arith.truncf %12 : vector<256x128xf32> to vector<256x128xbf16>
    %c1 = arith.constant 1 : index
    %c0_7 = arith.constant 0 : index
    %c0_8 = arith.constant 0 : index
    %14 = vector.load %arg2[%c1, %c0_7, %c0_8] : memref<9x128x128xbf16, #tpu.memory_space<vmem>>, vector<1x128x128xbf16>
    %15 = vector.shape_cast %14 : vector<1x128x128xbf16> to vector<128x128xbf16>
    %cst_9 = arith.constant dense<0.000000e+00> : vector<256x128xf32>
    %16 = tpu.matmul %13, %15, %cst_9 {dimension_numbers = #tpu.dot_dimension_numbers<[1], [0], [0], [1], [0, 0, 1, 1], [], []>} : vector<256x128xbf16>, vector<128x128xbf16>, vector<256x128xf32> -> vector<256x128xf32>
    %17 = arith.addf %10, %16 : vector<256x128xf32>
    %18 = vector.extract_strided_slice %2 {offsets = [0, 2, 0], sizes = [16, 16, 128], strides = [1, 1, 1]} : vector<18x18x128xf32> to vector<16x16x128xf32>
    %19 = vector.shape_cast %18 : vector<16x16x128xf32> to vector<256x128xf32>
    %20 = arith.truncf %19 : vector<256x128xf32> to vector<256x128xbf16>
    %c2 = arith.constant 2 : index
    %c0_10 = arith.constant 0 : index
    %c0_11 = arith.constant 0 : index
    %21 = vector.load %arg2[%c2, %c0_10, %c0_11] : memref<9x128x128xbf16, #tpu.memory_space<vmem>>, vector<1x128x128xbf16>
    %22 = vector.shape_cast %21 : vector<1x128x128xbf16> to vector<128x128xbf16>
    %cst_12 = arith.constant dense<0.000000e+00> : vector<256x128xf32>
    %23 = tpu.matmul %20, %22, %cst_12 {dimension_numbers = #tpu.dot_dimension_numbers<[1], [0], [0], [1], [0, 0, 1, 1], [], []>} : vector<256x128xbf16>, vector<128x128xbf16>, vector<256x128xf32> -> vector<256x128xf32>
    %24 = arith.addf %17, %23 : vector<256x128xf32>
    %25 = vector.extract_strided_slice %2 {offsets = [1, 0, 0], sizes = [16, 16, 128], strides = [1, 1, 1]} : vector<18x18x128xf32> to vector<16x16x128xf32>
    %26 = vector.shape_cast %25 : vector<16x16x128xf32> to vector<256x128xf32>
    %27 = arith.truncf %26 : vector<256x128xf32> to vector<256x128xbf16>
    %c3 = arith.constant 3 : index
    %c0_13 = arith.constant 0 : index
    %c0_14 = arith.constant 0 : index
    %28 = vector.load %arg2[%c3, %c0_13, %c0_14] : memref<9x128x128xbf16, #tpu.memory_space<vmem>>, vector<1x128x128xbf16>
    %29 = vector.shape_cast %28 : vector<1x128x128xbf16> to vector<128x128xbf16>
    %cst_15 = arith.constant dense<0.000000e+00> : vector<256x128xf32>
    %30 = tpu.matmul %27, %29, %cst_15 {dimension_numbers = #tpu.dot_dimension_numbers<[1], [0], [0], [1], [0, 0, 1, 1], [], []>} : vector<256x128xbf16>, vector<128x128xbf16>, vector<256x128xf32> -> vector<256x128xf32>
    %31 = arith.addf %24, %30 : vector<256x128xf32>
    %32 = vector.extract_strided_slice %2 {offsets = [1, 1, 0], sizes = [16, 16, 128], strides = [1, 1, 1]} : vector<18x18x128xf32> to vector<16x16x128xf32>
    %33 = vector.shape_cast %32 : vector<16x16x128xf32> to vector<256x128xf32>
    %34 = arith.truncf %33 : vector<256x128xf32> to vector<256x128xbf16>
    %c4 = arith.constant 4 : index
    %c0_16 = arith.constant 0 : index
    %c0_17 = arith.constant 0 : index
    %35 = vector.load %arg2[%c4, %c0_16, %c0_17] : memref<9x128x128xbf16, #tpu.memory_space<vmem>>, vector<1x128x128xbf16>
    %36 = vector.shape_cast %35 : vector<1x128x128xbf16> to vector<128x128xbf16>
    %cst_18 = arith.constant dense<0.000000e+00> : vector<256x128xf32>
    %37 = tpu.matmul %34, %36, %cst_18 {dimension_numbers = #tpu.dot_dimension_numbers<[1], [0], [0], [1], [0, 0, 1, 1], [], []>} : vector<256x128xbf16>, vector<128x128xbf16>, vector<256x128xf32> -> vector<256x128xf32>
    %38 = arith.addf %31, %37 : vector<256x128xf32>
    %39 = vector.extract_strided_slice %2 {offsets = [1, 2, 0], sizes = [16, 16, 128], strides = [1, 1, 1]} : vector<18x18x128xf32> to vector<16x16x128xf32>
    %40 = vector.shape_cast %39 : vector<16x16x128xf32> to vector<256x128xf32>
    %41 = arith.truncf %40 : vector<256x128xf32> to vector<256x128xbf16>
    %c5 = arith.constant 5 : index
    %c0_19 = arith.constant 0 : index
    %c0_20 = arith.constant 0 : index
    %42 = vector.load %arg2[%c5, %c0_19, %c0_20] : memref<9x128x128xbf16, #tpu.memory_space<vmem>>, vector<1x128x128xbf16>
    %43 = vector.shape_cast %42 : vector<1x128x128xbf16> to vector<128x128xbf16>
    %cst_21 = arith.constant dense<0.000000e+00> : vector<256x128xf32>
    %44 = tpu.matmul %41, %43, %cst_21 {dimension_numbers = #tpu.dot_dimension_numbers<[1], [0], [0], [1], [0, 0, 1, 1], [], []>} : vector<256x128xbf16>, vector<128x128xbf16>, vector<256x128xf32> -> vector<256x128xf32>
    %45 = arith.addf %38, %44 : vector<256x128xf32>
    %46 = vector.extract_strided_slice %2 {offsets = [2, 0, 0], sizes = [16, 16, 128], strides = [1, 1, 1]} : vector<18x18x128xf32> to vector<16x16x128xf32>
    %47 = vector.shape_cast %46 : vector<16x16x128xf32> to vector<256x128xf32>
    %48 = arith.truncf %47 : vector<256x128xf32> to vector<256x128xbf16>
    %c6 = arith.constant 6 : index
    %c0_22 = arith.constant 0 : index
    %c0_23 = arith.constant 0 : index
    %49 = vector.load %arg2[%c6, %c0_22, %c0_23] : memref<9x128x128xbf16, #tpu.memory_space<vmem>>, vector<1x128x128xbf16>
    %50 = vector.shape_cast %49 : vector<1x128x128xbf16> to vector<128x128xbf16>
    %cst_24 = arith.constant dense<0.000000e+00> : vector<256x128xf32>
    %51 = tpu.matmul %48, %50, %cst_24 {dimension_numbers = #tpu.dot_dimension_numbers<[1], [0], [0], [1], [0, 0, 1, 1], [], []>} : vector<256x128xbf16>, vector<128x128xbf16>, vector<256x128xf32> -> vector<256x128xf32>
    %52 = arith.addf %45, %51 : vector<256x128xf32>
    %53 = vector.extract_strided_slice %2 {offsets = [2, 1, 0], sizes = [16, 16, 128], strides = [1, 1, 1]} : vector<18x18x128xf32> to vector<16x16x128xf32>
    %54 = vector.shape_cast %53 : vector<16x16x128xf32> to vector<256x128xf32>
    %55 = arith.truncf %54 : vector<256x128xf32> to vector<256x128xbf16>
    %c7 = arith.constant 7 : index
    %c0_25 = arith.constant 0 : index
    %c0_26 = arith.constant 0 : index
    %56 = vector.load %arg2[%c7, %c0_25, %c0_26] : memref<9x128x128xbf16, #tpu.memory_space<vmem>>, vector<1x128x128xbf16>
    %57 = vector.shape_cast %56 : vector<1x128x128xbf16> to vector<128x128xbf16>
    %cst_27 = arith.constant dense<0.000000e+00> : vector<256x128xf32>
    %58 = tpu.matmul %55, %57, %cst_27 {dimension_numbers = #tpu.dot_dimension_numbers<[1], [0], [0], [1], [0, 0, 1, 1], [], []>} : vector<256x128xbf16>, vector<128x128xbf16>, vector<256x128xf32> -> vector<256x128xf32>
    %59 = arith.addf %52, %58 : vector<256x128xf32>
    %60 = vector.extract_strided_slice %2 {offsets = [2, 2, 0], sizes = [16, 16, 128], strides = [1, 1, 1]} : vector<18x18x128xf32> to vector<16x16x128xf32>
    %61 = vector.shape_cast %60 : vector<16x16x128xf32> to vector<256x128xf32>
    %62 = arith.truncf %61 : vector<256x128xf32> to vector<256x128xbf16>
    %c8 = arith.constant 8 : index
    %c0_28 = arith.constant 0 : index
    %c0_29 = arith.constant 0 : index
    %63 = vector.load %arg2[%c8, %c0_28, %c0_29] : memref<9x128x128xbf16, #tpu.memory_space<vmem>>, vector<1x128x128xbf16>
    %64 = vector.shape_cast %63 : vector<1x128x128xbf16> to vector<128x128xbf16>
    %cst_30 = arith.constant dense<0.000000e+00> : vector<256x128xf32>
    %65 = tpu.matmul %62, %64, %cst_30 {dimension_numbers = #tpu.dot_dimension_numbers<[1], [0], [0], [1], [0, 0, 1, 1], [], []>} : vector<256x128xbf16>, vector<128x128xbf16>, vector<256x128xf32> -> vector<256x128xf32>
    %66 = arith.addf %59, %65 : vector<256x128xf32>
    %67 = vector.shape_cast %66 : vector<256x128xf32> to vector<16x16x128xf32>
    %68 = arith.truncf %67 : vector<16x16x128xf32> to vector<16x16x128xbf16>
    %c0_31 = arith.constant 0 : index
    %c0_32 = arith.constant 0 : index
    %c0_33 = arith.constant 0 : index
    %c0_34 = arith.constant 0 : index
    %69 = vector.load %arg3[%c0_31, %c0_32, %c0_33, %c0_34] : memref<1x16x16x128xbf16, #tpu.memory_space<vmem>>, vector<1x16x16x128xbf16>
    %70 = vector.shape_cast %69 : vector<1x16x16x128xbf16> to vector<16x16x128xbf16>
    %71 = vector.shape_cast %68 : vector<16x16x128xbf16> to vector<1x16x16x128xbf16>
    tpu.vector_store %arg3[%c0_31, %c0_32, %c0_33, %c0_34], %71 {strides = array<i32>} : memref<1x16x16x128xbf16, #tpu.memory_space<vmem>>, vector<1x16x16x128xbf16>,
    %cst_35 = arith.constant dense<0.000000e+00> : vector<128xf32>
    %72 = vector.multi_reduction <add>, %66, %cst_35 [0] : vector<256x128xf32> to vector<128xf32>
    %73 = vector.shape_cast %72 : vector<128xf32> to vector<1x128xf32>
    %74 = arith.mulf %66, %66 : vector<256x128xf32>
    %cst_36 = arith.constant dense<0.000000e+00> : vector<128xf32>
    %75 = vector.multi_reduction <add>, %74, %cst_36 [0] : vector<256x128xf32> to vector<128xf32>
    %76 = vector.shape_cast %75 : vector<128xf32> to vector<1x128xf32>
    %77 = tpu.concatenate %73, %76 in 0 : vector<1x128xf32>, vector<1x128xf32> -> vector<2x128xf32>
    %c0_37 = arith.constant 0 : index
    %c0_38 = arith.constant 0 : index
    %c0_39 = arith.constant 0 : index
    %78 = vector.load %arg4[%c0_37, %c0_38, %c0_39] : memref<1x2x128xf32, #tpu.memory_space<vmem>>, vector<1x2x128xf32>
    %79 = vector.shape_cast %78 : vector<1x2x128xf32> to vector<2x128xf32>
    %80 = vector.shape_cast %77 : vector<2x128xf32> to vector<1x2x128xf32>
    tpu.vector_store %arg4[%c0_37, %c0_38, %c0_39], %80 {strides = array<i32>} : memref<1x2x128xf32, #tpu.memory_space<vmem>>, vector<1x2x128xf32>,
    return
  }
  func.func @transform_0(%arg0: i32) -> (i32, i32, i32, i32) {
    %c0_i32 = arith.constant 0 : i32
    %c0_i32_0 = arith.constant 0 : i32
    %c0_i32_1 = arith.constant 0 : i32
    %c0_i32_2 = arith.constant 0 : i32
    return %arg0, %c0_i32, %c0_i32_0, %c0_i32_1 : i32, i32, i32, i32
  }
  func.func @transform_1(%arg0: i32) -> (i32, i32, i32) {
    %c0_i32 = arith.constant 0 : i32
    %c0_i32_0 = arith.constant 0 : i32
    %c0_i32_1 = arith.constant 0 : i32
    %c0_i32_2 = arith.constant 0 : i32
    return %c0_i32, %c0_i32_0, %c0_i32_1 : i32, i32, i32
  }
  func.func @transform_2(%arg0: i32) -> (i32, i32, i32, i32) {
    %c0_i32 = arith.constant 0 : i32
    %c0_i32_0 = arith.constant 0 : i32
    %c0_i32_1 = arith.constant 0 : i32
    %c0_i32_2 = arith.constant 0 : i32
    return %arg0, %c0_i32, %c0_i32_0, %c0_i32_1 : i32, i32, i32, i32
  }
  func.func @transform_3(%arg0: i32) -> (i32, i32, i32) {
    %c0_i32 = arith.constant 0 : i32
    %c0_i32_0 = arith.constant 0 : i32
    %c0_i32_1 = arith.constant 0 : i32
    return %arg0, %c0_i32, %c0_i32_0 : i32, i32, i32
  }
}

</mosaic_0001>

<llo_original>
// kernel: conv_block_forward.7
$region0: #{conv_block_forward.7}
  #allocation0 [shape = 'u32[]', space=smem, size = 0x4, offset = 0x4, fixed_abs, tag = 'smem constant byte address 0x4 - core index']
  #allocation1 [shape = 'u32[72,128]{1,0:T(1,128)}', space=vmem, size = 0x9000, scoped, tag = 'internal scratch']
  %s0 = inlined_call_operand.vmem [shape: bf16[512,128], index: 0, kind: input, shape index: {}]
  %s1 = inlined_call_operand.vmem [shape: f32[1,128], index: 1, kind: input, shape index: {}]
  %s2 = inlined_call_operand.vmem [shape: f32[1,128], index: 2, kind: input, shape index: {}]
  %s3 = inlined_call_operand.vmem [shape: f32[512,128], index: 3, kind: output, shape index: {}]
  %s4 = sld [smem:[#allocation0]]
  $region22: #{conv_block_forward.7} parent=0
    _
  %s6 = ssub.s32 1, %s4
  %s7 = scalar_select 0, %s6, %s4
  // Predicated region
  $region2: #{conv_block_forward.7} parent=0 // pred_check
    _
  $region3: #{conv_block_forward.7} parent=0 // pred_check_branch
    %9 = sbr.rel (0) target = $region5
  $region4: #{conv_block_forward.7} parent=0 // pred_region
    _
  $region5: #{conv_block_forward.7} parent=0 // pred_fallthru
    _
  // Predicated region
  $region6: #{conv_block_forward.7} parent=0 // pred_check
    _
  $region7: #{conv_block_forward.7} parent=0 // pred_check_branch
    %11 = sbr.rel (0) target = $region9
  $region8: #{conv_block_forward.7} parent=0 // pred_region
    _
  $region9: #{conv_block_forward.7} parent=0 // pred_fallthru
    _
  // Predicated region
  $region10: #{conv_block_forward.7} parent=0 // pred_check
    _
  $region11: #{conv_block_forward.7} parent=0 // pred_check_branch
    %13 = sbr.rel (0) target = $region13
  $region12: #{conv_block_forward.7} parent=0 // pred_region
    _
  $region13: #{conv_block_forward.7} parent=0 // pred_fallthru
    _
  %v14 = vld [vmem:[%s0] sm:$0xf]
  %v15 = vld [vmem:[%s0 + $0x4] sm:$0xf]
  %v16 = vld [vmem:[%s0 + $0x8] sm:$0xf]
  %v17 = vld [vmem:[%s0 + $0xc] sm:$0xf]
  %v18 = vld [vmem:[%s0 + $0x10] sm:$0xf]
  %v19 = vld [vmem:[%s0 + $0x14] sm:$0xf]
  %v20 = vld [vmem:[%s0 + $0x18] sm:$0xf]
  %v21 = vld [vmem:[%s0 + $0x1c] sm:$0xf]
  %v22 = vld [vmem:[%s0 + $0x20] sm:$0xf]
  %v23 = vld [vmem:[%s0 + $0x24] sm:$0xf]
  %v24 = vld [vmem:[%s0 + $0x28] sm:$0xf]
  %v25 = vld [vmem:[%s0 + $0x2c] sm:$0xf]
  %v26 = vld [vmem:[%s0 + $0x30] sm:$0xf]
  %v27 = vld [vmem:[%s0 + $0x34] sm:$0xf]
  %v28 = vld [vmem:[%s0 + $0x38] sm:$0xf]
  %v29 = vld [vmem:[%s0 + $0x3c] sm:$0xf]
  %v30 = vld [vmem:[%s0 + $0x40] sm:$0xf]
  %v31 = vld [vmem:[%s0 + $0x44] sm:$0xf]
  %v32 = vld [vmem:[%s0 + $0x48] sm:$0xf]
  %v33 = vld [vmem:[%s0 + $0x4c] sm:$0xf]
  %v34 = vld [vmem:[%s0 + $0x50] sm:$0xf]
  %v35 = vld [vmem:[%s0 + $0x54] sm:$0xf]
  %v36 = vld [vmem:[%s0 + $0x58] sm:$0xf]
  %v37 = vld [vmem:[%s0 + $0x5c] sm:$0xf]
  %v38 = vld [vmem:[%s0 + $0x60] sm:$0xf]
  %v39 = vld [vmem:[%s0 + $0x64] sm:$0xf]
  %v40 = vld [vmem:[%s0 + $0x68] sm:$0xf]
  %v41 = vld [vmem:[%s0 + $0x6c] sm:$0xf]
  %v42 = vld [vmem:[%s0 + $0x70] sm:$0xf]
  %v43 = vld [vmem:[%s0 + $0x74] sm:$0xf]
  %v44 = vld [vmem:[%s0 + $0x78] sm:$0xf]
  %v45 = vld [vmem:[%s0 + $0x7c] sm:$0xf]
  %v46 = vld [vmem:[%s0 + $0x80] sm:$0xf]
  %v47 = vld [vmem:[%s0 + $0x84] sm:$0xf]
  %v48 = vld [vmem:[%s0 + $0x88] sm:$0xf]
  %v49 = vld [vmem:[%s0 + $0x8c] sm:$0xf]
  %v50 = vld [vmem:[%s0 + $0x90] sm:$0xf]
  %v51 = vld [vmem:[%s0 + $0x94] sm:$0xf]
  %v52 = vld [vmem:[%s0 + $0x98] sm:$0xf]
  %v53 = vld [vmem:[%s0 + $0x9c] sm:$0xf]
  %v54 = vld [vmem:[%s0 + $0xa0] sm:$0xf]
  %v55 = vld [vmem:[%s0 + $0xa4] sm:$0xf]
  %v56 = vld [vmem:[%s0 + $0xa8] sm:$0xf]
  %v57 = vld [vmem:[%s0 + $0xac] sm:$0xf]
  %v58 = vld [vmem:[%s0 + $0xb0] sm:$0xf]
  %v59 = vld [vmem:[%s0 + $0xb4] sm:$0xf]
  %v60 = vld [vmem:[%s0 + $0xb8] sm:$0xf]
  %v61 = vld [vmem:[%s0 + $0xbc] sm:$0xf]
  %v62 = vld [vmem:[%s0 + $0xc0] sm:$0xf]
  %v63 = vld [vmem:[%s0 + $0xc4] sm:$0xf]
  %v64 = vld [vmem:[%s0 + $0xc8] sm:$0xf]
  %v65 = vld [vmem:[%s0 + $0xcc] sm:$0xf]
  %v66 = vld [vmem:[%s0 + $0xd0] sm:$0xf]
  %v67 = vld [vmem:[%s0 + $0xd4] sm:$0xf]
  %v68 = vld [vmem:[%s0 + $0xd8] sm:$0xf]
  %v69 = vld [vmem:[%s0 + $0xdc] sm:$0xf]
  %v70 = vld [vmem:[%s0 + $0xe0] sm:$0xf]
  %v71 = vld [vmem:[%s0 + $0xe4] sm:$0xf]
  %v72 = vld [vmem:[%s0 + $0xe8] sm:$0xf]
  %v73 = vld [vmem:[%s0 + $0xec] sm:$0xf]
  %v74 = vld [vmem:[%s0 + $0xf0] sm:$0xf]
  %v75 = vld [vmem:[%s0 + $0xf4] sm:$0xf]
  %v76 = vld [vmem:[%s0 + $0xf8] sm:$0xf]
  %v77 = vld [vmem:[%s0 + $0xfc] sm:$0xf]
  %v78 = vunpack.c.l.bf16 %v14
  %v79 = vunpack.c.l.bf16 %v15
  %v80 = vunpack.c.l.bf16 %v16
  %v81 = vunpack.c.l.bf16 %v17
  %v82 = vunpack.c.l.bf16 %v18
  %v83 = vunpack.c.l.bf16 %v19
  %v84 = vunpack.c.l.bf16 %v20
  %v85 = vunpack.c.l.bf16 %v21
  %v86 = vunpack.c.l.bf16 %v22
  %v87 = vunpack.c.l.bf16 %v23
  %v88 = vunpack.c.l.bf16 %v24
  %v89 = vunpack.c.l.bf16 %v25
  %v90 = vunpack.c.l.bf16 %v26
  %v91 = vunpack.c.l.bf16 %v27
  %v92 = vunpack.c.l.bf16 %v28
  %v93 = vunpack.c.l.bf16 %v29
  %v94 = vunpack.c.l.bf16 %v30
  %v95 = vunpack.c.l.bf16 %v31
  %v96 = vunpack.c.l.bf16 %v32
  %v97 = vunpack.c.l.bf16 %v33
  %v98 = vunpack.c.l.bf16 %v34
  %v99 = vunpack.c.l.bf16 %v35
  %v100 = vunpack.c.l.bf16 %v36
  %v101 = vunpack.c.l.bf16 %v37
  %v102 = vunpack.c.l.bf16 %v38
  %v103 = vunpack.c.l.bf16 %v39
  %v104 = vunpack.c.l.bf16 %v40
  %v105 = vunpack.c.l.bf16 %v41
  %v106 = vunpack.c.l.bf16 %v42
  %v107 = vunpack.c.l.bf16 %v43
  %v108 = vunpack.c.l.bf16 %v44
  %v109 = vunpack.c.l.bf16 %v45
  %v110 = vunpack.c.l.bf16 %v46
  %v111 = vunpack.c.l.bf16 %v47
  %v112 = vunpack.c.l.bf16 %v48
  %v113 = vunpack.c.l.bf16 %v49
  %v114 = vunpack.c.l.bf16 %v50
  %v115 = vunpack.c.l.bf16 %v51
  %v116 = vunpack.c.l.bf16 %v52
  %v117 = vunpack.c.l.bf16 %v53
  %v118 = vunpack.c.l.bf16 %v54
  %v119 = vunpack.c.l.bf16 %v55
  %v120 = vunpack.c.l.bf16 %v56
  %v121 = vunpack.c.l.bf16 %v57
  %v122 = vunpack.c.l.bf16 %v58
  %v123 = vunpack.c.l.bf16 %v59
  %v124 = vunpack.c.l.bf16 %v60
  %v125 = vunpack.c.l.bf16 %v61
  %v126 = vunpack.c.l.bf16 %v62
  %v127 = vunpack.c.l.bf16 %v63
  %v128 = vunpack.c.l.bf16 %v64
  %v129 = vunpack.c.l.bf16 %v65
  %v130 = vunpack.c.l.bf16 %v66
  %v131 = vunpack.c.l.bf16 %v67
  %v132 = vunpack.c.l.bf16 %v68
  %v133 = vunpack.c.l.bf16 %v69
  %v134 = vunpack.c.l.bf16 %v70
  %v135 = vunpack.c.l.bf16 %v71
  %v136 = vunpack.c.l.bf16 %v72
  %v137 = vunpack.c.l.bf16 %v73
  %v138 = vunpack.c.l.bf16 %v74
  %v139 = vunpack.c.l.bf16 %v75
  %v140 = vunpack.c.l.bf16 %v76
  %v141 = vunpack.c.l.bf16 %v77
  %v142 = vld [vmem:[%s1] sm:$0x1]
  %v144 = vperm.slane %v142, 0
  %v146 = vmul.f32 %v78, %v144
  %v147 = vmul.f32 %v79, %v144
  %v148 = vmul.f32 %v80, %v144
  %v149 = vmul.f32 %v81, %v144
  %v150 = vmul.f32 %v82, %v144
  %v151 = vmul.f32 %v83, %v144
  %v152 = vmul.f32 %v84, %v144
  %v153 = vmul.f32 %v85, %v144
  %v154 = vmul.f32 %v86, %v144
  %v155 = vmul.f32 %v87, %v144
  %v156 = vmul.f32 %v88, %v144
  %v157 = vmul.f32 %v89, %v144
  %v158 = vmul.f32 %v90, %v144
  %v159 = vmul.f32 %v91, %v144
  %v160 = vmul.f32 %v92, %v144
  %v161 = vmul.f32 %v93, %v144
  %v162 = vmul.f32 %v94, %v144
  %v163 = vmul.f32 %v95, %v144
  %v164 = vmul.f32 %v96, %v144
  %v165 = vmul.f32 %v97, %v144
  %v166 = vmul.f32 %v98, %v144
  %v167 = vmul.f32 %v99, %v144
  %v168 = vmul.f32 %v100, %v144
  %v169 = vmul.f32 %v101, %v144
  %v170 = vmul.f32 %v102, %v144
  %v171 = vmul.f32 %v103, %v144
  %v172 = vmul.f32 %v104, %v144
  %v173 = vmul.f32 %v105, %v144
  %v174 = vmul.f32 %v106, %v144
  %v175 = vmul.f32 %v107, %v144
  %v176 = vmul.f32 %v108, %v144
  %v177 = vmul.f32 %v109, %v144
  %v178 = vmul.f32 %v110, %v144
  %v179 = vmul.f32 %v111, %v144
  %v180 = vmul.f32 %v112, %v144
  %v181 = vmul.f32 %v113, %v144
  %v182 = vmul.f32 %v114, %v144
  %v183 = vmul.f32 %v115, %v144
  %v184 = vmul.f32 %v116, %v144
  %v185 = vmul.f32 %v117, %v144
  %v186 = vmul.f32 %v118, %v144
  %v187 = vmul.f32 %v119, %v144
  %v188 = vmul.f32 %v120, %v144
  %v189 = vmul.f32 %v121, %v144
  %v190 = vmul.f32 %v122, %v144
  %v191 = vmul.f32 %v123, %v144
  %v192 = vmul.f32 %v124, %v144
  %v193 = vmul.f32 %v125, %v144
  %v194 = vmul.f32 %v126, %v144
  %v195 = vmul.f32 %v127, %v144
  %v196 = vmul.f32 %v128, %v144
  %v197 = vmul.f32 %v129, %v144
  %v198 = vmul.f32 %v130, %v144
  %v199 = vmul.f32 %v131, %v144
  %v200 = vmul.f32 %v132, %v144
  %v201 = vmul.f32 %v133, %v144
  %v202 = vmul.f32 %v134, %v144
  %v203 = vmul.f32 %v135, %v144
  %v204 = vmul.f32 %v136, %v144
  %v205 = vmul.f32 %v137, %v144
  %v206 = vmul.f32 %v138, %v144
  %v207 = vmul.f32 %v139, %v144
  %v208 = vmul.f32 %v140, %v144
  %v209 = vmul.f32 %v141, %v144
  %v210 = vld [vmem:[%s2] sm:$0x1]
  %v212 = vperm.slane %v210, 0
  %v214 = vadd.f32 %v146, %v212
  %v215 = vadd.f32 %v147, %v212
  %v216 = vadd.f32 %v148, %v212
  %v217 = vadd.f32 %v149, %v212
  %v218 = vadd.f32 %v150, %v212
  %v219 = vadd.f32 %v151, %v212
  %v220 = vadd.f32 %v152, %v212
  %v221 = vadd.f32 %v153, %v212
  %v222 = vadd.f32 %v154, %v212
  %v223 = vadd.f32 %v155, %v212
  %v224 = vadd.f32 %v156, %v212
  %v225 = vadd.f32 %v157, %v212
  %v226 = vadd.f32 %v158, %v212
  %v227 = vadd.f32 %v159, %v212
  %v228 = vadd.f32 %v160, %v212
  %v229 = vadd.f32 %v161, %v212
  %v230 = vadd.f32 %v162, %v212
  %v231 = vadd.f32 %v163, %v212
  %v232 = vadd.f32 %v164, %v212
  %v233 = vadd.f32 %v165, %v212
  %v234 = vadd.f32 %v166, %v212
  %v235 = vadd.f32 %v167, %v212
  %v236 = vadd.f32 %v168, %v212
  %v237 = vadd.f32 %v169, %v212
  %v238 = vadd.f32 %v170, %v212
  %v239 = vadd.f32 %v171, %v212
  %v240 = vadd.f32 %v172, %v212
  %v241 = vadd.f32 %v173, %v212
  %v242 = vadd.f32 %v174, %v212
  %v243 = vadd.f32 %v175, %v212
  %v244 = vadd.f32 %v176, %v212
  %v245 = vadd.f32 %v177, %v212
  %v246 = vadd.f32 %v178, %v212
  %v247 = vadd.f32 %v179, %v212
  %v248 = vadd.f32 %v180, %v212
  %v249 = vadd.f32 %v181, %v212
  %v250 = vadd.f32 %v182, %v212
  %v251 = vadd.f32 %v183, %v212
  %v252 = vadd.f32 %v184, %v212
  %v253 = vadd.f32 %v185, %v212
  %v254 = vadd.f32 %v186, %v212
  %v255 = vadd.f32 %v187, %v212
  %v256 = vadd.f32 %v188, %v212
  %v257 = vadd.f32 %v189, %v212
  %v258 = vadd.f32 %v190, %v212
  %v259 = vadd.f32 %v191, %v212
  %v260 = vadd.f32 %v192, %v212
  %v261 = vadd.f32 %v193, %v212
  %v262 = vadd.f32 %v194, %v212
  %v263 = vadd.f32 %v195, %v212
  %v264 = vadd.f32 %v196, %v212
  %v265 = vadd.f32 %v197, %v212
  %v266 = vadd.f32 %v198, %v212
  %v267 = vadd.f32 %v199, %v212
  %v268 = vadd.f32 %v200, %v212
  %v269 = vadd.f32 %v201, %v212
  %v270 = vadd.f32 %v202, %v212
  %v271 = vadd.f32 %v203, %v212
  %v272 = vadd.f32 %v204, %v212
  %v273 = vadd.f32 %v205, %v212
  %v274 = vadd.f32 %v206, %v212
  %v275 = vadd.f32 %v207, %v212
  %v276 = vadd.f32 %v208, %v212
  %v277 = vadd.f32 %v209, %v212
  %v278 = vmax.f32 %v214, 0.0
  %v279 = vmax.f32 %v215, 0.0
  %v280 = vmax.f32 %v216, 0.0
  %v281 = vmax.f32 %v217, 0.0
  %v282 = vmax.f32 %v218, 0.0
  %v283 = vmax.f32 %v219, 0.0
  %v284 = vmax.f32 %v220, 0.0
  %v285 = vmax.f32 %v221, 0.0
  %v286 = vmax.f32 %v222, 0.0
  %v287 = vmax.f32 %v223, 0.0
  %v288 = vmax.f32 %v224, 0.0
  %v289 = vmax.f32 %v225, 0.0
  %v290 = vmax.f32 %v226, 0.0
  %v291 = vmax.f32 %v227, 0.0
  %v292 = vmax.f32 %v228, 0.0
  %v293 = vmax.f32 %v229, 0.0
  %v294 = vmax.f32 %v230, 0.0
  %v295 = vmax.f32 %v231, 0.0
  %v296 = vmax.f32 %v232, 0.0
  %v297 = vmax.f32 %v233, 0.0
  %v298 = vmax.f32 %v234, 0.0
  %v299 = vmax.f32 %v235, 0.0
  %v300 = vmax.f32 %v236, 0.0
  %v301 = vmax.f32 %v237, 0.0
  %v302 = vmax.f32 %v238, 0.0
  %v303 = vmax.f32 %v239, 0.0
  %v304 = vmax.f32 %v240, 0.0
  %v305 = vmax.f32 %v241, 0.0
  %v306 = vmax.f32 %v242, 0.0
  %v307 = vmax.f32 %v243, 0.0
  %v308 = vmax.f32 %v244, 0.0
  %v309 = vmax.f32 %v245, 0.0
  %v310 = vmax.f32 %v246, 0.0
  %v311 = vmax.f32 %v247, 0.0
  %v312 = vmax.f32 %v248, 0.0
  %v313 = vmax.f32 %v249, 0.0
  %v314 = vmax.f32 %v250, 0.0
  %v315 = vmax.f32 %v251, 0.0
  %v316 = vmax.f32 %v252, 0.0
  %v317 = vmax.f32 %v253, 0.0
  %v318 = vmax.f32 %v254, 0.0
  %v319 = vmax.f32 %v255, 0.0
  %v320 = vmax.f32 %v256, 0.0
  %v321 = vmax.f32 %v257, 0.0
  %v322 = vmax.f32 %v258, 0.0
  %v323 = vmax.f32 %v259, 0.0
  %v324 = vmax.f32 %v260, 0.0
  %v325 = vmax.f32 %v261, 0.0
  %v326 = vmax.f32 %v262, 0.0
  %v327 = vmax.f32 %v263, 0.0
  %v328 = vmax.f32 %v264, 0.0
  %v329 = vmax.f32 %v265, 0.0
  %v330 = vmax.f32 %v266, 0.0
  %v331 = vmax.f32 %v267, 0.0
  %v332 = vmax.f32 %v268, 0.0
  %v333 = vmax.f32 %v269, 0.0
  %v334 = vmax.f32 %v270, 0.0
  %v335 = vmax.f32 %v271, 0.0
  %v336 = vmax.f32 %v272, 0.0
  %v337 = vmax.f32 %v273, 0.0
  %v338 = vmax.f32 %v274, 0.0
  %v339 = vmax.f32 %v275, 0.0
  %v340 = vmax.f32 %v276, 0.0
  %v341 = vmax.f32 %v277, 0.0
  %342 = vst [vmem:[%s3] sm:$0xff] %v278
  %343 = vst [vmem:[%s3 + $0x8] sm:$0xff] %v279
  %344 = vst [vmem:[%s3 + $0x10] sm:$0xff] %v280
  %345 = vst [vmem:[%s3 + $0x18] sm:$0xff] %v281
  %346 = vst [vmem:[%s3 + $0x20] sm:$0xff] %v282
  %347 = vst [vmem:[%s3 + $0x28] sm:$0xff] %v283
  %348 = vst [vmem:[%s3 + $0x30] sm:$0xff] %v284
  %349 = vst [vmem:[%s3 + $0x38] sm:$0xff] %v285
  %350 = vst [vmem:[%s3 + $0x40] sm:$0xff] %v286
  %351 = vst [vmem:[%s3 + $0x48] sm:$0xff] %v287
  %352 = vst [vmem:[%s3 + $0x50] sm:$0xff] %v288
  %353 = vst [vmem:[%s3 + $0x58] sm:$0xff] %v289
  %354 = vst [vmem:[%s3 + $0x60] sm:$0xff] %v290
  %355 = vst [vmem:[%s3 + $0x68] sm:$0xff] %v291
  %356 = vst [vmem:[%s3 + $0x70] sm:$0xff] %v292
  %357 = vst [vmem:[%s3 + $0x78] sm:$0xff] %v293
  %358 = vst [vmem:[%s3 + $0x80] sm:$0xff] %v294
  %359 = vst [vmem:[%s3 + $0x88] sm:$0xff] %v295
  %360 = vst [vmem:[%s3 + $0x90] sm:$0xff] %v296
  %361 = vst [vmem:[%s3 + $0x98] sm:$0xff] %v297
  %362 = vst [vmem:[%s3 + $0xa0] sm:$0xff] %v298
  %363 = vst [vmem:[%s3 + $0xa8] sm:$0xff] %v299
  %364 = vst [vmem:[%s3 + $0xb0] sm:$0xff] %v300
  %365 = vst [vmem:[%s3 + $0xb8] sm:$0xff] %v301
  %366 = vst [vmem:[%s3 + $0xc0] sm:$0xff] %v302
  %367 = vst [vmem:[%s3 + $0xc8] sm:$0xff] %v303
  %368 = vst [vmem:[%s3 + $0xd0] sm:$0xff] %v304
  %369 = vst [vmem:[%s3 + $0xd8] sm:$0xff] %v305
  %370 = vst [vmem:[%s3 + $0xe0] sm:$0xff] %v306
  %371 = vst [vmem:[%s3 + $0xe8] sm:$0xff] %v307
  %372 = vst [vmem:[%s3 + $0xf0] sm:$0xff] %v308
  %373 = vst [vmem:[%s3 + $0xf8] sm:$0xff] %v309
  %374 = vst [vmem:[%s3 + $0x100] sm:$0xff] %v310
  %375 = vst [vmem:[%s3 + $0x108] sm:$0xff] %v311
  %376 = vst [vmem:[%s3 + $0x110] sm:$0xff] %v312
  %377 = vst [vmem:[%s3 + $0x118] sm:$0xff] %v313
  %378 = vst [vmem:[%s3 + $0x120] sm:$0xff] %v314
  %379 = vst [vmem:[%s3 + $0x128] sm:$0xff] %v315
  %380 = vst [vmem:[%s3 + $0x130] sm:$0xff] %v316
  %381 = vst [vmem:[%s3 + $0x138] sm:$0xff] %v317
  %382 = vst [vmem:[%s3 + $0x140] sm:$0xff] %v318
  %383 = vst [vmem:[%s3 + $0x148] sm:$0xff] %v319
  %384 = vst [vmem:[%s3 + $0x150] sm:$0xff] %v320
  %385 = vst [vmem:[%s3 + $0x158] sm:$0xff] %v321
  %386 = vst [vmem:[%s3 + $0x160] sm:$0xff] %v322
  %387 = vst [vmem:[%s3 + $0x168] sm:$0xff] %v323
  %388 = vst [vmem:[%s3 + $0x170] sm:$0xff] %v324
  %389 = vst [vmem:[%s3 + $0x178] sm:$0xff] %v325
  %390 = vst [vmem:[%s3 + $0x180] sm:$0xff] %v326
  %391 = vst [vmem:[%s3 + $0x188] sm:$0xff] %v327
  %392 = vst [vmem:[%s3 + $0x190] sm:$0xff] %v328
  %393 = vst [vmem:[%s3 + $0x198] sm:$0xff] %v329
  %394 = vst [vmem:[%s3 + $0x1a0] sm:$0xff] %v330
  %395 = vst [vmem:[%s3 + $0x1a8] sm:$0xff] %v331
  %396 = vst [vmem:[%s3 + $0x1b0] sm:$0xff] %v332
  %397 = vst [vmem:[%s3 + $0x1b8] sm:$0xff] %v333
  %398 = vst [vmem:[%s3 + $0x1c0] sm:$0xff] %v334
  %399 = vst [vmem:[%s3 + $0x1c8] sm:$0xff] %v335
  %400 = vst [vmem:[%s3 + $0x1d0] sm:$0xff] %v336
  %401 = vst [vmem:[%s3 + $0x1d8] sm:$0xff] %v337
  %402 = vst [vmem:[%s3 + $0x1e0] sm:$0xff] %v338
  %403 = vst [vmem:[%s3 + $0x1e8] sm:$0xff] %v339
  %404 = vst [vmem:[%s3 + $0x1f0] sm:$0xff] %v340
  %405 = vst [vmem:[%s3 + $0x1f8] sm:$0xff] %v341
  // Predicated region
  $region14: #{conv_block_forward.7} parent=0 // pred_check
    _
  $region15: #{conv_block_forward.7} parent=0 // pred_check_branch
    %407 = sbr.rel (0) target = $region17
  $region16: #{conv_block_forward.7} parent=0 // pred_region
    _
  $region17: #{conv_block_forward.7} parent=0 // pred_fallthru
    _
  // Predicated region
  $region18: #{conv_block_forward.7} parent=0 // pred_check
    _
  $region19: #{conv_block_forward.7} parent=0 // pred_check_branch
    %409 = sbr.rel (0) target = $region21
  $region20: #{conv_block_forward.7} parent=0 // pred_region
    _
  $region21: #{conv_block_forward.7} parent=0 // pred_fallthru
    _

// kernel: conv_block_forward.5
$region0: #{conv_block_forward.5}
  #allocation0 [shape = 'u32[]', space=smem, size = 0x4, offset = 0x4, fixed_abs, tag = 'smem constant byte address 0x4 - core index']
  #allocation1 [shape = 'u32[72,128]{1,0:T(1,128)}', space=vmem, size = 0x9000, scoped, tag = 'internal scratch']
  %s0 = inlined_call_operand.vmem [shape: bf16[512,128], index: 0, kind: input, shape index: {}]
  %s1 = inlined_call_operand.vmem [shape: f32[1,128], index: 1, kind: input, shape index: {}]
  %s2 = inlined_call_operand.vmem [shape: f32[1,128], index: 2, kind: input, shape index: {}]
  %s3 = inlined_call_operand.vmem [shape: bf16[512,128], index: 3, kind: output, shape index: {}]
  %s4 = sld [smem:[#allocation0]]
  $region22: #{conv_block_forward.5} parent=0
    _
  %s6 = ssub.s32 1, %s4
  %s7 = scalar_select 0, %s6, %s4
  // Predicated region
  $region2: #{conv_block_forward.5} parent=0 // pred_check
    _
  $region3: #{conv_block_forward.5} parent=0 // pred_check_branch
    %9 = sbr.rel (0) target = $region5
  $region4: #{conv_block_forward.5} parent=0 // pred_region
    _
  $region5: #{conv_block_forward.5} parent=0 // pred_fallthru
    _
  // Predicated region
  $region6: #{conv_block_forward.5} parent=0 // pred_check
    _
  $region7: #{conv_block_forward.5} parent=0 // pred_check_branch
    %11 = sbr.rel (0) target = $region9
  $region8: #{conv_block_forward.5} parent=0 // pred_region
    _
  $region9: #{conv_block_forward.5} parent=0 // pred_fallthru
    _
  // Predicated region
  $region10: #{conv_block_forward.5} parent=0 // pred_check
    _
  $region11: #{conv_block_forward.5} parent=0 // pred_check_branch
    %13 = sbr.rel (0) target = $region13
  $region12: #{conv_block_forward.5} parent=0 // pred_region
    _
  $region13: #{conv_block_forward.5} parent=0 // pred_fallthru
    _
  %v14 = vld [vmem:[%s0] sm:$0xf]
  %v15 = vld [vmem:[%s0 + $0x4] sm:$0xf]
  %v16 = vld [vmem:[%s0 + $0x8] sm:$0xf]
  %v17 = vld [vmem:[%s0 + $0xc] sm:$0xf]
  %v18 = vld [vmem:[%s0 + $0x10] sm:$0xf]
  %v19 = vld [vmem:[%s0 + $0x14] sm:$0xf]
  %v20 = vld [vmem:[%s0 + $0x18] sm:$0xf]
  %v21 = vld [vmem:[%s0 + $0x1c] sm:$0xf]
  %v22 = vld [vmem:[%s0 + $0x20] sm:$0xf]
  %v23 = vld [vmem:[%s0 + $0x24] sm:$0xf]
  %v24 = vld [vmem:[%s0 + $0x28] sm:$0xf]
  %v25 = vld [vmem:[%s0 + $0x2c] sm:$0xf]
  %v26 = vld [vmem:[%s0 + $0x30] sm:$0xf]
  %v27 = vld [vmem:[%s0 + $0x34] sm:$0xf]
  %v28 = vld [vmem:[%s0 + $0x38] sm:$0xf]
  %v29 = vld [vmem:[%s0 + $0x3c] sm:$0xf]
  %v30 = vld [vmem:[%s0 + $0x40] sm:$0xf]
  %v31 = vld [vmem:[%s0 + $0x44] sm:$0xf]
  %v32 = vld [vmem:[%s0 + $0x48] sm:$0xf]
  %v33 = vld [vmem:[%s0 + $0x4c] sm:$0xf]
  %v34 = vld [vmem:[%s0 + $0x50] sm:$0xf]
  %v35 = vld [vmem:[%s0 + $0x54] sm:$0xf]
  %v36 = vld [vmem:[%s0 + $0x58] sm:$0xf]
  %v37 = vld [vmem:[%s0 + $0x5c] sm:$0xf]
  %v38 = vld [vmem:[%s0 + $0x60] sm:$0xf]
  %v39 = vld [vmem:[%s0 + $0x64] sm:$0xf]
  %v40 = vld [vmem:[%s0 + $0x68] sm:$0xf]
  %v41 = vld [vmem:[%s0 + $0x6c] sm:$0xf]
  %v42 = vld [vmem:[%s0 + $0x70] sm:$0xf]
  %v43 = vld [vmem:[%s0 + $0x74] sm:$0xf]
  %v44 = vld [vmem:[%s0 + $0x78] sm:$0xf]
  %v45 = vld [vmem:[%s0 + $0x7c] sm:$0xf]
  %v46 = vld [vmem:[%s0 + $0x80] sm:$0xf]
  %v47 = vld [vmem:[%s0 + $0x84] sm:$0xf]
  %v48 = vld [vmem:[%s0 + $0x88] sm:$0xf]
  %v49 = vld [vmem:[%s0 + $0x8c] sm:$0xf]
  %v50 = vld [vmem:[%s0 + $0x90] sm:$0xf]
  %v51 = vld [vmem:[%s0 + $0x94] sm:$0xf]
  %v52 = vld [vmem:[%s0 + $0x98] sm:$0xf]
  %v53 = vld [vmem:[%s0 + $0x9c] sm:$0xf]
  %v54 = vld [vmem:[%s0 + $0xa0] sm:$0xf]
  %v55 = vld [vmem:[%s0 + $0xa4] sm:$0xf]
  %v56 = vld [vmem:[%s0 + $0xa8] sm:$0xf]
  %v57 = vld [vmem:[%s0 + $0xac] sm:$0xf]
  %v58 = vld [vmem:[%s0 + $0xb0] sm:$0xf]
  %v59 = vld [vmem:[%s0 + $0xb4] sm:$0xf]
  %v60 = vld [vmem:[%s0 + $0xb8] sm:$0xf]
  %v61 = vld [vmem:[%s0 + $0xbc] sm:$0xf]
  %v62 = vld [vmem:[%s0 + $0xc0] sm:$0xf]
  %v63 = vld [vmem:[%s0 + $0xc4] sm:$0xf]
  %v64 = vld [vmem:[%s0 + $0xc8] sm:$0xf]
  %v65 = vld [vmem:[%s0 + $0xcc] sm:$0xf]
  %v66 = vld [vmem:[%s0 + $0xd0] sm:$0xf]
  %v67 = vld [vmem:[%s0 + $0xd4] sm:$0xf]
  %v68 = vld [vmem:[%s0 + $0xd8] sm:$0xf]
  %v69 = vld [vmem:[%s0 + $0xdc] sm:$0xf]
  %v70 = vld [vmem:[%s0 + $0xe0] sm:$0xf]
  %v71 = vld [vmem:[%s0 + $0xe4] sm:$0xf]
  %v72 = vld [vmem:[%s0 + $0xe8] sm:$0xf]
  %v73 = vld [vmem:[%s0 + $0xec] sm:$0xf]
  %v74 = vld [vmem:[%s0 + $0xf0] sm:$0xf]
  %v75 = vld [vmem:[%s0 + $0xf4] sm:$0xf]
  %v76 = vld [vmem:[%s0 + $0xf8] sm:$0xf]
  %v77 = vld [vmem:[%s0 + $0xfc] sm:$0xf]
  %v78 = vunpack.c.l.bf16 %v14
  %v79 = vunpack.c.l.bf16 %v15
  %v80 = vunpack.c.l.bf16 %v16
  %v81 = vunpack.c.l.bf16 %v17
  %v82 = vunpack.c.l.bf16 %v18
  %v83 = vunpack.c.l.bf16 %v19
  %v84 = vunpack.c.l.bf16 %v20
  %v85 = vunpack.c.l.bf16 %v21
  %v86 = vunpack.c.l.bf16 %v22
  %v87 = vunpack.c.l.bf16 %v23
  %v88 = vunpack.c.l.bf16 %v24
  %v89 = vunpack.c.l.bf16 %v25
  %v90 = vunpack.c.l.bf16 %v26
  %v91 = vunpack.c.l.bf16 %v27
  %v92 = vunpack.c.l.bf16 %v28
  %v93 = vunpack.c.l.bf16 %v29
  %v94 = vunpack.c.l.bf16 %v30
  %v95 = vunpack.c.l.bf16 %v31
  %v96 = vunpack.c.l.bf16 %v32
  %v97 = vunpack.c.l.bf16 %v33
  %v98 = vunpack.c.l.bf16 %v34
  %v99 = vunpack.c.l.bf16 %v35
  %v100 = vunpack.c.l.bf16 %v36
  %v101 = vunpack.c.l.bf16 %v37
  %v102 = vunpack.c.l.bf16 %v38
  %v103 = vunpack.c.l.bf16 %v39
  %v104 = vunpack.c.l.bf16 %v40
  %v105 = vunpack.c.l.bf16 %v41
  %v106 = vunpack.c.l.bf16 %v42
  %v107 = vunpack.c.l.bf16 %v43
  %v108 = vunpack.c.l.bf16 %v44
  %v109 = vunpack.c.l.bf16 %v45
  %v110 = vunpack.c.l.bf16 %v46
  %v111 = vunpack.c.l.bf16 %v47
  %v112 = vunpack.c.l.bf16 %v48
  %v113 = vunpack.c.l.bf16 %v49
  %v114 = vunpack.c.l.bf16 %v50
  %v115 = vunpack.c.l.bf16 %v51
  %v116 = vunpack.c.l.bf16 %v52
  %v117 = vunpack.c.l.bf16 %v53
  %v118 = vunpack.c.l.bf16 %v54
  %v119 = vunpack.c.l.bf16 %v55
  %v120 = vunpack.c.l.bf16 %v56
  %v121 = vunpack.c.l.bf16 %v57
  %v122 = vunpack.c.l.bf16 %v58
  %v123 = vunpack.c.l.bf16 %v59
  %v124 = vunpack.c.l.bf16 %v60
  %v125 = vunpack.c.l.bf16 %v61
  %v126 = vunpack.c.l.bf16 %v62
  %v127 = vunpack.c.l.bf16 %v63
  %v128 = vunpack.c.l.bf16 %v64
  %v129 = vunpack.c.l.bf16 %v65
  %v130 = vunpack.c.l.bf16 %v66
  %v131 = vunpack.c.l.bf16 %v67
  %v132 = vunpack.c.l.bf16 %v68
  %v133 = vunpack.c.l.bf16 %v69
  %v134 = vunpack.c.l.bf16 %v70
  %v135 = vunpack.c.l.bf16 %v71
  %v136 = vunpack.c.l.bf16 %v72
  %v137 = vunpack.c.l.bf16 %v73
  %v138 = vunpack.c.l.bf16 %v74
  %v139 = vunpack.c.l.bf16 %v75
  %v140 = vunpack.c.l.bf16 %v76
  %v141 = vunpack.c.l.bf16 %v77
  %v142 = vld [vmem:[%s1] sm:$0x1]
  %v144 = vperm.slane %v142, 0
  %v146 = vmul.f32 %v78, %v144
  %v147 = vmul.f32 %v79, %v144
  %v148 = vmul.f32 %v80, %v144
  %v149 = vmul.f32 %v81, %v144
  %v150 = vmul.f32 %v82, %v144
  %v151 = vmul.f32 %v83, %v144
  %v152 = vmul.f32 %v84, %v144
  %v153 = vmul.f32 %v85, %v144
  %v154 = vmul.f32 %v86, %v144
  %v155 = vmul.f32 %v87, %v144
  %v156 = vmul.f32 %v88, %v144
  %v157 = vmul.f32 %v89, %v144
  %v158 = vmul.f32 %v90, %v144
  %v159 = vmul.f32 %v91, %v144
  %v160 = vmul.f32 %v92, %v144
  %v161 = vmul.f32 %v93, %v144
  %v162 = vmul.f32 %v94, %v144
  %v163 = vmul.f32 %v95, %v144
  %v164 = vmul.f32 %v96, %v144
  %v165 = vmul.f32 %v97, %v144
  %v166 = vmul.f32 %v98, %v144
  %v167 = vmul.f32 %v99, %v144
  %v168 = vmul.f32 %v100, %v144
  %v169 = vmul.f32 %v101, %v144
  %v170 = vmul.f32 %v102, %v144
  %v171 = vmul.f32 %v103, %v144
  %v172 = vmul.f32 %v104, %v144
  %v173 = vmul.f32 %v105, %v144
  %v174 = vmul.f32 %v106, %v144
  %v175 = vmul.f32 %v107, %v144
  %v176 = vmul.f32 %v108, %v144
  %v177 = vmul.f32 %v109, %v144
  %v178 = vmul.f32 %v110, %v144
  %v179 = vmul.f32 %v111, %v144
  %v180 = vmul.f32 %v112, %v144
  %v181 = vmul.f32 %v113, %v144
  %v182 = vmul.f32 %v114, %v144
  %v183 = vmul.f32 %v115, %v144
  %v184 = vmul.f32 %v116, %v144
  %v185 = vmul.f32 %v117, %v144
  %v186 = vmul.f32 %v118, %v144
  %v187 = vmul.f32 %v119, %v144
  %v188 = vmul.f32 %v120, %v144
  %v189 = vmul.f32 %v121, %v144
  %v190 = vmul.f32 %v122, %v144
  %v191 = vmul.f32 %v123, %v144
  %v192 = vmul.f32 %v124, %v144
  %v193 = vmul.f32 %v125, %v144
  %v194 = vmul.f32 %v126, %v144
  %v195 = vmul.f32 %v127, %v144
  %v196 = vmul.f32 %v128, %v144
  %v197 = vmul.f32 %v129, %v144
  %v198 = vmul.f32 %v130, %v144
  %v199 = vmul.f32 %v131, %v144
  %v200 = vmul.f32 %v132, %v144
  %v201 = vmul.f32 %v133, %v144
  %v202 = vmul.f32 %v134, %v144
  %v203 = vmul.f32 %v135, %v144
  %v204 = vmul.f32 %v136, %v144
  %v205 = vmul.f32 %v137, %v144
  %v206 = vmul.f32 %v138, %v144
  %v207 = vmul.f32 %v139, %v144
  %v208 = vmul.f32 %v140, %v144
  %v209 = vmul.f32 %v141, %v144
  %v210 = vld [vmem:[%s2] sm:$0x1]
  %v212 = vperm.slane %v210, 0
  %v214 = vadd.f32 %v146, %v212
  %v215 = vadd.f32 %v147, %v212
  %v216 = vadd.f32 %v148, %v212
  %v217 = vadd.f32 %v149, %v212
  %v218 = vadd.f32 %v150, %v212
  %v219 = vadd.f32 %v151, %v212
  %v220 = vadd.f32 %v152, %v212
  %v221 = vadd.f32 %v153, %v212
  %v222 = vadd.f32 %v154, %v212
  %v223 = vadd.f32 %v155, %v212
  %v224 = vadd.f32 %v156, %v212
  %v225 = vadd.f32 %v157, %v212
  %v226 = vadd.f32 %v158, %v212
  %v227 = vadd.f32 %v159, %v212
  %v228 = vadd.f32 %v160, %v212
  %v229 = vadd.f32 %v161, %v212
  %v230 = vadd.f32 %v162, %v212
  %v231 = vadd.f32 %v163, %v212
  %v232 = vadd.f32 %v164, %v212
  %v233 = vadd.f32 %v165, %v212
  %v234 = vadd.f32 %v166, %v212
  %v235 = vadd.f32 %v167, %v212
  %v236 = vadd.f32 %v168, %v212
  %v237 = vadd.f32 %v169, %v212
  %v238 = vadd.f32 %v170, %v212
  %v239 = vadd.f32 %v171, %v212
  %v240 = vadd.f32 %v172, %v212
  %v241 = vadd.f32 %v173, %v212
  %v242 = vadd.f32 %v174, %v212
  %v243 = vadd.f32 %v175, %v212
  %v244 = vadd.f32 %v176, %v212
  %v245 = vadd.f32 %v177, %v212
  %v246 = vadd.f32 %v178, %v212
  %v247 = vadd.f32 %v179, %v212
  %v248 = vadd.f32 %v180, %v212
  %v249 = vadd.f32 %v181, %v212
  %v250 = vadd.f32 %v182, %v212
  %v251 = vadd.f32 %v183, %v212
  %v252 = vadd.f32 %v184, %v212
  %v253 = vadd.f32 %v185, %v212
  %v254 = vadd.f32 %v186, %v212
  %v255 = vadd.f32 %v187, %v212
  %v256 = vadd.f32 %v188, %v212
  %v257 = vadd.f32 %v189, %v212
  %v258 = vadd.f32 %v190, %v212
  %v259 = vadd.f32 %v191, %v212
  %v260 = vadd.f32 %v192, %v212
  %v261 = vadd.f32 %v193, %v212
  %v262 = vadd.f32 %v194, %v212
  %v263 = vadd.f32 %v195, %v212
  %v264 = vadd.f32 %v196, %v212
  %v265 = vadd.f32 %v197, %v212
  %v266 = vadd.f32 %v198, %v212
  %v267 = vadd.f32 %v199, %v212
  %v268 = vadd.f32 %v200, %v212
  %v269 = vadd.f32 %v201, %v212
  %v270 = vadd.f32 %v202, %v212
  %v271 = vadd.f32 %v203, %v212
  %v272 = vadd.f32 %v204, %v212
  %v273 = vadd.f32 %v205, %v212
  %v274 = vadd.f32 %v206, %v212
  %v275 = vadd.f32 %v207, %v212
  %v276 = vadd.f32 %v208, %v212
  %v277 = vadd.f32 %v209, %v212
  %v278 = vmax.f32 %v214, 0.0
  %v279 = vmax.f32 %v215, 0.0
  %v280 = vmax.f32 %v216, 0.0
  %v281 = vmax.f32 %v217, 0.0
  %v282 = vmax.f32 %v218, 0.0
  %v283 = vmax.f32 %v219, 0.0
  %v284 = vmax.f32 %v220, 0.0
  %v285 = vmax.f32 %v221, 0.0
  %v286 = vmax.f32 %v222, 0.0
  %v287 = vmax.f32 %v223, 0.0
  %v288 = vmax.f32 %v224, 0.0
  %v289 = vmax.f32 %v225, 0.0
  %v290 = vmax.f32 %v226, 0.0
  %v291 = vmax.f32 %v227, 0.0
  %v292 = vmax.f32 %v228, 0.0
  %v293 = vmax.f32 %v229, 0.0
  %v294 = vmax.f32 %v230, 0.0
  %v295 = vmax.f32 %v231, 0.0
  %v296 = vmax.f32 %v232, 0.0
  %v297 = vmax.f32 %v233, 0.0
  %v298 = vmax.f32 %v234, 0.0
  %v299 = vmax.f32 %v235, 0.0
  %v300 = vmax.f32 %v236, 0.0
  %v301 = vmax.f32 %v237, 0.0
  %v302 = vmax.f32 %v238, 0.0
  %v303 = vmax.f32 %v239, 0.0
  %v304 = vmax.f32 %v240, 0.0
  %v305 = vmax.f32 %v241, 0.0
  %v306 = vmax.f32 %v242, 0.0
  %v307 = vmax.f32 %v243, 0.0
  %v308 = vmax.f32 %v244, 0.0
  %v309 = vmax.f32 %v245, 0.0
  %v310 = vmax.f32 %v246, 0.0
  %v311 = vmax.f32 %v247, 0.0
  %v312 = vmax.f32 %v248, 0.0
  %v313 = vmax.f32 %v249, 0.0
  %v314 = vmax.f32 %v250, 0.0
  %v315 = vmax.f32 %v251, 0.0
  %v316 = vmax.f32 %v252, 0.0
  %v317 = vmax.f32 %v253, 0.0
  %v318 = vmax.f32 %v254, 0.0
  %v319 = vmax.f32 %v255, 0.0
  %v320 = vmax.f32 %v256, 0.0
  %v321 = vmax.f32 %v257, 0.0
  %v322 = vmax.f32 %v258, 0.0
  %v323 = vmax.f32 %v259, 0.0
  %v324 = vmax.f32 %v260, 0.0
  %v325 = vmax.f32 %v261, 0.0
  %v326 = vmax.f32 %v262, 0.0
  %v327 = vmax.f32 %v263, 0.0
  %v328 = vmax.f32 %v264, 0.0
  %v329 = vmax.f32 %v265, 0.0
  %v330 = vmax.f32 %v266, 0.0
  %v331 = vmax.f32 %v267, 0.0
  %v332 = vmax.f32 %v268, 0.0
  %v333 = vmax.f32 %v269, 0.0
  %v334 = vmax.f32 %v270, 0.0
  %v335 = vmax.f32 %v271, 0.0
  %v336 = vmax.f32 %v272, 0.0
  %v337 = vmax.f32 %v273, 0.0
  %v338 = vmax.f32 %v274, 0.0
  %v339 = vmax.f32 %v275, 0.0
  %v340 = vmax.f32 %v276, 0.0
  %v341 = vmax.f32 %v277, 0.0
  %v342 = vpack.c.bf16 %v278, %v278
  %v343 = vpack.c.bf16 %v279, %v279
  %v344 = vpack.c.bf16 %v280, %v280
  %v345 = vpack.c.bf16 %v281, %v281
  %v346 = vpack.c.bf16 %v282, %v282
  %v347 = vpack.c.bf16 %v283, %v283
  %v348 = vpack.c.bf16 %v284, %v284
  %v349 = vpack.c.bf16 %v285, %v285
  %v350 = vpack.c.bf16 %v286, %v286
  %v351 = vpack.c.bf16 %v287, %v287
  %v352 = vpack.c.bf16 %v288, %v288
  %v353 = vpack.c.bf16 %v289, %v289
  %v354 = vpack.c.bf16 %v290, %v290
  %v355 = vpack.c.bf16 %v291, %v291
  %v356 = vpack.c.bf16 %v292, %v292
  %v357 = vpack.c.bf16 %v293, %v293
  %v358 = vpack.c.bf16 %v294, %v294
  %v359 = vpack.c.bf16 %v295, %v295
  %v360 = vpack.c.bf16 %v296, %v296
  %v361 = vpack.c.bf16 %v297, %v297
  %v362 = vpack.c.bf16 %v298, %v298
  %v363 = vpack.c.bf16 %v299, %v299
  %v364 = vpack.c.bf16 %v300, %v300
  %v365 = vpack.c.bf16 %v301, %v301
  %v366 = vpack.c.bf16 %v302, %v302
  %v367 = vpack.c.bf16 %v303, %v303
  %v368 = vpack.c.bf16 %v304, %v304
  %v369 = vpack.c.bf16 %v305, %v305
  %v370 = vpack.c.bf16 %v306, %v306
  %v371 = vpack.c.bf16 %v307, %v307
  %v372 = vpack.c.bf16 %v308, %v308
  %v373 = vpack.c.bf16 %v309, %v309
  %v374 = vpack.c.bf16 %v310, %v310
  %v375 = vpack.c.bf16 %v311, %v311
  %v376 = vpack.c.bf16 %v312, %v312
  %v377 = vpack.c.bf16 %v313, %v313
  %v378 = vpack.c.bf16 %v314, %v314
  %v379 = vpack.c.bf16 %v315, %v315
  %v380 = vpack.c.bf16 %v316, %v316
  %v381 = vpack.c.bf16 %v317, %v317
  %v382 = vpack.c.bf16 %v318, %v318
  %v383 = vpack.c.bf16 %v319, %v319
  %v384 = vpack.c.bf16 %v320, %v320
  %v385 = vpack.c.bf16 %v321, %v321
  %v386 = vpack.c.bf16 %v322, %v322
  %v387 = vpack.c.bf16 %v323, %v323
  %v388 = vpack.c.bf16 %v324, %v324
  %v389 = vpack.c.bf16 %v325, %v325
  %v390 = vpack.c.bf16 %v326, %v326
  %v391 = vpack.c.bf16 %v327, %v327
  %v392 = vpack.c.bf16 %v328, %v328
  %v393 = vpack.c.bf16 %v329, %v329
  %v394 = vpack.c.bf16 %v330, %v330
  %v395 = vpack.c.bf16 %v331, %v331
  %v396 = vpack.c.bf16 %v332, %v332
  %v397 = vpack.c.bf16 %v333, %v333
  %v398 = vpack.c.bf16 %v334, %v334
  %v399 = vpack.c.bf16 %v335, %v335
  %v400 = vpack.c.bf16 %v336, %v336
  %v401 = vpack.c.bf16 %v337, %v337
  %v402 = vpack.c.bf16 %v338, %v338
  %v403 = vpack.c.bf16 %v339, %v339
  %v404 = vpack.c.bf16 %v340, %v340
  %v405 = vpack.c.bf16 %v341, %v341
  %406 = vst [vmem:[%s3] sm:$0xf] %v342
  %407 = vst [vmem:[%s3 + $0x4] sm:$0xf] %v343
  %408 = vst [vmem:[%s3 + $0x8] sm:$0xf] %v344
  %409 = vst [vmem:[%s3 + $0xc] sm:$0xf] %v345
  %410 = vst [vmem:[%s3 + $0x10] sm:$0xf] %v346
  %411 = vst [vmem:[%s3 + $0x14] sm:$0xf] %v347
  %412 = vst [vmem:[%s3 + $0x18] sm:$0xf] %v348
  %413 = vst [vmem:[%s3 + $0x1c] sm:$0xf] %v349
  %414 = vst [vmem:[%s3 + $0x20] sm:$0xf] %v350
  %415 = vst [vmem:[%s3 + $0x24] sm:$0xf] %v351
  %416 = vst [vmem:[%s3 + $0x28] sm:$0xf] %v352
  %417 = vst [vmem:[%s3 + $0x2c] sm:$0xf] %v353
  %418 = vst [vmem:[%s3 + $0x30] sm:$0xf] %v354
  %419 = vst [vmem:[%s3 + $0x34] sm:$0xf] %v355
  %420 = vst [vmem:[%s3 + $0x38] sm:$0xf] %v356
  %421 = vst [vmem:[%s3 + $0x3c] sm:$0xf] %v357
  %422 = vst [vmem:[%s3 + $0x40] sm:$0xf] %v358
  %423 = vst [vmem:[%s3 + $0x44] sm:$0xf] %v359
  %424 = vst [vmem:[%s3 + $0x48] sm:$0xf] %v360
  %425 = vst [vmem:[%s3 + $0x4c] sm:$0xf] %v361
  %426 = vst [vmem:[%s3 + $0x50] sm:$0xf] %v362
  %427 = vst [vmem:[%s3 + $0x54] sm:$0xf] %v363
  %428 = vst [vmem:[%s3 + $0x58] sm:$0xf] %v364
  %429 = vst [vmem:[%s3 + $0x5c] sm:$0xf] %v365
  %430 = vst [vmem:[%s3 + $0x60] sm:$0xf] %v366
  %431 = vst [vmem:[%s3 + $0x64] sm:$0xf] %v367
  %432 = vst [vmem:[%s3 + $0x68] sm:$0xf] %v368
  %433 = vst [vmem:[%s3 + $0x6c] sm:$0xf] %v369
  %434 = vst [vmem:[%s3 + $0x70] sm:$0xf] %v370
  %435 = vst [vmem:[%s3 + $0x74] sm:$0xf] %v371
  %436 = vst [vmem:[%s3 + $0x78] sm:$0xf] %v372
  %437 = vst [vmem:[%s3 + $0x7c] sm:$0xf] %v373
  %438 = vst [vmem:[%s3 + $0x80] sm:$0xf] %v374
  %439 = vst [vmem:[%s3 + $0x84] sm:$0xf] %v375
  %440 = vst [vmem:[%s3 + $0x88] sm:$0xf] %v376
  %441 = vst [vmem:[%s3 + $0x8c] sm:$0xf] %v377
  %442 = vst [vmem:[%s3 + $0x90] sm:$0xf] %v378
  %443 = vst [vmem:[%s3 + $0x94] sm:$0xf] %v379
  %444 = vst [vmem:[%s3 + $0x98] sm:$0xf] %v380
  %445 = vst [vmem:[%s3 + $0x9c] sm:$0xf] %v381
  %446 = vst [vmem:[%s3 + $0xa0] sm:$0xf] %v382
  %447 = vst [vmem:[%s3 + $0xa4] sm:$0xf] %v383
  %448 = vst [vmem:[%s3 + $0xa8] sm:$0xf] %v384
  %449 = vst [vmem:[%s3 + $0xac] sm:$0xf] %v385
  %450 = vst [vmem:[%s3 + $0xb0] sm:$0xf] %v386
  %451 = vst [vmem:[%s3 + $0xb4] sm:$0xf] %v387
  %452 = vst [vmem:[%s3 + $0xb8] sm:$0xf] %v388
  %453 = vst [vmem:[%s3 + $0xbc] sm:$0xf] %v389
  %454 = vst [vmem:[%s3 + $0xc0] sm:$0xf] %v390
  %455 = vst [vmem:[%s3 + $0xc4] sm:$0xf] %v391
  %456 = vst [vmem:[%s3 + $0xc8] sm:$0xf] %v392
  %457 = vst [vmem:[%s3 + $0xcc] sm:$0xf] %v393
  %458 = vst [vmem:[%s3 + $0xd0] sm:$0xf] %v394
  %459 = vst [vmem:[%s3 + $0xd4] sm:$0xf] %v395
  %460 = vst [vmem:[%s3 + $0xd8] sm:$0xf] %v396
  %461 = vst [vmem:[%s3 + $0xdc] sm:$0xf] %v397
  %462 = vst [vmem:[%s3 + $0xe0] sm:$0xf] %v398
  %463 = vst [vmem:[%s3 + $0xe4] sm:$0xf] %v399
  %464 = vst [vmem:[%s3 + $0xe8] sm:$0xf] %v400
  %465 = vst [vmem:[%s3 + $0xec] sm:$0xf] %v401
  %466 = vst [vmem:[%s3 + $0xf0] sm:$0xf] %v402
  %467 = vst [vmem:[%s3 + $0xf4] sm:$0xf] %v403
  %468 = vst [vmem:[%s3 + $0xf8] sm:$0xf] %v404
  %469 = vst [vmem:[%s3 + $0xfc] sm:$0xf] %v405
  // Predicated region
  $region14: #{conv_block_forward.5} parent=0 // pred_check
    _
  $region15: #{conv_block_forward.5} parent=0 // pred_check_branch
    %471 = sbr.rel (0) target = $region17
  $region16: #{conv_block_forward.5} parent=0 // pred_region
    _
  $region17: #{conv_block_forward.5} parent=0 // pred_fallthru
    _
  // Predicated region
  $region18: #{conv_block_forward.5} parent=0 // pred_check
    _
  $region19: #{conv_block_forward.5} parent=0 // pred_check_branch
    %473 = sbr.rel (0) target = $region21
  $region20: #{conv_block_forward.5} parent=0 // pred_region
    _
  $region21: #{conv_block_forward.5} parent=0 // pred_fallthru
    _

// kernel: conv_block_forward.4
$region0: #{conv_block_forward.4}
  #allocation0 [shape = 'u32[]', space=smem, size = 0x4, offset = 0x4, fixed_abs, tag = 'smem constant byte address 0x4 - core index']
  #allocation1 [shape = 'u32[72,128]{1,0:T(1,128)}', space=vmem, size = 0x9000, scoped, tag = 'internal scratch']
  %s0 = inlined_call_operand.vmem [shape: bf16[2,18,18,4], index: 0, kind: input, shape index: {}]
  %s1 = inlined_call_operand.vmem [shape: bf16[9,4,128], index: 1, kind: input, shape index: {}]
  %s2 = inlined_call_operand.vmem [shape: bf16[2,16,16,128], index: 2, kind: output, shape index: {0}]
  %s3 = inlined_call_operand.vmem [shape: f32[2,2,128], index: 3, kind: output, shape index: {1}]
  %4 = xla_tuple %s2, %s3
  %s5 = sld [smem:[#allocation0]]
  $region49: #{conv_block_forward.4} parent=0
    _
  %s7 = ssub.s32 1, %s5
  %s8 = scalar_select 0, %s7, %s5
  loop: start=0, step=1, limit=4
  $region2: #{conv_block_forward.4} parent=0 // loop_pre_header
    _
  $region3: #{conv_block_forward.4} parent=0 // loop_header
    %s10 = sphi 0, %s14
    %p11 = scmp.ge.s32.totalorder %s10, 4
    %s20 = sphi 0, %s22
    %s23 = sphi 0, %s20
    %s24 = sphi 0, %s23
    %s40 = sphi 0, %s24
    %s44 = sphi 0, %s44
    %s46 = sphi 0, %s44
    %s47 = sphi 0, %s46
    %s61 = sphi 0, %s47
    %s67 = sphi 0, %s69
    %s70 = sphi 0, %s67
    %s71 = sphi 0, %s70
    %s87 = sphi 0, %s71
    %s93 = sphi 0, %s95
    %s96 = sphi 0, %s93
    %s97 = sphi 0, %s96
    %s113 = sphi 0, %s97
  $region4: #{conv_block_forward.4} parent=0 // loop_header_branch
    %13 = sbr.rel (%p11) target = $region8
  $region5: #{conv_block_forward.4} parent=0 // loop_body
    %s15 = ssub.s32 %s10, 1
    %s16 = ssub.s32 %s10, 2
    %s17 = sadd.s32 %s10, 1
    %s18 = ssub.s32 %s10, %s17
    %p19 = scmp.eq.s32.totalorder %s18, 0
    %s21 = sadd.s32 %s20, 1
    %s22 = scalar_select %p19, %s20, %s21
    %p25 = pneg %p19
    %p26 = scmp.eq.s32.totalorder %s10, 1
    %p27 = por %p25, %p26
    %p28 = scmp.ne.s32.totalorder %s20, %s23
    %p29 = scmp.eq.s32.totalorder %s10, 0
    %p30 = por %p28, %p29
    %p31 = scmp.ne.s32.totalorder %s20, %s23
    %p32 = scmp.eq.s32.totalorder %s15, 1
    %p33 = por %p31, %p32
    %p34 = scmp.ne.s32.totalorder %s23, %s24
    %p35 = scmp.eq.s32.totalorder %s15, 0
    %p36 = por %p34, %p35
    %p37 = scmp.ne.s32.totalorder %s23, %s24
    %p38 = scmp.eq.s32.totalorder %s16, 1
    %p39 = por %p37, %p38
    %p41 = scmp.ne.s32.totalorder %s24, %s40
    %p42 = scmp.eq.s32.totalorder %s16, 0
    %p43 = por %p41, %p42
    %s45 = sadd.s32 %s44, 1
    %p48 = scmp.eq.s32.totalorder %s10, 1
    %p49 = scmp.ne.s32.totalorder %s44, %s46
    %p50 = scmp.eq.s32.totalorder %s10, 0
    %p51 = por %p49, %p50
    %p52 = scmp.ne.s32.totalorder %s44, %s46
    %p53 = scmp.eq.s32.totalorder %s15, 1
    %p54 = por %p52, %p53
    %p55 = scmp.ne.s32.totalorder %s46, %s47
    %p56 = scmp.eq.s32.totalorder %s15, 0
    %p57 = por %p55, %p56
    %p58 = scmp.ne.s32.totalorder %s46, %s47
    %p59 = scmp.eq.s32.totalorder %s16, 1
    %p60 = por %p58, %p59
    %p62 = scmp.ne.s32.totalorder %s47, %s61
    %p63 = scmp.eq.s32.totalorder %s16, 0
    %p64 = por %p62, %p63
    %s65 = ssub.s32 %s10, %s17
    %p66 = scmp.eq.s32.totalorder %s65, 0
    %s68 = sadd.s32 %s67, 1
    %s69 = scalar_select %p66, %s67, %s68
    %p72 = pneg %p66
    %p73 = scmp.eq.s32.totalorder %s10, 1
    %p74 = por %p72, %p73
    %p75 = scmp.ne.s32.totalorder %s67, %s70
    %p76 = scmp.eq.s32.totalorder %s10, 0
    %p77 = por %p75, %p76
    %p78 = scmp.ne.s32.totalorder %s67, %s70
    %p79 = scmp.eq.s32.totalorder %s15, 1
    %p80 = por %p78, %p79
    %p81 = scmp.ne.s32.totalorder %s70, %s71
    %p82 = scmp.eq.s32.totalorder %s15, 0
    %p83 = por %p81, %p82
    %p84 = scmp.ne.s32.totalorder %s70, %s71
    %p85 = scmp.eq.s32.totalorder %s16, 1
    %p86 = por %p84, %p85
    %p88 = scmp.ne.s32.totalorder %s71, %s87
    %p89 = scmp.eq.s32.totalorder %s16, 0
    %p90 = por %p88, %p89
    %s91 = ssub.s32 %s10, %s17
    %p92 = scmp.eq.s32.totalorder %s91, 0
    %s94 = sadd.s32 %s93, 1
    %s95 = scalar_select %p92, %s93, %s94
    %p98 = pneg %p92
    %p99 = scmp.eq.s32.totalorder %s10, 1
    %p100 = por %p98, %p99
    %p101 = scmp.ne.s32.totalorder %s93, %s96
    %p102 = scmp.eq.s32.totalorder %s10, 0
    %p103 = por %p101, %p102
    %p104 = scmp.ne.s32.totalorder %s93, %s96
    %p105 = scmp.eq.s32.totalorder %s15, 1
    %p106 = por %p104, %p105
    %p107 = scmp.ne.s32.totalorder %s96, %s97
    %p108 = scmp.eq.s32.totalorder %s15, 0
    %p109 = por %p107, %p108
    %p110 = scmp.ne.s32.totalorder %s96, %s97
    %p111 = scmp.eq.s32.totalorder %s16, 1
    %p112 = por %p110, %p111
    %p114 = scmp.ne.s32.totalorder %s97, %s113
    %p115 = scmp.eq.s32.totalorder %s16, 0
    %p116 = por %p114, %p115
    %p117 = scmp.le.s32.totalorder 1, %s10
    %p118 = scmp.lt.s32.totalorder %s10, 3
    %p119 = pnand %p117, %p118
    %p120 = pneg %p119
    // Predicated region
    $region9: #{conv_block_forward.4} parent=5 // pred_check
      _
    $region10: #{conv_block_forward.4} parent=5 // pred_check_branch
      %122 = sbr.rel (%p119) target = $region12
    $region11: #{conv_block_forward.4} parent=5 // pred_region
      %s123 = ssub.s32 %s10, 1
      // Predicated region
      $region13: #{conv_block_forward.4} parent=11 // pred_check
        %p124 = pneg %p57
      $region14: #{conv_block_forward.4} parent=11 // pred_check_branch
        %126 = sbr.rel (%p124) target = $region16
      $region15: #{conv_block_forward.4} parent=11 // pred_region
        _
      $region16: #{conv_block_forward.4} parent=11 // pred_fallthru
        _
    $region12: #{conv_block_forward.4} parent=5 // pred_fallthru
      _
    %p127 = scmp.lt.s32.totalorder %s10, 2
    // Predicated region
    $region17: #{conv_block_forward.4} parent=5 // pred_check
      %p128 = pneg %p127
    $region18: #{conv_block_forward.4} parent=5 // pred_check_branch
      %130 = sbr.rel (%p128) target = $region20
    $region19: #{conv_block_forward.4} parent=5 // pred_region
      // Predicated region
      $region21: #{conv_block_forward.4} parent=19 // pred_check
        %p131 = pneg %p30
      $region22: #{conv_block_forward.4} parent=19 // pred_check_branch
        %133 = sbr.rel (%p131) target = $region24
      $region23: #{conv_block_forward.4} parent=19 // pred_region
        %p134 = scmp.lt.s32.totalorder %s10, 1
        %s135 = scalar_select %p134, %s10, 1
        %s136 = smul.addr %s135, 54
        %s137 = smul.addr %s136, 4
        %s138 = scalar_lea.vmem %s0, %s137
      $region24: #{conv_block_forward.4} parent=19 // pred_fallthru
        _
    $region20: #{conv_block_forward.4} parent=5 // pred_fallthru
      _
    %p139 = scmp.le.s32.totalorder 1, %s10
    %p140 = scmp.lt.s32.totalorder %s10, 3
    %p141 = pnand %p139, %p140
    %p142 = pneg %p141
    // Predicated region
    $region25: #{conv_block_forward.4} parent=5 // pred_check
      _
    $region26: #{conv_block_forward.4} parent=5 // pred_check_branch
      %144 = sbr.rel (%p141) target = $region28
    $region27: #{conv_block_forward.4} parent=5 // pred_region
      %s145 = ssub.s32 %s10, 1
      %p146 = scmp.lt.s32.totalorder %s15, 1
      %s147 = scalar_select %p146, %s15, 1
      %s148 = smul.addr %s147, 54
      %s149 = smul.addr %s148, 4
      %s150 = scalar_lea.vmem %s0, %s149
      %p151 = pneg %p36
      %p152 = pneg %p33
      %p153 = pneg %p57
      %p154 = pneg %p54
      %p155 = pneg %p83
      %p156 = pneg %p80
      %p157 = scmp.lt.s32.totalorder %s15, 1
      %s158 = scalar_select %p157, %s15, 1
      %s159 = smul.addr %s158, 32
      %s160 = smul.addr %s159, 4
      %s161 = scalar_lea.vmem %s2, %s160
      %p162 = pneg %p109
      %p163 = pneg %p106
      %p164 = scmp.lt.s32.totalorder %s15, 1
      %s165 = scalar_select %p164, %s15, 1
      %s166 = smul.addr %s165, 2
      %s167 = scalar_lea.vmem %s3, %s166
      %p168 = scmp.lt.s32.totalorder %s15, 1
      %s169 = scalar_select %p168, %s15, 1
      %s170 = smul.addr %s169, 54
      %s171 = smul.addr %s170, 4
      %s172 = scalar_lea.vmem %s0, %s171
      %p173 = scmp.lt.s32.totalorder %s15, 1
      %s174 = scalar_select %p173, %s15, 1
      %s175 = smul.addr %s174, 32
      %s176 = smul.addr %s175, 4
      %s177 = scalar_lea.vmem %s2, %s176
      %p178 = scmp.lt.s32.totalorder %s15, 1
      %s179 = scalar_select %p178, %s15, 1
      %s180 = smul.addr %s179, 2
      %s181 = scalar_lea.vmem %s3, %s180
      %v183 = vld [vmem:[%s172] sm:$0xf]
      %v184 = vld [vmem:[%s172 + $0x4] sm:$0xf]
      %v185 = vld [vmem:[%s172 + $0x8] sm:$0x1]
      %v186 = vld [vmem:[%s172 + $0xc] sm:$0xf]
      %v187 = vld [vmem:[%s172 + $0x10] sm:$0xf]
      %v188 = vld [vmem:[%s172 + $0x14] sm:$0x1]
      %v189 = vld [vmem:[%s172 + $0x18] sm:$0xf]
      %v190 = vld [vmem:[%s172 + $0x1c] sm:$0xf]
      %v191 = vld [vmem:[%s172 + $0x20] sm:$0x1]
      %v192 = vld [vmem:[%s172 + $0x24] sm:$0xf]
      %v193 = vld [vmem:[%s172 + $0x28] sm:$0xf]
      %v194 = vld [vmem:[%s172 + $0x2c] sm:$0x1]
      %v195 = vld [vmem:[%s172 + $0x30] sm:$0xf]
      %v196 = vld [vmem:[%s172 + $0x34] sm:$0xf]
      %v197 = vld [vmem:[%s172 + $0x38] sm:$0x1]
      %v198 = vld [vmem:[%s172 + $0x3c] sm:$0xf]
      %v199 = vld [vmem:[%s172 + $0x40] sm:$0xf]
      %v200 = vld [vmem:[%s172 + $0x44] sm:$0x1]
      %v201 = vld [vmem:[%s172 + $0x48] sm:$0xf]
      %v202 = vld [vmem:[%s172 + $0x4c] sm:$0xf]
      %v203 = vld [vmem:[%s172 + $0x50] sm:$0x1]
      %v204 = vld [vmem:[%s172 + $0x54] sm:$0xf]
      %v205 = vld [vmem:[%s172 + $0x58] sm:$0xf]
      %v206 = vld [vmem:[%s172 + $0x5c] sm:$0x1]
      %v207 = vld [vmem:[%s172 + $0x60] sm:$0xf]
      %v208 = vld [vmem:[%s172 + $0x64] sm:$0xf]
      %v209 = vld [vmem:[%s172 + $0x68] sm:$0x1]
      %v210 = vld [vmem:[%s172 + $0x6c] sm:$0xf]
      %v211 = vld [vmem:[%s172 + $0x70] sm:$0xf]
      %v212 = vld [vmem:[%s172 + $0x74] sm:$0x1]
      %v213 = vld [vmem:[%s172 + $0x78] sm:$0xf]
      %v214 = vld [vmem:[%s172 + $0x7c] sm:$0xf]
      %v215 = vld [vmem:[%s172 + $0x80] sm:$0x1]
      %v216 = vld [vmem:[%s172 + $0x84] sm:$0xf]
      %v217 = vld [vmem:[%s172 + $0x88] sm:$0xf]
      %v218 = vld [vmem:[%s172 + $0x8c] sm:$0x1]
      %v219 = vld [vmem:[%s172 + $0x90] sm:$0xf]
      %v220 = vld [vmem:[%s172 + $0x94] sm:$0xf]
      %v221 = vld [vmem:[%s172 + $0x98] sm:$0x1]
      %v222 = vld [vmem:[%s172 + $0x9c] sm:$0xf]
      %v223 = vld [vmem:[%s172 + $0xa0] sm:$0xf]
      %v224 = vld [vmem:[%s172 + $0xa4] sm:$0x1]
      %v225 = vld [vmem:[%s172 + $0xa8] sm:$0xf]
      %v226 = vld [vmem:[%s172 + $0xac] sm:$0xf]
      %v227 = vld [vmem:[%s172 + $0xb0] sm:$0x1]
      %v228 = vld [vmem:[%s172 + $0xb4] sm:$0xf]
      %v229 = vld [vmem:[%s172 + $0xb8] sm:$0xf]
      %v230 = vld [vmem:[%s172 + $0xbc] sm:$0x1]
      %v231 = vld [vmem:[%s172 + $0xc0] sm:$0xf]
      %v232 = vld [vmem:[%s172 + $0xc4] sm:$0xf]
      %v233 = vld [vmem:[%s172 + $0xc8] sm:$0x1]
      %v234 = vld [vmem:[%s172 + $0xcc] sm:$0xf]
      %v235 = vld [vmem:[%s172 + $0xd0] sm:$0xf]
      %v236 = vld [vmem:[%s172 + $0xd4] sm:$0x1]
      %v237 = vunpack.c.l.bf16 %v183
      %v238 = vunpack.c.l.bf16 %v184
      %v239 = vunpack.c.l.bf16 %v185
      %v240 = vunpack.c.l.bf16 %v186
      %v241 = vunpack.c.l.bf16 %v187
      %v242 = vunpack.c.l.bf16 %v188
      %v243 = vunpack.c.l.bf16 %v189
      %v244 = vunpack.c.l.bf16 %v190
      %v245 = vunpack.c.l.bf16 %v191
      %v246 = vunpack.c.l.bf16 %v192
      %v247 = vunpack.c.l.bf16 %v193
      %v248 = vunpack.c.l.bf16 %v194
      %v249 = vunpack.c.l.bf16 %v195
      %v250 = vunpack.c.l.bf16 %v196
      %v251 = vunpack.c.l.bf16 %v197
      %v252 = vunpack.c.l.bf16 %v198
      %v253 = vunpack.c.l.bf16 %v199
      %v254 = vunpack.c.l.bf16 %v200
      %v255 = vunpack.c.l.bf16 %v201
      %v256 = vunpack.c.l.bf16 %v202
      %v257 = vunpack.c.l.bf16 %v203
      %v258 = vunpack.c.l.bf16 %v204
      %v259 = vunpack.c.l.bf16 %v205
      %v260 = vunpack.c.l.bf16 %v206
      %v261 = vunpack.c.l.bf16 %v207
      %v262 = vunpack.c.l.bf16 %v208
      %v263 = vunpack.c.l.bf16 %v209
      %v264 = vunpack.c.l.bf16 %v210
      %v265 = vunpack.c.l.bf16 %v211
      %v266 = vunpack.c.l.bf16 %v212
      %v267 = vunpack.c.l.bf16 %v213
      %v268 = vunpack.c.l.bf16 %v214
      %v269 = vunpack.c.l.bf16 %v215
      %v270 = vunpack.c.l.bf16 %v216
      %v271 = vunpack.c.l.bf16 %v217
      %v272 = vunpack.c.l.bf16 %v218
      %v273 = vunpack.c.l.bf16 %v219
      %v274 = vunpack.c.l.bf16 %v220
      %v275 = vunpack.c.l.bf16 %v221
      %v276 = vunpack.c.l.bf16 %v222
      %v277 = vunpack.c.l.bf16 %v223
      %v278 = vunpack.c.l.bf16 %v224
      %v279 = vunpack.c.l.bf16 %v225
      %v280 = vunpack.c.l.bf16 %v226
      %v281 = vunpack.c.l.bf16 %v227
      %v282 = vunpack.c.l.bf16 %v228
      %v283 = vunpack.c.l.bf16 %v229
      %v284 = vunpack.c.l.bf16 %v230
      %v285 = vunpack.c.l.bf16 %v231
      %v286 = vunpack.c.l.bf16 %v232
      %v287 = vunpack.c.l.bf16 %v233
      %v288 = vunpack.c.l.bf16 %v234
      %v289 = vunpack.c.l.bf16 %v235
      %v290 = vunpack.c.l.bf16 %v236
      %v291 = vpack.c.bf16 %v238, %v237
      %v292 = vpack.c.bf16 %v241, %v240
      %v293 = vpack.c.bf16 %v244, %v243
      %v294 = vpack.c.bf16 %v247, %v246
      %v295 = vpack.c.bf16 %v250, %v249
      %v296 = vpack.c.bf16 %v253, %v252
      %v297 = vpack.c.bf16 %v256, %v255
      %v298 = vpack.c.bf16 %v259, %v258
      %v299 = vpack.c.bf16 %v262, %v261
      %v300 = vpack.c.bf16 %v265, %v264
      %v301 = vpack.c.bf16 %v268, %v267
      %v302 = vpack.c.bf16 %v271, %v270
      %v303 = vpack.c.bf16 %v274, %v273
      %v304 = vpack.c.bf16 %v277, %v276
      %v305 = vpack.c.bf16 %v280, %v279
      %v306 = vpack.c.bf16 %v283, %v282
      %v307 = vld [vmem:[%s1] sm:$0x3]
      %vm356 = vcmask 1046528
      %v357 = vrot.slane %v237, 1
      %v358 = vrot.slane %v238, 1
      %v359 = vsel %vm356, %v357, %v358
      %v360 = vrot.slane %v239, 1
      %v361 = vsel %vm356, %v358, %v360
      %v362 = vrot.slane %v240, 1
      %v363 = vrot.slane %v241, 1
      %v364 = vsel %vm356, %v362, %v363
      %v365 = vrot.slane %v242, 1
      %v366 = vsel %vm356, %v363, %v365
      %v367 = vrot.slane %v243, 1
      %v368 = vrot.slane %v244, 1
      %v369 = vsel %vm356, %v367, %v368
      %v370 = vrot.slane %v245, 1
      %v371 = vsel %vm356, %v368, %v370
      %v372 = vrot.slane %v246, 1
      %v373 = vrot.slane %v247, 1
      %v374 = vsel %vm356, %v372, %v373
      %v375 = vrot.slane %v248, 1
      %v376 = vsel %vm356, %v373, %v375
      %v377 = vrot.slane %v249, 1
      %v378 = vrot.slane %v250, 1
      %v379 = vsel %vm356, %v377, %v378
      %v380 = vrot.slane %v251, 1
      %v381 = vsel %vm356, %v378, %v380
      %v382 = vrot.slane %v252, 1
      %v383 = vrot.slane %v253, 1
      %v384 = vsel %vm356, %v382, %v383
      %v385 = vrot.slane %v254, 1
      %v386 = vsel %vm356, %v383, %v385
      %v387 = vrot.slane %v255, 1
      %v388 = vrot.slane %v256, 1
      %v389 = vsel %vm356, %v387, %v388
      %v390 = vrot.slane %v257, 1
      %v391 = vsel %vm356, %v388, %v390
      %v392 = vrot.slane %v258, 1
      %v393 = vrot.slane %v259, 1
      %v394 = vsel %vm356, %v392, %v393
      %v395 = vrot.slane %v260, 1
      %v396 = vsel %vm356, %v393, %v395
      %v397 = vrot.slane %v261, 1
      %v398 = vrot.slane %v262, 1
      %v399 = vsel %vm356, %v397, %v398
      %v400 = vrot.slane %v263, 1
      %v401 = vsel %vm356, %v398, %v400
      %v402 = vrot.slane %v264, 1
      %v403 = vrot.slane %v265, 1
      %v404 = vsel %vm356, %v402, %v403
      %v405 = vrot.slane %v266, 1
      %v406 = vsel %vm356, %v403, %v405
      %v407 = vrot.slane %v267, 1
      %v408 = vrot.slane %v268, 1
      %v409 = vsel %vm356, %v407, %v408
      %v410 = vrot.slane %v269, 1
      %v411 = vsel %vm356, %v408, %v410
      %v412 = vrot.slane %v270, 1
      %v413 = vrot.slane %v271, 1
      %v414 = vsel %vm356, %v412, %v413
      %v415 = vrot.slane %v272, 1
      %v416 = vsel %vm356, %v413, %v415
      %v417 = vrot.slane %v273, 1
      %v418 = vrot.slane %v274, 1
      %v419 = vsel %vm356, %v417, %v418
      %v420 = vrot.slane %v275, 1
      %v421 = vsel %vm356, %v418, %v420
      %v422 = vrot.slane %v276, 1
      %v423 = vrot.slane %v277, 1
      %v424 = vsel %vm356, %v422, %v423
      %v425 = vrot.slane %v278, 1
      %v426 = vsel %vm356, %v423, %v425
      %v427 = vrot.slane %v279, 1
      %v428 = vrot.slane %v280, 1
      %v429 = vsel %vm356, %v427, %v428
      %v430 = vrot.slane %v281, 1
      %v431 = vsel %vm356, %v428, %v430
      %v432 = vrot.slane %v282, 1
      %v433 = vrot.slane %v283, 1
      %v434 = vsel %vm356, %v432, %v433
      %v435 = vrot.slane %v284, 1
      %v436 = vsel %vm356, %v433, %v435
      %v469 = vpack.c.bf16 %v361, %v359
      %v470 = vpack.c.bf16 %v366, %v364
      %v471 = vpack.c.bf16 %v371, %v369
      %v472 = vpack.c.bf16 %v376, %v374
      %v473 = vpack.c.bf16 %v381, %v379
      %v474 = vpack.c.bf16 %v386, %v384
      %v475 = vpack.c.bf16 %v391, %v389
      %v476 = vpack.c.bf16 %v396, %v394
      %v477 = vpack.c.bf16 %v401, %v399
      %v478 = vpack.c.bf16 %v406, %v404
      %v479 = vpack.c.bf16 %v411, %v409
      %v480 = vpack.c.bf16 %v416, %v414
      %v481 = vpack.c.bf16 %v421, %v419
      %v482 = vpack.c.bf16 %v426, %v424
      %v483 = vpack.c.bf16 %v431, %v429
      %v484 = vpack.c.bf16 %v436, %v434
      %s485 = scalar_lea.vmem %s1, 2
      %v486 = vld [vmem:[%s485] sm:$0x3]
      %vm487 = vcmask 31744
      %v489 = vsel %vm487, %v469, 0
      %v492 = vsel %vm487, %v470, 0
      %v495 = vsel %vm487, %v471, 0
      %v498 = vsel %vm487, %v472, 0
      %v501 = vsel %vm487, %v473, 0
      %v504 = vsel %vm487, %v474, 0
      %v507 = vsel %vm487, %v475, 0
      %v510 = vsel %vm487, %v476, 0
      %v513 = vsel %vm487, %v477, 0
      %v516 = vsel %vm487, %v478, 0
      %v519 = vsel %vm487, %v479, 0
      %v522 = vsel %vm487, %v480, 0
      %v525 = vsel %vm487, %v481, 0
      %v528 = vsel %vm487, %v482, 0
      %v531 = vsel %vm487, %v483, 0
      %v534 = vsel %vm487, %v484, 0
      %vm536 = vcmask 1041408
      %v538 = vsel %vm536, %v486, 0
      %540 = vmatpush.bf16.msra.mxu0 0
      %541 = vmatpush.bf16.msra.mxu0 0
      %542 = vmatpush.bf16.msra.mxu0 0
      %543 = vmatpush.bf16.msra.mxu0 0
      %544 = vmatpush.bf16.msra.mxu0 0
      %545 = vmatpush.bf16.msra.mxu0 0
      %546 = vmatpush.bf16.msra.mxu0 0
      %547 = vmatpush.bf16.msra.mxu0 %v538
      %548 = vmatmul.bf16.gmra.mxu0 %v489
      %v549 = vpop.f32.mrf.mxu0
      %v550 = vadd.f32 0.0, %v549
      %v551 = vpop.f32.mrf.mxu0
      %v552 = vadd.f32 0.0, %v551
      %553 = vmatmul.bf16.gmra.mxu0 %v492
      %v554 = vpop.f32.mrf.mxu0
      %v555 = vadd.f32 0.0, %v554
      %v556 = vpop.f32.mrf.mxu0
      %v557 = vadd.f32 0.0, %v556
      %558 = vmatmul.bf16.gmra.mxu0 %v495
      %v559 = vpop.f32.mrf.mxu0
      %v560 = vadd.f32 0.0, %v559
      %v561 = vpop.f32.mrf.mxu0
      %v562 = vadd.f32 0.0, %v561
      %563 = vmatmul.bf16.gmra.mxu0 %v498
      %v564 = vpop.f32.mrf.mxu0
      %v565 = vadd.f32 0.0, %v564
      %v566 = vpop.f32.mrf.mxu0
      %v567 = vadd.f32 0.0, %v566
      %568 = vmatmul.bf16.gmra.mxu0 %v501
      %v569 = vpop.f32.mrf.mxu0
      %v570 = vadd.f32 0.0, %v569
      %v571 = vpop.f32.mrf.mxu0
      %v572 = vadd.f32 0.0, %v571
      %573 = vmatmul.bf16.gmra.mxu0 %v504
      %v574 = vpop.f32.mrf.mxu0
      %v575 = vadd.f32 0.0, %v574
      %v576 = vpop.f32.mrf.mxu0
      %v577 = vadd.f32 0.0, %v576
      %578 = vmatmul.bf16.gmra.mxu0 %v507
      %v579 = vpop.f32.mrf.mxu0
      %v580 = vadd.f32 0.0, %v579
      %v581 = vpop.f32.mrf.mxu0
      %v582 = vadd.f32 0.0, %v581
      %583 = vmatmul.bf16.gmra.mxu0 %v510
      %v584 = vpop.f32.mrf.mxu0
      %v585 = vadd.f32 0.0, %v584
      %v586 = vpop.f32.mrf.mxu0
      %v587 = vadd.f32 0.0, %v586
      %588 = vmatmul.bf16.gmra.mxu0 %v513
      %v589 = vpop.f32.mrf.mxu0
      %v590 = vadd.f32 0.0, %v589
      %v591 = vpop.f32.mrf.mxu0
      %v592 = vadd.f32 0.0, %v591
      %593 = vmatmul.bf16.gmra.mxu0 %v516
      %v594 = vpop.f32.mrf.mxu0
      %v595 = vadd.f32 0.0, %v594
      %v596 = vpop.f32.mrf.mxu0
      %v597 = vadd.f32 0.0, %v596
      %598 = vmatmul.bf16.gmra.mxu0 %v519
      %v599 = vpop.f32.mrf.mxu0
      %v600 = vadd.f32 0.0, %v599
      %v601 = vpop.f32.mrf.mxu0
      %v602 = vadd.f32 0.0, %v601
      %603 = vmatmul.bf16.gmra.mxu0 %v522
      %v604 = vpop.f32.mrf.mxu0
      %v605 = vadd.f32 0.0, %v604
      %v606 = vpop.f32.mrf.mxu0
      %v607 = vadd.f32 0.0, %v606
      %608 = vmatmul.bf16.gmra.mxu0 %v525
      %v609 = vpop.f32.mrf.mxu0
      %v610 = vadd.f32 0.0, %v609
      %v611 = vpop.f32.mrf.mxu0
      %v612 = vadd.f32 0.0, %v611
      %613 = vmatmul.bf16.gmra.mxu0 %v528
      %v614 = vpop.f32.mrf.mxu0
      %v615 = vadd.f32 0.0, %v614
      %v616 = vpop.f32.mrf.mxu0
      %v617 = vadd.f32 0.0, %v616
      %618 = vmatmul.bf16.gmra.mxu0 %v531
      %v619 = vpop.f32.mrf.mxu0
      %v620 = vadd.f32 0.0, %v619
      %v621 = vpop.f32.mrf.mxu0
      %v622 = vadd.f32 0.0, %v621
      %623 = vmatmul.bf16.gmra.mxu0 %v534
      %v624 = vpop.f32.mrf.mxu0
      %v625 = vadd.f32 0.0, %v624
      %v626 = vpop.f32.mrf.mxu0
      %v627 = vadd.f32 0.0, %v626
      %628 = vdwg.mxu0
      %v630 = vsel %vm487, %v291, 0
      %v633 = vsel %vm487, %v292, 0
      %v636 = vsel %vm487, %v293, 0
      %v639 = vsel %vm487, %v294, 0
      %v642 = vsel %vm487, %v295, 0
      %v645 = vsel %vm487, %v296, 0
      %v648 = vsel %vm487, %v297, 0
      %v651 = vsel %vm487, %v298, 0
      %v654 = vsel %vm487, %v299, 0
      %v657 = vsel %vm487, %v300, 0
      %v660 = vsel %vm487, %v301, 0
      %v663 = vsel %vm487, %v302, 0
      %v666 = vsel %vm487, %v303, 0
      %v669 = vsel %vm487, %v304, 0
      %v672 = vsel %vm487, %v305, 0
      %v675 = vsel %vm487, %v306, 0
      %v678 = vsel %vm536, %v307, 0
      %680 = vmatpush.bf16.msra.mxu0 0
      %681 = vmatpush.bf16.msra.mxu0 0
      %682 = vmatpush.bf16.msra.mxu0 0
      %683 = vmatpush.bf16.msra.mxu0 0
      %684 = vmatpush.bf16.msra.mxu0 0
      %685 = vmatpush.bf16.msra.mxu0 0
      %686 = vmatpush.bf16.msra.mxu0 0
      %687 = vmatpush.bf16.msra.mxu0 %v678
      %688 = vmatmul.bf16.gmra.mxu0 %v630
      %v689 = vpop.f32.mrf.mxu0
      %v690 = vadd.f32 %v550, %v689
      %v691 = vpop.f32.mrf.mxu0
      %v692 = vadd.f32 %v552, %v691
      %693 = vmatmul.bf16.gmra.mxu0 %v633
      %v694 = vpop.f32.mrf.mxu0
      %v695 = vadd.f32 %v555, %v694
      %v696 = vpop.f32.mrf.mxu0
      %v697 = vadd.f32 %v557, %v696
      %698 = vmatmul.bf16.gmra.mxu0 %v636
      %v699 = vpop.f32.mrf.mxu0
      %v700 = vadd.f32 %v560, %v699
      %v701 = vpop.f32.mrf.mxu0
      %v702 = vadd.f32 %v562, %v701
      %703 = vmatmul.bf16.gmra.mxu0 %v639
      %v704 = vpop.f32.mrf.mxu0
      %v705 = vadd.f32 %v565, %v704
      %v706 = vpop.f32.mrf.mxu0
      %v707 = vadd.f32 %v567, %v706
      %708 = vmatmul.bf16.gmra.mxu0 %v642
      %v709 = vpop.f32.mrf.mxu0
      %v710 = vadd.f32 %v570, %v709
      %v711 = vpop.f32.mrf.mxu0
      %v712 = vadd.f32 %v572, %v711
      %713 = vmatmul.bf16.gmra.mxu0 %v645
      %v714 = vpop.f32.mrf.mxu0
      %v715 = vadd.f32 %v575, %v714
      %v716 = vpop.f32.mrf.mxu0
      %v717 = vadd.f32 %v577, %v716
      %718 = vmatmul.bf16.gmra.mxu0 %v648
      %v719 = vpop.f32.mrf.mxu0
      %v720 = vadd.f32 %v580, %v719
      %v721 = vpop.f32.mrf.mxu0
      %v722 = vadd.f32 %v582, %v721
      %723 = vmatmul.bf16.gmra.mxu0 %v651
      %v724 = vpop.f32.mrf.mxu0
      %v725 = vadd.f32 %v585, %v724
      %v726 = vpop.f32.mrf.mxu0
      %v727 = vadd.f32 %v587, %v726
      %728 = vmatmul.bf16.gmra.mxu0 %v654
      %v729 = vpop.f32.mrf.mxu0
      %v730 = vadd.f32 %v590, %v729
      %v731 = vpop.f32.mrf.mxu0
      %v732 = vadd.f32 %v592, %v731
      %733 = vmatmul.bf16.gmra.mxu0 %v657
      %v734 = vpop.f32.mrf.mxu0
      %v735 = vadd.f32 %v595, %v734
      %v736 = vpop.f32.mrf.mxu0
      %v737 = vadd.f32 %v597, %v736
      %738 = vmatmul.bf16.gmra.mxu0 %v660
      %v739 = vpop.f32.mrf.mxu0
      %v740 = vadd.f32 %v600, %v739
      %v741 = vpop.f32.mrf.mxu0
      %v742 = vadd.f32 %v602, %v741
      %743 = vmatmul.bf16.gmra.mxu0 %v663
      %v744 = vpop.f32.mrf.mxu0
      %v745 = vadd.f32 %v605, %v744
      %v746 = vpop.f32.mrf.mxu0
      %v747 = vadd.f32 %v607, %v746
      %748 = vmatmul.bf16.gmra.mxu0 %v666
      %v749 = vpop.f32.mrf.mxu0
      %v750 = vadd.f32 %v610, %v749
      %v751 = vpop.f32.mrf.mxu0
      %v752 = vadd.f32 %v612, %v751
      %753 = vmatmul.bf16.gmra.mxu0 %v669
      %v754 = vpop.f32.mrf.mxu0
      %v755 = vadd.f32 %v615, %v754
      %v756 = vpop.f32.mrf.mxu0
      %v757 = vadd.f32 %v617, %v756
      %758 = vmatmul.bf16.gmra.mxu0 %v672
      %v759 = vpop.f32.mrf.mxu0
      %v760 = vadd.f32 %v620, %v759
      %v761 = vpop.f32.mrf.mxu0
      %v762 = vadd.f32 %v622, %v761
      %763 = vmatmul.bf16.gmra.mxu0 %v675
      %v764 = vpop.f32.mrf.mxu0
      %v765 = vadd.f32 %v625, %v764
      %v766 = vpop.f32.mrf.mxu0
      %v767 = vadd.f32 %v627, %v766
      %768 = vdwg.mxu0
      %vm769 = vcmask 1045504
      %v770 = vrot.slane %v237, 2
      %v771 = vrot.slane %v238, 2
      %v772 = vsel %vm769, %v770, %v771
      %v773 = vrot.slane %v239, 2
      %v774 = vsel %vm769, %v771, %v773
      %v775 = vrot.slane %v240, 2
      %v776 = vrot.slane %v241, 2
      %v777 = vsel %vm769, %v775, %v776
      %v778 = vrot.slane %v242, 2
      %v779 = vsel %vm769, %v776, %v778
      %v780 = vrot.slane %v243, 2
      %v781 = vrot.slane %v244, 2
      %v782 = vsel %vm769, %v780, %v781
      %v783 = vrot.slane %v245, 2
      %v784 = vsel %vm769, %v781, %v783
      %v785 = vrot.slane %v246, 2
      %v786 = vrot.slane %v247, 2
      %v787 = vsel %vm769, %v785, %v786
      %v788 = vrot.slane %v248, 2
      %v789 = vsel %vm769, %v786, %v788
      %v790 = vrot.slane %v249, 2
      %v791 = vrot.slane %v250, 2
      %v792 = vsel %vm769, %v790, %v791
      %v793 = vrot.slane %v251, 2
      %v794 = vsel %vm769, %v791, %v793
      %v795 = vrot.slane %v252, 2
      %v796 = vrot.slane %v253, 2
      %v797 = vsel %vm769, %v795, %v796
      %v798 = vrot.slane %v254, 2
      %v799 = vsel %vm769, %v796, %v798
      %v800 = vrot.slane %v255, 2
      %v801 = vrot.slane %v256, 2
      %v802 = vsel %vm769, %v800, %v801
      %v803 = vrot.slane %v257, 2
      %v804 = vsel %vm769, %v801, %v803
      %v805 = vrot.slane %v258, 2
      %v806 = vrot.slane %v259, 2
      %v807 = vsel %vm769, %v805, %v806
      %v808 = vrot.slane %v260, 2
      %v809 = vsel %vm769, %v806, %v808
      %v810 = vrot.slane %v261, 2
      %v811 = vrot.slane %v262, 2
      %v812 = vsel %vm769, %v810, %v811
      %v813 = vrot.slane %v263, 2
      %v814 = vsel %vm769, %v811, %v813
      %v815 = vrot.slane %v264, 2
      %v816 = vrot.slane %v265, 2
      %v817 = vsel %vm769, %v815, %v816
      %v818 = vrot.slane %v266, 2
      %v819 = vsel %vm769, %v816, %v818
      %v820 = vrot.slane %v267, 2
      %v821 = vrot.slane %v268, 2
      %v822 = vsel %vm769, %v820, %v821
      %v823 = vrot.slane %v269, 2
      %v824 = vsel %vm769, %v821, %v823
      %v825 = vrot.slane %v270, 2
      %v826 = vrot.slane %v271, 2
      %v827 = vsel %vm769, %v825, %v826
      %v828 = vrot.slane %v272, 2
      %v829 = vsel %vm769, %v826, %v828
      %v830 = vrot.slane %v273, 2
      %v831 = vrot.slane %v274, 2
      %v832 = vsel %vm769, %v830, %v831
      %v833 = vrot.slane %v275, 2
      %v834 = vsel %vm769, %v831, %v833
      %v835 = vrot.slane %v276, 2
      %v836 = vrot.slane %v277, 2
      %v837 = vsel %vm769, %v835, %v836
      %v838 = vrot.slane %v278, 2
      %v839 = vsel %vm769, %v836, %v838
      %v840 = vrot.slane %v279, 2
      %v841 = vrot.slane %v280, 2
      %v842 = vsel %vm769, %v840, %v841
      %v843 = vrot.slane %v281, 2
      %v844 = vsel %vm769, %v841, %v843
      %v845 = vrot.slane %v282, 2
      %v846 = vrot.slane %v283, 2
      %v847 = vsel %vm769, %v845, %v846
      %v848 = vrot.slane %v284, 2
      %v849 = vsel %vm769, %v846, %v848
      %v882 = vpack.c.bf16 %v774, %v772
      %v883 = vpack.c.bf16 %v779, %v777
      %v884 = vpack.c.bf16 %v784, %v782
      %v885 = vpack.c.bf16 %v789, %v787
      %v886 = vpack.c.bf16 %v794, %v792
      %v887 = vpack.c.bf16 %v799, %v797
      %v888 = vpack.c.bf16 %v804, %v802
      %v889 = vpack.c.bf16 %v809, %v807
      %v890 = vpack.c.bf16 %v814, %v812
      %v891 = vpack.c.bf16 %v819, %v817
      %v892 = vpack.c.bf16 %v824, %v822
      %v893 = vpack.c.bf16 %v829, %v827
      %v894 = vpack.c.bf16 %v834, %v832
      %v895 = vpack.c.bf16 %v839, %v837
      %v896 = vpack.c.bf16 %v844, %v842
      %v897 = vpack.c.bf16 %v849, %v847
      %s898 = scalar_lea.vmem %s1, 4
      %v899 = vld [vmem:[%s898] sm:$0x3]
      %v901 = vsel %vm487, %v882, 0
      %v904 = vsel %vm487, %v883, 0
      %v907 = vsel %vm487, %v884, 0
      %v910 = vsel %vm487, %v885, 0
      %v913 = vsel %vm487, %v886, 0
      %v916 = vsel %vm487, %v887, 0
      %v919 = vsel %vm487, %v888, 0
      %v922 = vsel %vm487, %v889, 0
      %v925 = vsel %vm487, %v890, 0
      %v928 = vsel %vm487, %v891, 0
      %v931 = vsel %vm487, %v892, 0
      %v934 = vsel %vm487, %v893, 0
      %v937 = vsel %vm487, %v894, 0
      %v940 = vsel %vm487, %v895, 0
      %v943 = vsel %vm487, %v896, 0
      %v946 = vsel %vm487, %v897, 0
      %v949 = vsel %vm536, %v899, 0
      %951 = vmatpush.bf16.msra.mxu0 0
      %952 = vmatpush.bf16.msra.mxu0 0
      %953 = vmatpush.bf16.msra.mxu0 0
      %954 = vmatpush.bf16.msra.mxu0 0
      %955 = vmatpush.bf16.msra.mxu0 0
      %956 = vmatpush.bf16.msra.mxu0 0
      %957 = vmatpush.bf16.msra.mxu0 0
      %958 = vmatpush.bf16.msra.mxu0 %v949
      %959 = vmatmul.bf16.gmra.mxu0 %v901
      %v960 = vpop.f32.mrf.mxu0
      %v961 = vadd.f32 0.0, %v960
      %v962 = vpop.f32.mrf.mxu0
      %v963 = vadd.f32 0.0, %v962
      %964 = vmatmul.bf16.gmra.mxu0 %v904
      %v965 = vpop.f32.mrf.mxu0
      %v966 = vadd.f32 0.0, %v965
      %v967 = vpop.f32.mrf.mxu0
      %v968 = vadd.f32 0.0, %v967
      %969 = vmatmul.bf16.gmra.mxu0 %v907
      %v970 = vpop.f32.mrf.mxu0
      %v971 = vadd.f32 0.0, %v970
      %v972 = vpop.f32.mrf.mxu0
      %v973 = vadd.f32 0.0, %v972
      %974 = vmatmul.bf16.gmra.mxu0 %v910
      %v975 = vpop.f32.mrf.mxu0
      %v976 = vadd.f32 0.0, %v975
      %v977 = vpop.f32.mrf.mxu0
      %v978 = vadd.f32 0.0, %v977
      %979 = vmatmul.bf16.gmra.mxu0 %v913
      %v980 = vpop.f32.mrf.mxu0
      %v981 = vadd.f32 0.0, %v980
      %v982 = vpop.f32.mrf.mxu0
      %v983 = vadd.f32 0.0, %v982
      %984 = vmatmul.bf16.gmra.mxu0 %v916
      %v985 = vpop.f32.mrf.mxu0
      %v986 = vadd.f32 0.0, %v985
      %v987 = vpop.f32.mrf.mxu0
      %v988 = vadd.f32 0.0, %v987
      %989 = vmatmul.bf16.gmra.mxu0 %v919
      %v990 = vpop.f32.mrf.mxu0
      %v991 = vadd.f32 0.0, %v990
      %v992 = vpop.f32.mrf.mxu0
      %v993 = vadd.f32 0.0, %v992
      %994 = vmatmul.bf16.gmra.mxu0 %v922
      %v995 = vpop.f32.mrf.mxu0
      %v996 = vadd.f32 0.0, %v995
      %v997 = vpop.f32.mrf.mxu0
      %v998 = vadd.f32 0.0, %v997
      %999 = vmatmul.bf16.gmra.mxu0 %v925
      %v1000 = vpop.f32.mrf.mxu0
      %v1001 = vadd.f32 0.0, %v1000
      %v1002 = vpop.f32.mrf.mxu0
      %v1003 = vadd.f32 0.0, %v1002
      %1004 = vmatmul.bf16.gmra.mxu0 %v928
      %v1005 = vpop.f32.mrf.mxu0
      %v1006 = vadd.f32 0.0, %v1005
      %v1007 = vpop.f32.mrf.mxu0
      %v1008 = vadd.f32 0.0, %v1007
      %1009 = vmatmul.bf16.gmra.mxu0 %v931
      %v1010 = vpop.f32.mrf.mxu0
      %v1011 = vadd.f32 0.0, %v1010
      %v1012 = vpop.f32.mrf.mxu0
      %v1013 = vadd.f32 0.0, %v1012
      %1014 = vmatmul.bf16.gmra.mxu0 %v934
      %v1015 = vpop.f32.mrf.mxu0
      %v1016 = vadd.f32 0.0, %v1015
      %v1017 = vpop.f32.mrf.mxu0
      %v1018 = vadd.f32 0.0, %v1017
      %1019 = vmatmul.bf16.gmra.mxu0 %v937
      %v1020 = vpop.f32.mrf.mxu0
      %v1021 = vadd.f32 0.0, %v1020
      %v1022 = vpop.f32.mrf.mxu0
      %v1023 = vadd.f32 0.0, %v1022
      %1024 = vmatmul.bf16.gmra.mxu0 %v940
      %v1025 = vpop.f32.mrf.mxu0
      %v1026 = vadd.f32 0.0, %v1025
      %v1027 = vpop.f32.mrf.mxu0
      %v1028 = vadd.f32 0.0, %v1027
      %1029 = vmatmul.bf16.gmra.mxu0 %v943
      %v1030 = vpop.f32.mrf.mxu0
      %v1031 = vadd.f32 0.0, %v1030
      %v1032 = vpop.f32.mrf.mxu0
      %v1033 = vadd.f32 0.0, %v1032
      %1034 = vmatmul.bf16.gmra.mxu0 %v946
      %v1035 = vpop.f32.mrf.mxu0
      %v1036 = vadd.f32 0.0, %v1035
      %v1037 = vpop.f32.mrf.mxu0
      %v1038 = vadd.f32 0.0, %v1037
      %1039 = vdwg.mxu0
      %v1040 = vadd.f32 %v690, %v961
      %v1041 = vadd.f32 %v692, %v963
      %v1042 = vadd.f32 %v695, %v966
      %v1043 = vadd.f32 %v697, %v968
      %v1044 = vadd.f32 %v700, %v971
      %v1045 = vadd.f32 %v702, %v973
      %v1046 = vadd.f32 %v705, %v976
      %v1047 = vadd.f32 %v707, %v978
      %v1048 = vadd.f32 %v710, %v981
      %v1049 = vadd.f32 %v712, %v983
      %v1050 = vadd.f32 %v715, %v986
      %v1051 = vadd.f32 %v717, %v988
      %v1052 = vadd.f32 %v720, %v991
      %v1053 = vadd.f32 %v722, %v993
      %v1054 = vadd.f32 %v725, %v996
      %v1055 = vadd.f32 %v727, %v998
      %v1056 = vadd.f32 %v730, %v1001
      %v1057 = vadd.f32 %v732, %v1003
      %v1058 = vadd.f32 %v735, %v1006
      %v1059 = vadd.f32 %v737, %v1008
      %v1060 = vadd.f32 %v740, %v1011
      %v1061 = vadd.f32 %v742, %v1013
      %v1062 = vadd.f32 %v745, %v1016
      %v1063 = vadd.f32 %v747, %v1018
      %v1064 = vadd.f32 %v750, %v1021
      %v1065 = vadd.f32 %v752, %v1023
      %v1066 = vadd.f32 %v755, %v1026
      %v1067 = vadd.f32 %v757, %v1028
      %v1068 = vadd.f32 %v760, %v1031
      %v1069 = vadd.f32 %v762, %v1033
      %v1070 = vadd.f32 %v765, %v1036
      %v1071 = vadd.f32 %v767, %v1038
      %v1072 = vpack.c.bf16 %v286, %v285
      %s1073 = scalar_lea.vmem %s1, 6
      %v1074 = vld [vmem:[%s1073] sm:$0x3]
      %v1076 = vsel %vm487, %v1072, 0
      %v1079 = vsel %vm536, %v1074, 0
      %1081 = vmatpush.bf16.msra.mxu0 0
      %1082 = vmatpush.bf16.msra.mxu0 0
      %1083 = vmatpush.bf16.msra.mxu0 0
      %1084 = vmatpush.bf16.msra.mxu0 0
      %1085 = vmatpush.bf16.msra.mxu0 0
      %1086 = vmatpush.bf16.msra.mxu0 0
      %1087 = vmatpush.bf16.msra.mxu0 0
      %1088 = vmatpush.bf16.msra.mxu0 %v1079
      %1089 = vmatmul.bf16.gmra.mxu0 %v633
      %v1090 = vpop.f32.mrf.mxu0
      %v1091 = vadd.f32 0.0, %v1090
      %v1092 = vpop.f32.mrf.mxu0
      %v1093 = vadd.f32 0.0, %v1092
      %1094 = vmatmul.bf16.gmra.mxu0 %v636
      %v1095 = vpop.f32.mrf.mxu0
      %v1096 = vadd.f32 0.0, %v1095
      %v1097 = vpop.f32.mrf.mxu0
      %v1098 = vadd.f32 0.0, %v1097
      %1099 = vmatmul.bf16.gmra.mxu0 %v639
      %v1100 = vpop.f32.mrf.mxu0
      %v1101 = vadd.f32 0.0, %v1100
      %v1102 = vpop.f32.mrf.mxu0
      %v1103 = vadd.f32 0.0, %v1102
      %1104 = vmatmul.bf16.gmra.mxu0 %v642
      %v1105 = vpop.f32.mrf.mxu0
      %v1106 = vadd.f32 0.0, %v1105
      %v1107 = vpop.f32.mrf.mxu0
      %v1108 = vadd.f32 0.0, %v1107
      %1109 = vmatmul.bf16.gmra.mxu0 %v645
      %v1110 = vpop.f32.mrf.mxu0
      %v1111 = vadd.f32 0.0, %v1110
      %v1112 = vpop.f32.mrf.mxu0
      %v1113 = vadd.f32 0.0, %v1112
      %1114 = vmatmul.bf16.gmra.mxu0 %v648
      %v1115 = vpop.f32.mrf.mxu0
      %v1116 = vadd.f32 0.0, %v1115
      %v1117 = vpop.f32.mrf.mxu0
      %v1118 = vadd.f32 0.0, %v1117
      %1119 = vmatmul.bf16.gmra.mxu0 %v651
      %v1120 = vpop.f32.mrf.mxu0
      %v1121 = vadd.f32 0.0, %v1120
      %v1122 = vpop.f32.mrf.mxu0
      %v1123 = vadd.f32 0.0, %v1122
      %1124 = vmatmul.bf16.gmra.mxu0 %v654
      %v1125 = vpop.f32.mrf.mxu0
      %v1126 = vadd.f32 0.0, %v1125
      %v1127 = vpop.f32.mrf.mxu0
      %v1128 = vadd.f32 0.0, %v1127
      %1129 = vmatmul.bf16.gmra.mxu0 %v657
      %v1130 = vpop.f32.mrf.mxu0
      %v1131 = vadd.f32 0.0, %v1130
      %v1132 = vpop.f32.mrf.mxu0
      %v1133 = vadd.f32 0.0, %v1132
      %1134 = vmatmul.bf16.gmra.mxu0 %v660
      %v1135 = vpop.f32.mrf.mxu0
      %v1136 = vadd.f32 0.0, %v1135
      %v1137 = vpop.f32.mrf.mxu0
      %v1138 = vadd.f32 0.0, %v1137
      %1139 = vmatmul.bf16.gmra.mxu0 %v663
      %v1140 = vpop.f32.mrf.mxu0
      %v1141 = vadd.f32 0.0, %v1140
      %v1142 = vpop.f32.mrf.mxu0
      %v1143 = vadd.f32 0.0, %v1142
      %1144 = vmatmul.bf16.gmra.mxu0 %v666
      %v1145 = vpop.f32.mrf.mxu0
      %v1146 = vadd.f32 0.0, %v1145
      %v1147 = vpop.f32.mrf.mxu0
      %v1148 = vadd.f32 0.0, %v1147
      %1149 = vmatmul.bf16.gmra.mxu0 %v669
      %v1150 = vpop.f32.mrf.mxu0
      %v1151 = vadd.f32 0.0, %v1150
      %v1152 = vpop.f32.mrf.mxu0
      %v1153 = vadd.f32 0.0, %v1152
      %1154 = vmatmul.bf16.gmra.mxu0 %v672
      %v1155 = vpop.f32.mrf.mxu0
      %v1156 = vadd.f32 0.0, %v1155
      %v1157 = vpop.f32.mrf.mxu0
      %v1158 = vadd.f32 0.0, %v1157
      %1159 = vmatmul.bf16.gmra.mxu0 %v675
      %v1160 = vpop.f32.mrf.mxu0
      %v1161 = vadd.f32 0.0, %v1160
      %v1162 = vpop.f32.mrf.mxu0
      %v1163 = vadd.f32 0.0, %v1162
      %1164 = vmatmul.bf16.gmra.mxu0 %v1076
      %v1165 = vpop.f32.mrf.mxu0
      %v1166 = vadd.f32 0.0, %v1165
      %v1167 = vpop.f32.mrf.mxu0
      %v1168 = vadd.f32 0.0, %v1167
      %1169 = vdwg.mxu0
      %v1170 = vadd.f32 %v1040, %v1091
      %v1171 = vadd.f32 %v1041, %v1093
      %v1172 = vadd.f32 %v1042, %v1096
      %v1173 = vadd.f32 %v1043, %v1098
      %v1174 = vadd.f32 %v1044, %v1101
      %v1175 = vadd.f32 %v1045, %v1103
      %v1176 = vadd.f32 %v1046, %v1106
      %v1177 = vadd.f32 %v1047, %v1108
      %v1178 = vadd.f32 %v1048, %v1111
      %v1179 = vadd.f32 %v1049, %v1113
      %v1180 = vadd.f32 %v1050, %v1116
      %v1181 = vadd.f32 %v1051, %v1118
      %v1182 = vadd.f32 %v1052, %v1121
      %v1183 = vadd.f32 %v1053, %v1123
      %v1184 = vadd.f32 %v1054, %v1126
      %v1185 = vadd.f32 %v1055, %v1128
      %v1186 = vadd.f32 %v1056, %v1131
      %v1187 = vadd.f32 %v1057, %v1133
      %v1188 = vadd.f32 %v1058, %v1136
      %v1189 = vadd.f32 %v1059, %v1138
      %v1190 = vadd.f32 %v1060, %v1141
      %v1191 = vadd.f32 %v1061, %v1143
      %v1192 = vadd.f32 %v1062, %v1146
      %v1193 = vadd.f32 %v1063, %v1148
      %v1194 = vadd.f32 %v1064, %v1151
      %v1195 = vadd.f32 %v1065, %v1153
      %v1196 = vadd.f32 %v1066, %v1156
      %v1197 = vadd.f32 %v1067, %v1158
      %v1198 = vadd.f32 %v1068, %v1161
      %v1199 = vadd.f32 %v1069, %v1163
      %v1200 = vadd.f32 %v1070, %v1166
      %v1201 = vadd.f32 %v1071, %v1168
      %v1205 = vrot.slane %v285, 1
      %v1206 = vrot.slane %v286, 1
      %v1207 = vsel %vm356, %v1205, %v1206
      %v1208 = vrot.slane %v287, 1
      %v1209 = vsel %vm356, %v1206, %v1208
      %v1212 = vpack.c.bf16 %v1209, %v1207
      %s1213 = scalar_lea.vmem %s1, 8
      %v1214 = vld [vmem:[%s1213] sm:$0x3]
      %v1216 = vsel %vm487, %v1212, 0
      %v1219 = vsel %vm536, %v1214, 0
      %1221 = vmatpush.bf16.msra.mxu0 0
      %1222 = vmatpush.bf16.msra.mxu0 0
      %1223 = vmatpush.bf16.msra.mxu0 0
      %1224 = vmatpush.bf16.msra.mxu0 0
      %1225 = vmatpush.bf16.msra.mxu0 0
      %1226 = vmatpush.bf16.msra.mxu0 0
      %1227 = vmatpush.bf16.msra.mxu0 0
      %1228 = vmatpush.bf16.msra.mxu0 %v1219
      %1229 = vmatmul.bf16.gmra.mxu0 %v492
      %v1230 = vpop.f32.mrf.mxu0
      %v1231 = vadd.f32 0.0, %v1230
      %v1232 = vpop.f32.mrf.mxu0
      %v1233 = vadd.f32 0.0, %v1232
      %1234 = vmatmul.bf16.gmra.mxu0 %v495
      %v1235 = vpop.f32.mrf.mxu0
      %v1236 = vadd.f32 0.0, %v1235
      %v1237 = vpop.f32.mrf.mxu0
      %v1238 = vadd.f32 0.0, %v1237
      %1239 = vmatmul.bf16.gmra.mxu0 %v498
      %v1240 = vpop.f32.mrf.mxu0
      %v1241 = vadd.f32 0.0, %v1240
      %v1242 = vpop.f32.mrf.mxu0
      %v1243 = vadd.f32 0.0, %v1242
      %1244 = vmatmul.bf16.gmra.mxu0 %v501
      %v1245 = vpop.f32.mrf.mxu0
      %v1246 = vadd.f32 0.0, %v1245
      %v1247 = vpop.f32.mrf.mxu0
      %v1248 = vadd.f32 0.0, %v1247
      %1249 = vmatmul.bf16.gmra.mxu0 %v504
      %v1250 = vpop.f32.mrf.mxu0
      %v1251 = vadd.f32 0.0, %v1250
      %v1252 = vpop.f32.mrf.mxu0
      %v1253 = vadd.f32 0.0, %v1252
      %1254 = vmatmul.bf16.gmra.mxu0 %v507
      %v1255 = vpop.f32.mrf.mxu0
      %v1256 = vadd.f32 0.0, %v1255
      %v1257 = vpop.f32.mrf.mxu0
      %v1258 = vadd.f32 0.0, %v1257
      %1259 = vmatmul.bf16.gmra.mxu0 %v510
      %v1260 = vpop.f32.mrf.mxu0
      %v1261 = vadd.f32 0.0, %v1260
      %v1262 = vpop.f32.mrf.mxu0
      %v1263 = vadd.f32 0.0, %v1262
      %1264 = vmatmul.bf16.gmra.mxu0 %v513
      %v1265 = vpop.f32.mrf.mxu0
      %v1266 = vadd.f32 0.0, %v1265
      %v1267 = vpop.f32.mrf.mxu0
      %v1268 = vadd.f32 0.0, %v1267
      %1269 = vmatmul.bf16.gmra.mxu0 %v516
      %v1270 = vpop.f32.mrf.mxu0
      %v1271 = vadd.f32 0.0, %v1270
      %v1272 = vpop.f32.mrf.mxu0
      %v1273 = vadd.f32 0.0, %v1272
      %1274 = vmatmul.bf16.gmra.mxu0 %v519
      %v1275 = vpop.f32.mrf.mxu0
      %v1276 = vadd.f32 0.0, %v1275
      %v1277 = vpop.f32.mrf.mxu0
      %v1278 = vadd.f32 0.0, %v1277
      %1279 = vmatmul.bf16.gmra.mxu0 %v522
      %v1280 = vpop.f32.mrf.mxu0
      %v1281 = vadd.f32 0.0, %v1280
      %v1282 = vpop.f32.mrf.mxu0
      %v1283 = vadd.f32 0.0, %v1282
      %1284 = vmatmul.bf16.gmra.mxu0 %v525
      %v1285 = vpop.f32.mrf.mxu0
      %v1286 = vadd.f32 0.0, %v1285
      %v1287 = vpop.f32.mrf.mxu0
      %v1288 = vadd.f32 0.0, %v1287
      %1289 = vmatmul.bf16.gmra.mxu0 %v528
      %v1290 = vpop.f32.mrf.mxu0
      %v1291 = vadd.f32 0.0, %v1290
      %v1292 = vpop.f32.mrf.mxu0
      %v1293 = vadd.f32 0.0, %v1292
      %1294 = vmatmul.bf16.gmra.mxu0 %v531
      %v1295 = vpop.f32.mrf.mxu0
      %v1296 = vadd.f32 0.0, %v1295
      %v1297 = vpop.f32.mrf.mxu0
      %v1298 = vadd.f32 0.0, %v1297
      %1299 = vmatmul.bf16.gmra.mxu0 %v534
      %v1300 = vpop.f32.mrf.mxu0
      %v1301 = vadd.f32 0.0, %v1300
      %v1302 = vpop.f32.mrf.mxu0
      %v1303 = vadd.f32 0.0, %v1302
      %1304 = vmatmul.bf16.gmra.mxu0 %v1216
      %v1305 = vpop.f32.mrf.mxu0
      %v1306 = vadd.f32 0.0, %v1305
      %v1307 = vpop.f32.mrf.mxu0
      %v1308 = vadd.f32 0.0, %v1307
      %1309 = vdwg.mxu0
      %v1310 = vadd.f32 %v1170, %v1231
      %v1311 = vadd.f32 %v1171, %v1233
      %v1312 = vadd.f32 %v1172, %v1236
      %v1313 = vadd.f32 %v1173, %v1238
      %v1314 = vadd.f32 %v1174, %v1241
      %v1315 = vadd.f32 %v1175, %v1243
      %v1316 = vadd.f32 %v1176, %v1246
      %v1317 = vadd.f32 %v1177, %v1248
      %v1318 = vadd.f32 %v1178, %v1251
      %v1319 = vadd.f32 %v1179, %v1253
      %v1320 = vadd.f32 %v1180, %v1256
      %v1321 = vadd.f32 %v1181, %v1258
      %v1322 = vadd.f32 %v1182, %v1261
      %v1323 = vadd.f32 %v1183, %v1263
      %v1324 = vadd.f32 %v1184, %v1266
      %v1325 = vadd.f32 %v1185, %v1268
      %v1326 = vadd.f32 %v1186, %v1271
      %v1327 = vadd.f32 %v1187, %v1273
      %v1328 = vadd.f32 %v1188, %v1276
      %v1329 = vadd.f32 %v1189, %v1278
      %v1330 = vadd.f32 %v1190, %v1281
      %v1331 = vadd.f32 %v1191, %v1283
      %v1332 = vadd.f32 %v1192, %v1286
      %v1333 = vadd.f32 %v1193, %v1288
      %v1334 = vadd.f32 %v1194, %v1291
      %v1335 = vadd.f32 %v1195, %v1293
      %v1336 = vadd.f32 %v1196, %v1296
      %v1337 = vadd.f32 %v1197, %v1298
      %v1338 = vadd.f32 %v1198, %v1301
      %v1339 = vadd.f32 %v1199, %v1303
      %v1340 = vadd.f32 %v1200, %v1306
      %v1341 = vadd.f32 %v1201, %v1308
      %v1342 = vrot.slane %v285, 2
      %v1343 = vrot.slane %v286, 2
      %v1344 = vsel %vm769, %v1342, %v1343
      %v1345 = vrot.slane %v287, 2
      %v1346 = vsel %vm769, %v1343, %v1345
      %v1349 = vpack.c.bf16 %v1346, %v1344
      %s1350 = scalar_lea.vmem %s1, 10
      %v1351 = vld [vmem:[%s1350] sm:$0x3]
      %v1353 = vsel %vm487, %v1349, 0
      %v1356 = vsel %vm536, %v1351, 0
      %1358 = vmatpush.bf16.msra.mxu0 0
      %1359 = vmatpush.bf16.msra.mxu0 0
      %1360 = vmatpush.bf16.msra.mxu0 0
      %1361 = vmatpush.bf16.msra.mxu0 0
      %1362 = vmatpush.bf16.msra.mxu0 0
      %1363 = vmatpush.bf16.msra.mxu0 0
      %1364 = vmatpush.bf16.msra.mxu0 0
      %1365 = vmatpush.bf16.msra.mxu0 %v1356
      %1366 = vmatmul.bf16.gmra.mxu0 %v904
      %v1367 = vpop.f32.mrf.mxu0
      %v1368 = vadd.f32 0.0, %v1367
      %v1369 = vpop.f32.mrf.mxu0
      %v1370 = vadd.f32 0.0, %v1369
      %1371 = vmatmul.bf16.gmra.mxu0 %v907
      %v1372 = vpop.f32.mrf.mxu0
      %v1373 = vadd.f32 0.0, %v1372
      %v1374 = vpop.f32.mrf.mxu0
      %v1375 = vadd.f32 0.0, %v1374
      %1376 = vmatmul.bf16.gmra.mxu0 %v910
      %v1377 = vpop.f32.mrf.mxu0
      %v1378 = vadd.f32 0.0, %v1377
      %v1379 = vpop.f32.mrf.mxu0
      %v1380 = vadd.f32 0.0, %v1379
      %1381 = vmatmul.bf16.gmra.mxu0 %v913
      %v1382 = vpop.f32.mrf.mxu0
      %v1383 = vadd.f32 0.0, %v1382
      %v1384 = vpop.f32.mrf.mxu0
      %v1385 = vadd.f32 0.0, %v1384
      %1386 = vmatmul.bf16.gmra.mxu0 %v916
      %v1387 = vpop.f32.mrf.mxu0
      %v1388 = vadd.f32 0.0, %v1387
      %v1389 = vpop.f32.mrf.mxu0
      %v1390 = vadd.f32 0.0, %v1389
      %1391 = vmatmul.bf16.gmra.mxu0 %v919
      %v1392 = vpop.f32.mrf.mxu0
      %v1393 = vadd.f32 0.0, %v1392
      %v1394 = vpop.f32.mrf.mxu0
      %v1395 = vadd.f32 0.0, %v1394
      %1396 = vmatmul.bf16.gmra.mxu0 %v922
      %v1397 = vpop.f32.mrf.mxu0
      %v1398 = vadd.f32 0.0, %v1397
      %v1399 = vpop.f32.mrf.mxu0
      %v1400 = vadd.f32 0.0, %v1399
      %1401 = vmatmul.bf16.gmra.mxu0 %v925
      %v1402 = vpop.f32.mrf.mxu0
      %v1403 = vadd.f32 0.0, %v1402
      %v1404 = vpop.f32.mrf.mxu0
      %v1405 = vadd.f32 0.0, %v1404
      %1406 = vmatmul.bf16.gmra.mxu0 %v928
      %v1407 = vpop.f32.mrf.mxu0
      %v1408 = vadd.f32 0.0, %v1407
      %v1409 = vpop.f32.mrf.mxu0
      %v1410 = vadd.f32 0.0, %v1409
      %1411 = vmatmul.bf16.gmra.mxu0 %v931
      %v1412 = vpop.f32.mrf.mxu0
      %v1413 = vadd.f32 0.0, %v1412
      %v1414 = vpop.f32.mrf.mxu0
      %v1415 = vadd.f32 0.0, %v1414
      %1416 = vmatmul.bf16.gmra.mxu0 %v934
      %v1417 = vpop.f32.mrf.mxu0
      %v1418 = vadd.f32 0.0, %v1417
      %v1419 = vpop.f32.mrf.mxu0
      %v1420 = vadd.f32 0.0, %v1419
      %1421 = vmatmul.bf16.gmra.mxu0 %v937
      %v1422 = vpop.f32.mrf.mxu0
      %v1423 = vadd.f32 0.0, %v1422
      %v1424 = vpop.f32.mrf.mxu0
      %v1425 = vadd.f32 0.0, %v1424
      %1426 = vmatmul.bf16.gmra.mxu0 %v940
      %v1427 = vpop.f32.mrf.mxu0
      %v1428 = vadd.f32 0.0, %v1427
      %v1429 = vpop.f32.mrf.mxu0
      %v1430 = vadd.f32 0.0, %v1429
      %1431 = vmatmul.bf16.gmra.mxu0 %v943
      %v1432 = vpop.f32.mrf.mxu0
      %v1433 = vadd.f32 0.0, %v1432
      %v1434 = vpop.f32.mrf.mxu0
      %v1435 = vadd.f32 0.0, %v1434
      %1436 = vmatmul.bf16.gmra.mxu0 %v946
      %v1437 = vpop.f32.mrf.mxu0
      %v1438 = vadd.f32 0.0, %v1437
      %v1439 = vpop.f32.mrf.mxu0
      %v1440 = vadd.f32 0.0, %v1439
      %1441 = vmatmul.bf16.gmra.mxu0 %v1353
      %v1442 = vpop.f32.mrf.mxu0
      %v1443 = vadd.f32 0.0, %v1442
      %v1444 = vpop.f32.mrf.mxu0
      %v1445 = vadd.f32 0.0, %v1444
      %1446 = vdwg.mxu0
      %v1447 = vadd.f32 %v1310, %v1368
      %v1448 = vadd.f32 %v1311, %v1370
      %v1449 = vadd.f32 %v1312, %v1373
      %v1450 = vadd.f32 %v1313, %v1375
      %v1451 = vadd.f32 %v1314, %v1378
      %v1452 = vadd.f32 %v1315, %v1380
      %v1453 = vadd.f32 %v1316, %v1383
      %v1454 = vadd.f32 %v1317, %v1385
      %v1455 = vadd.f32 %v1318, %v1388
      %v1456 = vadd.f32 %v1319, %v1390
      %v1457 = vadd.f32 %v1320, %v1393
      %v1458 = vadd.f32 %v1321, %v1395
      %v1459 = vadd.f32 %v1322, %v1398
      %v1460 = vadd.f32 %v1323, %v1400
      %v1461 = vadd.f32 %v1324, %v1403
      %v1462 = vadd.f32 %v1325, %v1405
      %v1463 = vadd.f32 %v1326, %v1408
      %v1464 = vadd.f32 %v1327, %v1410
      %v1465 = vadd.f32 %v1328, %v1413
      %v1466 = vadd.f32 %v1329, %v1415
      %v1467 = vadd.f32 %v1330, %v1418
      %v1468 = vadd.f32 %v1331, %v1420
      %v1469 = vadd.f32 %v1332, %v1423
      %v1470 = vadd.f32 %v1333, %v1425
      %v1471 = vadd.f32 %v1334, %v1428
      %v1472 = vadd.f32 %v1335, %v1430
      %v1473 = vadd.f32 %v1336, %v1433
      %v1474 = vadd.f32 %v1337, %v1435
      %v1475 = vadd.f32 %v1338, %v1438
      %v1476 = vadd.f32 %v1339, %v1440
      %v1477 = vadd.f32 %v1340, %v1443
      %v1478 = vadd.f32 %v1341, %v1445
      %v1479 = vpack.c.bf16 %v289, %v288
      %s1480 = scalar_lea.vmem %s1, 12
      %v1481 = vld [vmem:[%s1480] sm:$0x3]
      %v1483 = vsel %vm487, %v1479, 0
      %v1486 = vsel %vm536, %v1481, 0
      %1488 = vmatpush.bf16.msra.mxu0 0
      %1489 = vmatpush.bf16.msra.mxu0 0
      %1490 = vmatpush.bf16.msra.mxu0 0
      %1491 = vmatpush.bf16.msra.mxu0 0
      %1492 = vmatpush.bf16.msra.mxu0 0
      %1493 = vmatpush.bf16.msra.mxu0 0
      %1494 = vmatpush.bf16.msra.mxu0 0
      %1495 = vmatpush.bf16.msra.mxu0 %v1486
      %1496 = vmatmul.bf16.gmra.mxu0 %v636
      %v1497 = vpop.f32.mrf.mxu0
      %v1498 = vadd.f32 0.0, %v1497
      %v1499 = vpop.f32.mrf.mxu0
      %v1500 = vadd.f32 0.0, %v1499
      %1501 = vmatmul.bf16.gmra.mxu0 %v639
      %v1502 = vpop.f32.mrf.mxu0
      %v1503 = vadd.f32 0.0, %v1502
      %v1504 = vpop.f32.mrf.mxu0
      %v1505 = vadd.f32 0.0, %v1504
      %1506 = vmatmul.bf16.gmra.mxu0 %v642
      %v1507 = vpop.f32.mrf.mxu0
      %v1508 = vadd.f32 0.0, %v1507
      %v1509 = vpop.f32.mrf.mxu0
      %v1510 = vadd.f32 0.0, %v1509
      %1511 = vmatmul.bf16.gmra.mxu0 %v645
      %v1512 = vpop.f32.mrf.mxu0
      %v1513 = vadd.f32 0.0, %v1512
      %v1514 = vpop.f32.mrf.mxu0
      %v1515 = vadd.f32 0.0, %v1514
      %1516 = vmatmul.bf16.gmra.mxu0 %v648
      %v1517 = vpop.f32.mrf.mxu0
      %v1518 = vadd.f32 0.0, %v1517
      %v1519 = vpop.f32.mrf.mxu0
      %v1520 = vadd.f32 0.0, %v1519
      %1521 = vmatmul.bf16.gmra.mxu0 %v651
      %v1522 = vpop.f32.mrf.mxu0
      %v1523 = vadd.f32 0.0, %v1522
      %v1524 = vpop.f32.mrf.mxu0
      %v1525 = vadd.f32 0.0, %v1524
      %1526 = vmatmul.bf16.gmra.mxu0 %v654
      %v1527 = vpop.f32.mrf.mxu0
      %v1528 = vadd.f32 0.0, %v1527
      %v1529 = vpop.f32.mrf.mxu0
      %v1530 = vadd.f32 0.0, %v1529
      %1531 = vmatmul.bf16.gmra.mxu0 %v657
      %v1532 = vpop.f32.mrf.mxu0
      %v1533 = vadd.f32 0.0, %v1532
      %v1534 = vpop.f32.mrf.mxu0
      %v1535 = vadd.f32 0.0, %v1534
      %1536 = vmatmul.bf16.gmra.mxu0 %v660
      %v1537 = vpop.f32.mrf.mxu0
      %v1538 = vadd.f32 0.0, %v1537
      %v1539 = vpop.f32.mrf.mxu0
      %v1540 = vadd.f32 0.0, %v1539
      %1541 = vmatmul.bf16.gmra.mxu0 %v663
      %v1542 = vpop.f32.mrf.mxu0
      %v1543 = vadd.f32 0.0, %v1542
      %v1544 = vpop.f32.mrf.mxu0
      %v1545 = vadd.f32 0.0, %v1544
      %1546 = vmatmul.bf16.gmra.mxu0 %v666
      %v1547 = vpop.f32.mrf.mxu0
      %v1548 = vadd.f32 0.0, %v1547
      %v1549 = vpop.f32.mrf.mxu0
      %v1550 = vadd.f32 0.0, %v1549
      %1551 = vmatmul.bf16.gmra.mxu0 %v669
      %v1552 = vpop.f32.mrf.mxu0
      %v1553 = vadd.f32 0.0, %v1552
      %v1554 = vpop.f32.mrf.mxu0
      %v1555 = vadd.f32 0.0, %v1554
      %1556 = vmatmul.bf16.gmra.mxu0 %v672
      %v1557 = vpop.f32.mrf.mxu0
      %v1558 = vadd.f32 0.0, %v1557
      %v1559 = vpop.f32.mrf.mxu0
      %v1560 = vadd.f32 0.0, %v1559
      %1561 = vmatmul.bf16.gmra.mxu0 %v675
      %v1562 = vpop.f32.mrf.mxu0
      %v1563 = vadd.f32 0.0, %v1562
      %v1564 = vpop.f32.mrf.mxu0
      %v1565 = vadd.f32 0.0, %v1564
      %1566 = vmatmul.bf16.gmra.mxu0 %v1076
      %v1567 = vpop.f32.mrf.mxu0
      %v1568 = vadd.f32 0.0, %v1567
      %v1569 = vpop.f32.mrf.mxu0
      %v1570 = vadd.f32 0.0, %v1569
      %1571 = vmatmul.bf16.gmra.mxu0 %v1483
      %v1572 = vpop.f32.mrf.mxu0
      %v1573 = vadd.f32 0.0, %v1572
      %v1574 = vpop.f32.mrf.mxu0
      %v1575 = vadd.f32 0.0, %v1574
      %1576 = vdwg.mxu0
      %v1577 = vadd.f32 %v1447, %v1498
      %v1578 = vadd.f32 %v1448, %v1500
      %v1579 = vadd.f32 %v1449, %v1503
      %v1580 = vadd.f32 %v1450, %v1505
      %v1581 = vadd.f32 %v1451, %v1508
      %v1582 = vadd.f32 %v1452, %v1510
      %v1583 = vadd.f32 %v1453, %v1513
      %v1584 = vadd.f32 %v1454, %v1515
      %v1585 = vadd.f32 %v1455, %v1518
      %v1586 = vadd.f32 %v1456, %v1520
      %v1587 = vadd.f32 %v1457, %v1523
      %v1588 = vadd.f32 %v1458, %v1525
      %v1589 = vadd.f32 %v1459, %v1528
      %v1590 = vadd.f32 %v1460, %v1530
      %v1591 = vadd.f32 %v1461, %v1533
      %v1592 = vadd.f32 %v1462, %v1535
      %v1593 = vadd.f32 %v1463, %v1538
      %v1594 = vadd.f32 %v1464, %v1540
      %v1595 = vadd.f32 %v1465, %v1543
      %v1596 = vadd.f32 %v1466, %v1545
      %v1597 = vadd.f32 %v1467, %v1548
      %v1598 = vadd.f32 %v1468, %v1550
      %v1599 = vadd.f32 %v1469, %v1553
      %v1600 = vadd.f32 %v1470, %v1555
      %v1601 = vadd.f32 %v1471, %v1558
      %v1602 = vadd.f32 %v1472, %v1560
      %v1603 = vadd.f32 %v1473, %v1563
      %v1604 = vadd.f32 %v1474, %v1565
      %v1605 = vadd.f32 %v1475, %v1568
      %v1606 = vadd.f32 %v1476, %v1570
      %v1607 = vadd.f32 %v1477, %v1573
      %v1608 = vadd.f32 %v1478, %v1575
      %v1612 = vrot.slane %v288, 1
      %v1613 = vrot.slane %v289, 1
      %v1614 = vsel %vm356, %v1612, %v1613
      %v1615 = vrot.slane %v290, 1
      %v1616 = vsel %vm356, %v1613, %v1615
      %v1619 = vpack.c.bf16 %v1616, %v1614
      %s1620 = scalar_lea.vmem %s1, 14
      %v1621 = vld [vmem:[%s1620] sm:$0x3]
      %v1623 = vsel %vm487, %v1619, 0
      %v1626 = vsel %vm536, %v1621, 0
      %1628 = vmatpush.bf16.msra.mxu0 0
      %1629 = vmatpush.bf16.msra.mxu0 0
      %1630 = vmatpush.bf16.msra.mxu0 0
      %1631 = vmatpush.bf16.msra.mxu0 0
      %1632 = vmatpush.bf16.msra.mxu0 0
      %1633 = vmatpush.bf16.msra.mxu0 0
      %1634 = vmatpush.bf16.msra.mxu0 0
      %1635 = vmatpush.bf16.msra.mxu0 %v1626
      %1636 = vmatmul.bf16.gmra.mxu0 %v495
      %v1637 = vpop.f32.mrf.mxu0
      %v1638 = vadd.f32 0.0, %v1637
      %v1639 = vpop.f32.mrf.mxu0
      %v1640 = vadd.f32 0.0, %v1639
      %1641 = vmatmul.bf16.gmra.mxu0 %v498
      %v1642 = vpop.f32.mrf.mxu0
      %v1643 = vadd.f32 0.0, %v1642
      %v1644 = vpop.f32.mrf.mxu0
      %v1645 = vadd.f32 0.0, %v1644
      %1646 = vmatmul.bf16.gmra.mxu0 %v501
      %v1647 = vpop.f32.mrf.mxu0
      %v1648 = vadd.f32 0.0, %v1647
      %v1649 = vpop.f32.mrf.mxu0
      %v1650 = vadd.f32 0.0, %v1649
      %1651 = vmatmul.bf16.gmra.mxu0 %v504
      %v1652 = vpop.f32.mrf.mxu0
      %v1653 = vadd.f32 0.0, %v1652
      %v1654 = vpop.f32.mrf.mxu0
      %v1655 = vadd.f32 0.0, %v1654
      %1656 = vmatmul.bf16.gmra.mxu0 %v507
      %v1657 = vpop.f32.mrf.mxu0
      %v1658 = vadd.f32 0.0, %v1657
      %v1659 = vpop.f32.mrf.mxu0
      %v1660 = vadd.f32 0.0, %v1659
      %1661 = vmatmul.bf16.gmra.mxu0 %v510
      %v1662 = vpop.f32.mrf.mxu0
      %v1663 = vadd.f32 0.0, %v1662
      %v1664 = vpop.f32.mrf.mxu0
      %v1665 = vadd.f32 0.0, %v1664
      %1666 = vmatmul.bf16.gmra.mxu0 %v513
      %v1667 = vpop.f32.mrf.mxu0
      %v1668 = vadd.f32 0.0, %v1667
      %v1669 = vpop.f32.mrf.mxu0
      %v1670 = vadd.f32 0.0, %v1669
      %1671 = vmatmul.bf16.gmra.mxu0 %v516
      %v1672 = vpop.f32.mrf.mxu0
      %v1673 = vadd.f32 0.0, %v1672
      %v1674 = vpop.f32.mrf.mxu0
      %v1675 = vadd.f32 0.0, %v1674
      %1676 = vmatmul.bf16.gmra.mxu0 %v519
      %v1677 = vpop.f32.mrf.mxu0
      %v1678 = vadd.f32 0.0, %v1677
      %v1679 = vpop.f32.mrf.mxu0
      %v1680 = vadd.f32 0.0, %v1679
      %1681 = vmatmul.bf16.gmra.mxu0 %v522
      %v1682 = vpop.f32.mrf.mxu0
      %v1683 = vadd.f32 0.0, %v1682
      %v1684 = vpop.f32.mrf.mxu0
      %v1685 = vadd.f32 0.0, %v1684
      %1686 = vmatmul.bf16.gmra.mxu0 %v525
      %v1687 = vpop.f32.mrf.mxu0
      %v1688 = vadd.f32 0.0, %v1687
      %v1689 = vpop.f32.mrf.mxu0
      %v1690 = vadd.f32 0.0, %v1689
      %1691 = vmatmul.bf16.gmra.mxu0 %v528
      %v1692 = vpop.f32.mrf.mxu0
      %v1693 = vadd.f32 0.0, %v1692
      %v1694 = vpop.f32.mrf.mxu0
      %v1695 = vadd.f32 0.0, %v1694
      %1696 = vmatmul.bf16.gmra.mxu0 %v531
      %v1697 = vpop.f32.mrf.mxu0
      %v1698 = vadd.f32 0.0, %v1697
      %v1699 = vpop.f32.mrf.mxu0
      %v1700 = vadd.f32 0.0, %v1699
      %1701 = vmatmul.bf16.gmra.mxu0 %v534
      %v1702 = vpop.f32.mrf.mxu0
      %v1703 = vadd.f32 0.0, %v1702
      %v1704 = vpop.f32.mrf.mxu0
      %v1705 = vadd.f32 0.0, %v1704
      %1706 = vmatmul.bf16.gmra.mxu0 %v1216
      %v1707 = vpop.f32.mrf.mxu0
      %v1708 = vadd.f32 0.0, %v1707
      %v1709 = vpop.f32.mrf.mxu0
      %v1710 = vadd.f32 0.0, %v1709
      %1711 = vmatmul.bf16.gmra.mxu0 %v1623
      %v1712 = vpop.f32.mrf.mxu0
      %v1713 = vadd.f32 0.0, %v1712
      %v1714 = vpop.f32.mrf.mxu0
      %v1715 = vadd.f32 0.0, %v1714
      %1716 = vdwg.mxu0
      %v1717 = vadd.f32 %v1577, %v1638
      %v1718 = vadd.f32 %v1578, %v1640
      %v1719 = vadd.f32 %v1579, %v1643
      %v1720 = vadd.f32 %v1580, %v1645
      %v1721 = vadd.f32 %v1581, %v1648
      %v1722 = vadd.f32 %v1582, %v1650
      %v1723 = vadd.f32 %v1583, %v1653
      %v1724 = vadd.f32 %v1584, %v1655
      %v1725 = vadd.f32 %v1585, %v1658
      %v1726 = vadd.f32 %v1586, %v1660
      %v1727 = vadd.f32 %v1587, %v1663
      %v1728 = vadd.f32 %v1588, %v1665
      %v1729 = vadd.f32 %v1589, %v1668
      %v1730 = vadd.f32 %v1590, %v1670
      %v1731 = vadd.f32 %v1591, %v1673
      %v1732 = vadd.f32 %v1592, %v1675
      %v1733 = vadd.f32 %v1593, %v1678
      %v1734 = vadd.f32 %v1594, %v1680
      %v1735 = vadd.f32 %v1595, %v1683
      %v1736 = vadd.f32 %v1596, %v1685
      %v1737 = vadd.f32 %v1597, %v1688
      %v1738 = vadd.f32 %v1598, %v1690
      %v1739 = vadd.f32 %v1599, %v1693
      %v1740 = vadd.f32 %v1600, %v1695
      %v1741 = vadd.f32 %v1601, %v1698
      %v1742 = vadd.f32 %v1602, %v1700
      %v1743 = vadd.f32 %v1603, %v1703
      %v1744 = vadd.f32 %v1604, %v1705
      %v1745 = vadd.f32 %v1605, %v1708
      %v1746 = vadd.f32 %v1606, %v1710
      %v1747 = vadd.f32 %v1607, %v1713
      %v1748 = vadd.f32 %v1608, %v1715
      %v1749 = vrot.slane %v288, 2
      %v1750 = vrot.slane %v289, 2
      %v1751 = vsel %vm769, %v1749, %v1750
      %v1752 = vrot.slane %v290, 2
      %v1753 = vsel %vm769, %v1750, %v1752
      %v1756 = vpack.c.bf16 %v1753, %v1751
      %s1757 = scalar_lea.vmem %s1, 16
      %v1758 = vld [vmem:[%s1757] sm:$0x3]
      %v1760 = vsel %vm487, %v1756, 0
      %v1763 = vsel %vm536, %v1758, 0
      %1765 = vmatpush.bf16.msra.mxu0 0
      %1766 = vmatpush.bf16.msra.mxu0 0
      %1767 = vmatpush.bf16.msra.mxu0 0
      %1768 = vmatpush.bf16.msra.mxu0 0
      %1769 = vmatpush.bf16.msra.mxu0 0
      %1770 = vmatpush.bf16.msra.mxu0 0
      %1771 = vmatpush.bf16.msra.mxu0 0
      %1772 = vmatpush.bf16.msra.mxu0 %v1763
      %1773 = vmatmul.bf16.gmra.mxu0 %v907
      %v1774 = vpop.f32.mrf.mxu0
      %v1775 = vadd.f32 0.0, %v1774
      %v1776 = vpop.f32.mrf.mxu0
      %v1777 = vadd.f32 0.0, %v1776
      %1778 = vmatmul.bf16.gmra.mxu0 %v910
      %v1779 = vpop.f32.mrf.mxu0
      %v1780 = vadd.f32 0.0, %v1779
      %v1781 = vpop.f32.mrf.mxu0
      %v1782 = vadd.f32 0.0, %v1781
      %1783 = vmatmul.bf16.gmra.mxu0 %v913
      %v1784 = vpop.f32.mrf.mxu0
      %v1785 = vadd.f32 0.0, %v1784
      %v1786 = vpop.f32.mrf.mxu0
      %v1787 = vadd.f32 0.0, %v1786
      %1788 = vmatmul.bf16.gmra.mxu0 %v916
      %v1789 = vpop.f32.mrf.mxu0
      %v1790 = vadd.f32 0.0, %v1789
      %v1791 = vpop.f32.mrf.mxu0
      %v1792 = vadd.f32 0.0, %v1791
      %1793 = vmatmul.bf16.gmra.mxu0 %v919
      %v1794 = vpop.f32.mrf.mxu0
      %v1795 = vadd.f32 0.0, %v1794
      %v1796 = vpop.f32.mrf.mxu0
      %v1797 = vadd.f32 0.0, %v1796
      %1798 = vmatmul.bf16.gmra.mxu0 %v922
      %v1799 = vpop.f32.mrf.mxu0
      %v1800 = vadd.f32 0.0, %v1799
      %v1801 = vpop.f32.mrf.mxu0
      %v1802 = vadd.f32 0.0, %v1801
      %1803 = vmatmul.bf16.gmra.mxu0 %v925
      %v1804 = vpop.f32.mrf.mxu0
      %v1805 = vadd.f32 0.0, %v1804
      %v1806 = vpop.f32.mrf.mxu0
      %v1807 = vadd.f32 0.0, %v1806
      %1808 = vmatmul.bf16.gmra.mxu0 %v928
      %v1809 = vpop.f32.mrf.mxu0
      %v1810 = vadd.f32 0.0, %v1809
      %v1811 = vpop.f32.mrf.mxu0
      %v1812 = vadd.f32 0.0, %v1811
      %1813 = vmatmul.bf16.gmra.mxu0 %v931
      %v1814 = vpop.f32.mrf.mxu0
      %v1815 = vadd.f32 0.0, %v1814
      %v1816 = vpop.f32.mrf.mxu0
      %v1817 = vadd.f32 0.0, %v1816
      %1818 = vmatmul.bf16.gmra.mxu0 %v934
      %v1819 = vpop.f32.mrf.mxu0
      %v1820 = vadd.f32 0.0, %v1819
      %v1821 = vpop.f32.mrf.mxu0
      %v1822 = vadd.f32 0.0, %v1821
      %1823 = vmatmul.bf16.gmra.mxu0 %v937
      %v1824 = vpop.f32.mrf.mxu0
      %v1825 = vadd.f32 0.0, %v1824
      %v1826 = vpop.f32.mrf.mxu0
      %v1827 = vadd.f32 0.0, %v1826
      %1828 = vmatmul.bf16.gmra.mxu0 %v940
      %v1829 = vpop.f32.mrf.mxu0
      %v1830 = vadd.f32 0.0, %v1829
      %v1831 = vpop.f32.mrf.mxu0
      %v1832 = vadd.f32 0.0, %v1831
      %1833 = vmatmul.bf16.gmra.mxu0 %v943
      %v1834 = vpop.f32.mrf.mxu0
      %v1835 = vadd.f32 0.0, %v1834
      %v1836 = vpop.f32.mrf.mxu0
      %v1837 = vadd.f32 0.0, %v1836
      %1838 = vmatmul.bf16.gmra.mxu0 %v946
      %v1839 = vpop.f32.mrf.mxu0
      %v1840 = vadd.f32 0.0, %v1839
      %v1841 = vpop.f32.mrf.mxu0
      %v1842 = vadd.f32 0.0, %v1841
      %1843 = vmatmul.bf16.gmra.mxu0 %v1353
      %v1844 = vpop.f32.mrf.mxu0
      %v1845 = vadd.f32 0.0, %v1844
      %v1846 = vpop.f32.mrf.mxu0
      %v1847 = vadd.f32 0.0, %v1846
      %1848 = vmatmul.bf16.gmra.mxu0 %v1760
      %v1849 = vpop.f32.mrf.mxu0
      %v1850 = vadd.f32 0.0, %v1849
      %v1851 = vpop.f32.mrf.mxu0
      %v1852 = vadd.f32 0.0, %v1851
      %1853 = vdwg.mxu0
      %v1854 = vadd.f32 %v1717, %v1775
      %v1855 = vadd.f32 %v1718, %v1777
      %v1856 = vadd.f32 %v1719, %v1780
      %v1857 = vadd.f32 %v1720, %v1782
      %v1858 = vadd.f32 %v1721, %v1785
      %v1859 = vadd.f32 %v1722, %v1787
      %v1860 = vadd.f32 %v1723, %v1790
      %v1861 = vadd.f32 %v1724, %v1792
      %v1862 = vadd.f32 %v1725, %v1795
      %v1863 = vadd.f32 %v1726, %v1797
      %v1864 = vadd.f32 %v1727, %v1800
      %v1865 = vadd.f32 %v1728, %v1802
      %v1866 = vadd.f32 %v1729, %v1805
      %v1867 = vadd.f32 %v1730, %v1807
      %v1868 = vadd.f32 %v1731, %v1810
      %v1869 = vadd.f32 %v1732, %v1812
      %v1870 = vadd.f32 %v1733, %v1815
      %v1871 = vadd.f32 %v1734, %v1817
      %v1872 = vadd.f32 %v1735, %v1820
      %v1873 = vadd.f32 %v1736, %v1822
      %v1874 = vadd.f32 %v1737, %v1825
      %v1875 = vadd.f32 %v1738, %v1827
      %v1876 = vadd.f32 %v1739, %v1830
      %v1877 = vadd.f32 %v1740, %v1832
      %v1878 = vadd.f32 %v1741, %v1835
      %v1879 = vadd.f32 %v1742, %v1837
      %v1880 = vadd.f32 %v1743, %v1840
      %v1881 = vadd.f32 %v1744, %v1842
      %v1882 = vadd.f32 %v1745, %v1845
      %v1883 = vadd.f32 %v1746, %v1847
      %v1884 = vadd.f32 %v1747, %v1850
      %v1885 = vadd.f32 %v1748, %v1852
      %v1886 = vpack.c.bf16 %v1854, %v1854
      %v1887 = vpack.c.bf16 %v1855, %v1855
      %v1888 = vpack.c.bf16 %v1856, %v1856
      %v1889 = vpack.c.bf16 %v1857, %v1857
      %v1890 = vpack.c.bf16 %v1858, %v1858
      %v1891 = vpack.c.bf16 %v1859, %v1859
      %v1892 = vpack.c.bf16 %v1860, %v1860
      %v1893 = vpack.c.bf16 %v1861, %v1861
      %v1894 = vpack.c.bf16 %v1862, %v1862
      %v1895 = vpack.c.bf16 %v1863, %v1863
      %v1896 = vpack.c.bf16 %v1864, %v1864
      %v1897 = vpack.c.bf16 %v1865, %v1865
      %v1898 = vpack.c.bf16 %v1866, %v1866
      %v1899 = vpack.c.bf16 %v1867, %v1867
      %v1900 = vpack.c.bf16 %v1868, %v1868
      %v1901 = vpack.c.bf16 %v1869, %v1869
      %v1902 = vpack.c.bf16 %v1870, %v1870
      %v1903 = vpack.c.bf16 %v1871, %v1871
      %v1904 = vpack.c.bf16 %v1872, %v1872
      %v1905 = vpack.c.bf16 %v1873, %v1873
      %v1906 = vpack.c.bf16 %v1874, %v1874
      %v1907 = vpack.c.bf16 %v1875, %v1875
      %v1908 = vpack.c.bf16 %v1876, %v1876
      %v1909 = vpack.c.bf16 %v1877, %v1877
      %v1910 = vpack.c.bf16 %v1878, %v1878
      %v1911 = vpack.c.bf16 %v1879, %v1879
      %v1912 = vpack.c.bf16 %v1880, %v1880
      %v1913 = vpack.c.bf16 %v1881, %v1881
      %v1914 = vpack.c.bf16 %v1882, %v1882
      %v1915 = vpack.c.bf16 %v1883, %v1883
      %v1916 = vpack.c.bf16 %v1884, %v1884
      %v1917 = vpack.c.bf16 %v1885, %v1885
      %1918 = vst [vmem:[%s177] sm:$0xf] %v1886
      %1919 = vst [vmem:[%s177 + $0x4] sm:$0xf] %v1887
      %1920 = vst [vmem:[%s177 + $0x8] sm:$0xf] %v1888
      %1921 = vst [vmem:[%s177 + $0xc] sm:$0xf] %v1889
      %1922 = vst [vmem:[%s177 + $0x10] sm:$0xf] %v1890
      %1923 = vst [vmem:[%s177 + $0x14] sm:$0xf] %v1891
      %1924 = vst [vmem:[%s177 + $0x18] sm:$0xf] %v1892
      %1925 = vst [vmem:[%s177 + $0x1c] sm:$0xf] %v1893
      %1926 = vst [vmem:[%s177 + $0x20] sm:$0xf] %v1894
      %1927 = vst [vmem:[%s177 + $0x24] sm:$0xf] %v1895
      %1928 = vst [vmem:[%s177 + $0x28] sm:$0xf] %v1896
      %1929 = vst [vmem:[%s177 + $0x2c] sm:$0xf] %v1897
      %1930 = vst [vmem:[%s177 + $0x30] sm:$0xf] %v1898
      %1931 = vst [vmem:[%s177 + $0x34] sm:$0xf] %v1899
      %1932 = vst [vmem:[%s177 + $0x38] sm:$0xf] %v1900
      %1933 = vst [vmem:[%s177 + $0x3c] sm:$0xf] %v1901
      %1934 = vst [vmem:[%s177 + $0x40] sm:$0xf] %v1902
      %1935 = vst [vmem:[%s177 + $0x44] sm:$0xf] %v1903
      %1936 = vst [vmem:[%s177 + $0x48] sm:$0xf] %v1904
      %1937 = vst [vmem:[%s177 + $0x4c] sm:$0xf] %v1905
      %1938 = vst [vmem:[%s177 + $0x50] sm:$0xf] %v1906
      %1939 = vst [vmem:[%s177 + $0x54] sm:$0xf] %v1907
      %1940 = vst [vmem:[%s177 + $0x58] sm:$0xf] %v1908
      %1941 = vst [vmem:[%s177 + $0x5c] sm:$0xf] %v1909
      %1942 = vst [vmem:[%s177 + $0x60] sm:$0xf] %v1910
      %1943 = vst [vmem:[%s177 + $0x64] sm:$0xf] %v1911
      %1944 = vst [vmem:[%s177 + $0x68] sm:$0xf] %v1912
      %1945 = vst [vmem:[%s177 + $0x6c] sm:$0xf] %v1913
      %1946 = vst [vmem:[%s177 + $0x70] sm:$0xf] %v1914
      %1947 = vst [vmem:[%s177 + $0x74] sm:$0xf] %v1915
      %1948 = vst [vmem:[%s177 + $0x78] sm:$0xf] %v1916
      %1949 = vst [vmem:[%s177 + $0x7c] sm:$0xf] %v1917
      %v1950 = vadd.f32 %v1854, %v1855
      %v1951 = vadd.f32 %v1950, %v1856
      %v1952 = vadd.f32 %v1951, %v1857
      %v1953 = vadd.f32 %v1952, %v1858
      %v1954 = vadd.f32 %v1953, %v1859
      %v1955 = vadd.f32 %v1954, %v1860
      %v1956 = vadd.f32 %v1955, %v1861
      %v1957 = vadd.f32 %v1956, %v1862
      %v1958 = vadd.f32 %v1957, %v1863
      %v1959 = vadd.f32 %v1958, %v1864
      %v1960 = vadd.f32 %v1959, %v1865
      %v1961 = vadd.f32 %v1960, %v1866
      %v1962 = vadd.f32 %v1961, %v1867
      %v1963 = vadd.f32 %v1962, %v1868
      %v1964 = vadd.f32 %v1963, %v1869
      %v1965 = vadd.f32 %v1964, %v1870
      %v1966 = vadd.f32 %v1965, %v1871
      %v1967 = vadd.f32 %v1966, %v1872
      %v1968 = vadd.f32 %v1967, %v1873
      %v1969 = vadd.f32 %v1968, %v1874
      %v1970 = vadd.f32 %v1969, %v1875
      %v1971 = vadd.f32 %v1970, %v1876
      %v1972 = vadd.f32 %v1971, %v1877
      %v1973 = vadd.f32 %v1972, %v1878
      %v1974 = vadd.f32 %v1973, %v1879
      %v1975 = vadd.f32 %v1974, %v1880
      %v1976 = vadd.f32 %v1975, %v1881
      %v1977 = vadd.f32 %v1976, %v1882
      %v1978 = vadd.f32 %v1977, %v1883
      %v1979 = vadd.f32 %v1978, %v1884
      %v1980 = vadd.f32 %v1979, %v1885
      %v1981 = vrot.slane %v1980, 4
      %v1982 = vadd.f32 %v1980, %v1981
      %v1983 = vrot.slane %v1982, 2
      %v1984 = vadd.f32 %v1982, %v1983
      %v1985 = vrot.slane %v1984, 1
      %v1986 = vadd.f32 %v1984, %v1985
      %v1987 = vmul.f32 %v1854, %v1854
      %v1988 = vmul.f32 %v1855, %v1855
      %v1989 = vmul.f32 %v1856, %v1856
      %v1990 = vmul.f32 %v1857, %v1857
      %v1991 = vmul.f32 %v1858, %v1858
      %v1992 = vmul.f32 %v1859, %v1859
      %v1993 = vmul.f32 %v1860, %v1860
      %v1994 = vmul.f32 %v1861, %v1861
      %v1995 = vmul.f32 %v1862, %v1862
      %v1996 = vmul.f32 %v1863, %v1863
      %v1997 = vmul.f32 %v1864, %v1864
      %v1998 = vmul.f32 %v1865, %v1865
      %v1999 = vmul.f32 %v1866, %v1866
      %v2000 = vmul.f32 %v1867, %v1867
      %v2001 = vmul.f32 %v1868, %v1868
      %v2002 = vmul.f32 %v1869, %v1869
      %v2003 = vmul.f32 %v1870, %v1870
      %v2004 = vmul.f32 %v1871, %v1871
      %v2005 = vmul.f32 %v1872, %v1872
      %v2006 = vmul.f32 %v1873, %v1873
      %v2007 = vmul.f32 %v1874, %v1874
      %v2008 = vmul.f32 %v1875, %v1875
      %v2009 = vmul.f32 %v1876, %v1876
      %v2010 = vmul.f32 %v1877, %v1877
      %v2011 = vmul.f32 %v1878, %v1878
      %v2012 = vmul.f32 %v1879, %v1879
      %v2013 = vmul.f32 %v1880, %v1880
      %v2014 = vmul.f32 %v1881, %v1881
      %v2015 = vmul.f32 %v1882, %v1882
      %v2016 = vmul.f32 %v1883, %v1883
      %v2017 = vmul.f32 %v1884, %v1884
      %v2018 = vmul.f32 %v1885, %v1885
      %v2019 = vadd.f32 %v1987, %v1988
      %v2020 = vadd.f32 %v2019, %v1989
      %v2021 = vadd.f32 %v2020, %v1990
      %v2022 = vadd.f32 %v2021, %v1991
      %v2023 = vadd.f32 %v2022, %v1992
      %v2024 = vadd.f32 %v2023, %v1993
      %v2025 = vadd.f32 %v2024, %v1994
      %v2026 = vadd.f32 %v2025, %v1995
      %v2027 = vadd.f32 %v2026, %v1996
      %v2028 = vadd.f32 %v2027, %v1997
      %v2029 = vadd.f32 %v2028, %v1998
      %v2030 = vadd.f32 %v2029, %v1999
      %v2031 = vadd.f32 %v2030, %v2000
      %v2032 = vadd.f32 %v2031, %v2001
      %v2033 = vadd.f32 %v2032, %v2002
      %v2034 = vadd.f32 %v2033, %v2003
      %v2035 = vadd.f32 %v2034, %v2004
      %v2036 = vadd.f32 %v2035, %v2005
      %v2037 = vadd.f32 %v2036, %v2006
      %v2038 = vadd.f32 %v2037, %v2007
      %v2039 = vadd.f32 %v2038, %v2008
      %v2040 = vadd.f32 %v2039, %v2009
      %v2041 = vadd.f32 %v2040, %v2010
      %v2042 = vadd.f32 %v2041, %v2011
      %v2043 = vadd.f32 %v2042, %v2012
      %v2044 = vadd.f32 %v2043, %v2013
      %v2045 = vadd.f32 %v2044, %v2014
      %v2046 = vadd.f32 %v2045, %v2015
      %v2047 = vadd.f32 %v2046, %v2016
      %v2048 = vadd.f32 %v2047, %v2017
      %v2049 = vadd.f32 %v2048, %v2018
      %v2050 = vrot.slane %v2049, 4
      %v2051 = vadd.f32 %v2049, %v2050
      %v2052 = vrot.slane %v2051, 2
      %v2053 = vadd.f32 %v2051, %v2052
      %v2054 = vrot.slane %v2053, 1
      %v2055 = vadd.f32 %v2053, %v2054
      %vm2056 = vcmask 1040384
      %v2057 = vsel %vm2056, %v1986, %v2055
      %2058 = vst [vmem:[%s181] sm:$0x3] %v2057
      %p2059 = scmp.lt.s32.totalorder %s15, 1
      %s2060 = scalar_select %p2059, %s15, 1
      %s2061 = smul.addr %s2060, 32
      %s2062 = smul.addr %s2061, 4
      %s2063 = scalar_lea.vmem %s2, %s2062
      %p2064 = scmp.lt.s32.totalorder %s15, 1
      %s2065 = scalar_select %p2064, %s15, 1
      %s2066 = smul.addr %s2065, 2
      %s2067 = scalar_lea.vmem %s3, %s2066
      // Predicated region
      $region29: #{conv_block_forward.4} parent=27 // pred_check
        %p2068 = pneg %p80
      $region30: #{conv_block_forward.4} parent=27 // pred_check_branch
        %2070 = sbr.rel (%p2068) target = $region32
      $region31: #{conv_block_forward.4} parent=27 // pred_region
        _
      $region32: #{conv_block_forward.4} parent=27 // pred_fallthru
        _
      // Predicated region
      $region33: #{conv_block_forward.4} parent=27 // pred_check
        %p2071 = pneg %p106
      $region34: #{conv_block_forward.4} parent=27 // pred_check_branch
        %2073 = sbr.rel (%p2071) target = $region36
      $region35: #{conv_block_forward.4} parent=27 // pred_region
        _
      $region36: #{conv_block_forward.4} parent=27 // pred_fallthru
        _
    $region28: #{conv_block_forward.4} parent=5 // pred_fallthru
      _
    %p2074 = scmp.le.s32.totalorder 2, %s10
    // Predicated region
    $region37: #{conv_block_forward.4} parent=5 // pred_check
      %p2075 = pneg %p2074
    $region38: #{conv_block_forward.4} parent=5 // pred_check_branch
      %2077 = sbr.rel (%p2075) target = $region40
    $region39: #{conv_block_forward.4} parent=5 // pred_region
      %s2078 = ssub.s32 %s10, 2
      // Predicated region
      $region41: #{conv_block_forward.4} parent=39 // pred_check
        %p2079 = pneg %p86
      $region42: #{conv_block_forward.4} parent=39 // pred_check_branch
        %2081 = sbr.rel (%p2079) target = $region44
      $region43: #{conv_block_forward.4} parent=39 // pred_region
        %p2082 = scmp.lt.s32.totalorder %s16, 1
        %s2083 = scalar_select %p2082, %s16, 1
        %s2084 = smul.addr %s2083, 32
        %s2085 = smul.addr %s2084, 4
        %s2086 = scalar_lea.vmem %s2, %s2085
      $region44: #{conv_block_forward.4} parent=39 // pred_fallthru
        _
      // Predicated region
      $region45: #{conv_block_forward.4} parent=39 // pred_check
        %p2087 = pneg %p112
      $region46: #{conv_block_forward.4} parent=39 // pred_check_branch
        %2089 = sbr.rel (%p2087) target = $region48
      $region47: #{conv_block_forward.4} parent=39 // pred_region
        %p2090 = scmp.lt.s32.totalorder %s16, 1
        %s2091 = scalar_select %p2090, %s16, 1
        %s2092 = smul.addr %s2091, 2
        %s2093 = scalar_lea.vmem %s3, %s2092
      $region48: #{conv_block_forward.4} parent=39 // pred_fallthru
        _
    $region40: #{conv_block_forward.4} parent=5 // pred_fallthru
      _
  $region6: #{conv_block_forward.4} parent=0 // loop_footer
    %s14 = sadd.s32 1, %s10
  $region7: #{conv_block_forward.4} parent=0 // loop_footer_branch
    %9 = sbr.rel target = $region3
  $region8: #{conv_block_forward.4} parent=0 // loop_exit
    _

// kernel: conv_block_forward.6
$region0: #{conv_block_forward.6}
  #allocation0 [shape = 'u32[]', space=smem, size = 0x4, offset = 0x4, fixed_abs, tag = 'smem constant byte address 0x4 - core index']
  #allocation1 [shape = 'u32[72,128]{1,0:T(1,128)}', space=vmem, size = 0x9000, scoped, tag = 'internal scratch']
  %s0 = inlined_call_operand.vmem [shape: bf16[2,18,18,128], index: 0, kind: input, shape index: {}]
  %s1 = inlined_call_operand.vmem [shape: bf16[9,128,128], index: 1, kind: input, shape index: {}]
  %s2 = inlined_call_operand.vmem [shape: bf16[2,16,16,128], index: 2, kind: output, shape index: {0}]
  %s3 = inlined_call_operand.vmem [shape: f32[2,2,128], index: 3, kind: output, shape index: {1}]
  %4 = xla_tuple %s2, %s3
  %s5 = sld [smem:[#allocation0]]
  $region49: #{conv_block_forward.6} parent=0
    _
  %s7 = ssub.s32 1, %s5
  %s8 = scalar_select 0, %s7, %s5
  loop: start=0, step=1, limit=4
  $region2: #{conv_block_forward.6} parent=0 // loop_pre_header
    _
  $region3: #{conv_block_forward.6} parent=0 // loop_header
    %s10 = sphi 0, %s14
    %p11 = scmp.ge.s32.totalorder %s10, 4
    %s20 = sphi 0, %s22
    %s23 = sphi 0, %s20
    %s24 = sphi 0, %s23
    %s40 = sphi 0, %s24
    %s44 = sphi 0, %s44
    %s46 = sphi 0, %s44
    %s47 = sphi 0, %s46
    %s61 = sphi 0, %s47
    %s67 = sphi 0, %s69
    %s70 = sphi 0, %s67
    %s71 = sphi 0, %s70
    %s87 = sphi 0, %s71
    %s93 = sphi 0, %s95
    %s96 = sphi 0, %s93
    %s97 = sphi 0, %s96
    %s113 = sphi 0, %s97
  $region4: #{conv_block_forward.6} parent=0 // loop_header_branch
    %13 = sbr.rel (%p11) target = $region8
  $region5: #{conv_block_forward.6} parent=0 // loop_body
    %s15 = ssub.s32 %s10, 1
    %s16 = ssub.s32 %s10, 2
    %s17 = sadd.s32 %s10, 1
    %s18 = ssub.s32 %s10, %s17
    %p19 = scmp.eq.s32.totalorder %s18, 0
    %s21 = sadd.s32 %s20, 1
    %s22 = scalar_select %p19, %s20, %s21
    %p25 = pneg %p19
    %p26 = scmp.eq.s32.totalorder %s10, 1
    %p27 = por %p25, %p26
    %p28 = scmp.ne.s32.totalorder %s20, %s23
    %p29 = scmp.eq.s32.totalorder %s10, 0
    %p30 = por %p28, %p29
    %p31 = scmp.ne.s32.totalorder %s20, %s23
    %p32 = scmp.eq.s32.totalorder %s15, 1
    %p33 = por %p31, %p32
    %p34 = scmp.ne.s32.totalorder %s23, %s24
    %p35 = scmp.eq.s32.totalorder %s15, 0
    %p36 = por %p34, %p35
    %p37 = scmp.ne.s32.totalorder %s23, %s24
    %p38 = scmp.eq.s32.totalorder %s16, 1
    %p39 = por %p37, %p38
    %p41 = scmp.ne.s32.totalorder %s24, %s40
    %p42 = scmp.eq.s32.totalorder %s16, 0
    %p43 = por %p41, %p42
    %s45 = sadd.s32 %s44, 1
    %p48 = scmp.eq.s32.totalorder %s10, 1
    %p49 = scmp.ne.s32.totalorder %s44, %s46
    %p50 = scmp.eq.s32.totalorder %s10, 0
    %p51 = por %p49, %p50
    %p52 = scmp.ne.s32.totalorder %s44, %s46
    %p53 = scmp.eq.s32.totalorder %s15, 1
    %p54 = por %p52, %p53
    %p55 = scmp.ne.s32.totalorder %s46, %s47
    %p56 = scmp.eq.s32.totalorder %s15, 0
    %p57 = por %p55, %p56
    %p58 = scmp.ne.s32.totalorder %s46, %s47
    %p59 = scmp.eq.s32.totalorder %s16, 1
    %p60 = por %p58, %p59
    %p62 = scmp.ne.s32.totalorder %s47, %s61
    %p63 = scmp.eq.s32.totalorder %s16, 0
    %p64 = por %p62, %p63
    %s65 = ssub.s32 %s10, %s17
    %p66 = scmp.eq.s32.totalorder %s65, 0
    %s68 = sadd.s32 %s67, 1
    %s69 = scalar_select %p66, %s67, %s68
    %p72 = pneg %p66
    %p73 = scmp.eq.s32.totalorder %s10, 1
    %p74 = por %p72, %p73
    %p75 = scmp.ne.s32.totalorder %s67, %s70
    %p76 = scmp.eq.s32.totalorder %s10, 0
    %p77 = por %p75, %p76
    %p78 = scmp.ne.s32.totalorder %s67, %s70
    %p79 = scmp.eq.s32.totalorder %s15, 1
    %p80 = por %p78, %p79
    %p81 = scmp.ne.s32.totalorder %s70, %s71
    %p82 = scmp.eq.s32.totalorder %s15, 0
    %p83 = por %p81, %p82
    %p84 = scmp.ne.s32.totalorder %s70, %s71
    %p85 = scmp.eq.s32.totalorder %s16, 1
    %p86 = por %p84, %p85
    %p88 = scmp.ne.s32.totalorder %s71, %s87
    %p89 = scmp.eq.s32.totalorder %s16, 0
    %p90 = por %p88, %p89
    %s91 = ssub.s32 %s10, %s17
    %p92 = scmp.eq.s32.totalorder %s91, 0
    %s94 = sadd.s32 %s93, 1
    %s95 = scalar_select %p92, %s93, %s94
    %p98 = pneg %p92
    %p99 = scmp.eq.s32.totalorder %s10, 1
    %p100 = por %p98, %p99
    %p101 = scmp.ne.s32.totalorder %s93, %s96
    %p102 = scmp.eq.s32.totalorder %s10, 0
    %p103 = por %p101, %p102
    %p104 = scmp.ne.s32.totalorder %s93, %s96
    %p105 = scmp.eq.s32.totalorder %s15, 1
    %p106 = por %p104, %p105
    %p107 = scmp.ne.s32.totalorder %s96, %s97
    %p108 = scmp.eq.s32.totalorder %s15, 0
    %p109 = por %p107, %p108
    %p110 = scmp.ne.s32.totalorder %s96, %s97
    %p111 = scmp.eq.s32.totalorder %s16, 1
    %p112 = por %p110, %p111
    %p114 = scmp.ne.s32.totalorder %s97, %s113
    %p115 = scmp.eq.s32.totalorder %s16, 0
    %p116 = por %p114, %p115
    %p117 = scmp.le.s32.totalorder 1, %s10
    %p118 = scmp.lt.s32.totalorder %s10, 3
    %p119 = pnand %p117, %p118
    %p120 = pneg %p119
    // Predicated region
    $region9: #{conv_block_forward.6} parent=5 // pred_check
      _
    $region10: #{conv_block_forward.6} parent=5 // pred_check_branch
      %122 = sbr.rel (%p119) target = $region12
    $region11: #{conv_block_forward.6} parent=5 // pred_region
      %s123 = ssub.s32 %s10, 1
      // Predicated region
      $region13: #{conv_block_forward.6} parent=11 // pred_check
        %p124 = pneg %p57
      $region14: #{conv_block_forward.6} parent=11 // pred_check_branch
        %126 = sbr.rel (%p124) target = $region16
      $region15: #{conv_block_forward.6} parent=11 // pred_region
        _
      $region16: #{conv_block_forward.6} parent=11 // pred_fallthru
        _
    $region12: #{conv_block_forward.6} parent=5 // pred_fallthru
      _
    %p127 = scmp.lt.s32.totalorder %s10, 2
    // Predicated region
    $region17: #{conv_block_forward.6} parent=5 // pred_check
      %p128 = pneg %p127
    $region18: #{conv_block_forward.6} parent=5 // pred_check_branch
      %130 = sbr.rel (%p128) target = $region20
    $region19: #{conv_block_forward.6} parent=5 // pred_region
      // Predicated region
      $region21: #{conv_block_forward.6} parent=19 // pred_check
        %p131 = pneg %p30
      $region22: #{conv_block_forward.6} parent=19 // pred_check_branch
        %133 = sbr.rel (%p131) target = $region24
      $region23: #{conv_block_forward.6} parent=19 // pred_region
        %p134 = scmp.lt.s32.totalorder %s10, 1
        %s135 = scalar_select %p134, %s10, 1
        %s136 = smul.addr %s135, 54
        %s137 = smul.addr %s136, 4
        %s138 = scalar_lea.vmem %s0, %s137
      $region24: #{conv_block_forward.6} parent=19 // pred_fallthru
        _
    $region20: #{conv_block_forward.6} parent=5 // pred_fallthru
      _
    %p139 = scmp.le.s32.totalorder 1, %s10
    %p140 = scmp.lt.s32.totalorder %s10, 3
    %p141 = pnand %p139, %p140
    %p142 = pneg %p141
    // Predicated region
    $region25: #{conv_block_forward.6} parent=5 // pred_check
      _
    $region26: #{conv_block_forward.6} parent=5 // pred_check_branch
      %144 = sbr.rel (%p141) target = $region28
    $region27: #{conv_block_forward.6} parent=5 // pred_region
      %s145 = ssub.s32 %s10, 1
      %p146 = scmp.lt.s32.totalorder %s15, 1
      %s147 = scalar_select %p146, %s15, 1
      %s148 = smul.addr %s147, 54
      %s149 = smul.addr %s148, 4
      %s150 = scalar_lea.vmem %s0, %s149
      %p151 = pneg %p36
      %p152 = pneg %p33
      %p153 = pneg %p57
      %p154 = pneg %p54
      %p155 = pneg %p83
      %p156 = pneg %p80
      %p157 = scmp.lt.s32.totalorder %s15, 1
      %s158 = scalar_select %p157, %s15, 1
      %s159 = smul.addr %s158, 32
      %s160 = smul.addr %s159, 4
      %s161 = scalar_lea.vmem %s2, %s160
      %p162 = pneg %p109
      %p163 = pneg %p106
      %p164 = scmp.lt.s32.totalorder %s15, 1
      %s165 = scalar_select %p164, %s15, 1
      %s166 = smul.addr %s165, 2
      %s167 = scalar_lea.vmem %s3, %s166
      %p168 = scmp.lt.s32.totalorder %s15, 1
      %s169 = scalar_select %p168, %s15, 1
      %s170 = smul.addr %s169, 54
      %s171 = smul.addr %s170, 4
      %s172 = scalar_lea.vmem %s0, %s171
      %p173 = scmp.lt.s32.totalorder %s15, 1
      %s174 = scalar_select %p173, %s15, 1
      %s175 = smul.addr %s174, 32
      %s176 = smul.addr %s175, 4
      %s177 = scalar_lea.vmem %s2, %s176
      %p178 = scmp.lt.s32.totalorder %s15, 1
      %s179 = scalar_select %p178, %s15, 1
      %s180 = smul.addr %s179, 2
      %s181 = scalar_lea.vmem %s3, %s180
      %v182 = vld [vmem:[%s172] sm:$0xf]
      %v183 = vld [vmem:[%s172 + $0x4] sm:$0xf]
      %v184 = vld [vmem:[%s172 + $0x8] sm:$0x1]
      %v185 = vld [vmem:[%s172 + $0xc] sm:$0xf]
      %v186 = vld [vmem:[%s172 + $0x10] sm:$0xf]
      %v187 = vld [vmem:[%s172 + $0x14] sm:$0x1]
      %v188 = vld [vmem:[%s172 + $0x18] sm:$0xf]
      %v189 = vld [vmem:[%s172 + $0x1c] sm:$0xf]
      %v190 = vld [vmem:[%s172 + $0x20] sm:$0x1]
      %v191 = vld [vmem:[%s172 + $0x24] sm:$0xf]
      %v192 = vld [vmem:[%s172 + $0x28] sm:$0xf]
      %v193 = vld [vmem:[%s172 + $0x2c] sm:$0x1]
      %v194 = vld [vmem:[%s172 + $0x30] sm:$0xf]
      %v195 = vld [vmem:[%s172 + $0x34] sm:$0xf]
      %v196 = vld [vmem:[%s172 + $0x38] sm:$0x1]
      %v197 = vld [vmem:[%s172 + $0x3c] sm:$0xf]
      %v198 = vld [vmem:[%s172 + $0x40] sm:$0xf]
      %v199 = vld [vmem:[%s172 + $0x44] sm:$0x1]
      %v200 = vld [vmem:[%s172 + $0x48] sm:$0xf]
      %v201 = vld [vmem:[%s172 + $0x4c] sm:$0xf]
      %v202 = vld [vmem:[%s172 + $0x50] sm:$0x1]
      %v203 = vld [vmem:[%s172 + $0x54] sm:$0xf]
      %v204 = vld [vmem:[%s172 + $0x58] sm:$0xf]
      %v205 = vld [vmem:[%s172 + $0x5c] sm:$0x1]
      %v206 = vld [vmem:[%s172 + $0x60] sm:$0xf]
      %v207 = vld [vmem:[%s172 + $0x64] sm:$0xf]
      %v208 = vld [vmem:[%s172 + $0x68] sm:$0x1]
      %v209 = vld [vmem:[%s172 + $0x6c] sm:$0xf]
      %v210 = vld [vmem:[%s172 + $0x70] sm:$0xf]
      %v211 = vld [vmem:[%s172 + $0x74] sm:$0x1]
      %v212 = vld [vmem:[%s172 + $0x78] sm:$0xf]
      %v213 = vld [vmem:[%s172 + $0x7c] sm:$0xf]
      %v214 = vld [vmem:[%s172 + $0x80] sm:$0x1]
      %v215 = vld [vmem:[%s172 + $0x84] sm:$0xf]
      %v216 = vld [vmem:[%s172 + $0x88] sm:$0xf]
      %v217 = vld [vmem:[%s172 + $0x8c] sm:$0x1]
      %v218 = vld [vmem:[%s172 + $0x90] sm:$0xf]
      %v219 = vld [vmem:[%s172 + $0x94] sm:$0xf]
      %v220 = vld [vmem:[%s172 + $0x98] sm:$0x1]
      %v221 = vld [vmem:[%s172 + $0x9c] sm:$0xf]
      %v222 = vld [vmem:[%s172 + $0xa0] sm:$0xf]
      %v223 = vld [vmem:[%s172 + $0xa4] sm:$0x1]
      %v224 = vld [vmem:[%s172 + $0xa8] sm:$0xf]
      %v225 = vld [vmem:[%s172 + $0xac] sm:$0xf]
      %v226 = vld [vmem:[%s172 + $0xb0] sm:$0x1]
      %v227 = vld [vmem:[%s172 + $0xb4] sm:$0xf]
      %v228 = vld [vmem:[%s172 + $0xb8] sm:$0xf]
      %v229 = vld [vmem:[%s172 + $0xbc] sm:$0x1]
      %v230 = vld [vmem:[%s172 + $0xc0] sm:$0xf]
      %v231 = vld [vmem:[%s172 + $0xc4] sm:$0xf]
      %v232 = vld [vmem:[%s172 + $0xc8] sm:$0x1]
      %v233 = vld [vmem:[%s172 + $0xcc] sm:$0xf]
      %v234 = vld [vmem:[%s172 + $0xd0] sm:$0xf]
      %v235 = vld [vmem:[%s172 + $0xd4] sm:$0x1]
      %v236 = vunpack.c.l.bf16 %v182
      %v237 = vunpack.c.l.bf16 %v183
      %v238 = vunpack.c.l.bf16 %v184
      %v239 = vunpack.c.l.bf16 %v185
      %v240 = vunpack.c.l.bf16 %v186
      %v241 = vunpack.c.l.bf16 %v187
      %v242 = vunpack.c.l.bf16 %v188
      %v243 = vunpack.c.l.bf16 %v189
      %v244 = vunpack.c.l.bf16 %v190
      %v245 = vunpack.c.l.bf16 %v191
      %v246 = vunpack.c.l.bf16 %v192
      %v247 = vunpack.c.l.bf16 %v193
      %v248 = vunpack.c.l.bf16 %v194
      %v249 = vunpack.c.l.bf16 %v195
      %v250 = vunpack.c.l.bf16 %v196
      %v251 = vunpack.c.l.bf16 %v197
      %v252 = vunpack.c.l.bf16 %v198
      %v253 = vunpack.c.l.bf16 %v199
      %v254 = vunpack.c.l.bf16 %v200
      %v255 = vunpack.c.l.bf16 %v201
      %v256 = vunpack.c.l.bf16 %v202
      %v257 = vunpack.c.l.bf16 %v203
      %v258 = vunpack.c.l.bf16 %v204
      %v259 = vunpack.c.l.bf16 %v205
      %v260 = vunpack.c.l.bf16 %v206
      %v261 = vunpack.c.l.bf16 %v207
      %v262 = vunpack.c.l.bf16 %v208
      %v263 = vunpack.c.l.bf16 %v209
      %v264 = vunpack.c.l.bf16 %v210
      %v265 = vunpack.c.l.bf16 %v211
      %v266 = vunpack.c.l.bf16 %v212
      %v267 = vunpack.c.l.bf16 %v213
      %v268 = vunpack.c.l.bf16 %v214
      %v269 = vunpack.c.l.bf16 %v215
      %v270 = vunpack.c.l.bf16 %v216
      %v271 = vunpack.c.l.bf16 %v217
      %v272 = vunpack.c.l.bf16 %v218
      %v273 = vunpack.c.l.bf16 %v219
      %v274 = vunpack.c.l.bf16 %v220
      %v275 = vunpack.c.l.bf16 %v221
      %v276 = vunpack.c.l.bf16 %v222
      %v277 = vunpack.c.l.bf16 %v223
      %v278 = vunpack.c.l.bf16 %v224
      %v279 = vunpack.c.l.bf16 %v225
      %v280 = vunpack.c.l.bf16 %v226
      %v281 = vunpack.c.l.bf16 %v227
      %v282 = vunpack.c.l.bf16 %v228
      %v283 = vunpack.c.l.bf16 %v229
      %v284 = vunpack.c.l.bf16 %v230
      %v285 = vunpack.c.l.bf16 %v231
      %v286 = vunpack.c.l.bf16 %v232
      %v287 = vunpack.c.l.bf16 %v233
      %v288 = vunpack.c.l.bf16 %v234
      %v289 = vunpack.c.l.bf16 %v235
      %v290 = vpack.c.bf16 %v237, %v236
      %v291 = vpack.c.bf16 %v240, %v239
      %v292 = vpack.c.bf16 %v243, %v242
      %v293 = vpack.c.bf16 %v246, %v245
      %v294 = vpack.c.bf16 %v249, %v248
      %v295 = vpack.c.bf16 %v252, %v251
      %v296 = vpack.c.bf16 %v255, %v254
      %v297 = vpack.c.bf16 %v258, %v257
      %v298 = vpack.c.bf16 %v261, %v260
      %v299 = vpack.c.bf16 %v264, %v263
      %v300 = vpack.c.bf16 %v267, %v266
      %v301 = vpack.c.bf16 %v270, %v269
      %v302 = vpack.c.bf16 %v273, %v272
      %v303 = vpack.c.bf16 %v276, %v275
      %v304 = vpack.c.bf16 %v279, %v278
      %v305 = vpack.c.bf16 %v282, %v281
      %v306 = vld [vmem:[%s1] sm:$0xf]
      %v307 = vld [vmem:[%s1 + $0x4] sm:$0xf]
      %v308 = vld [vmem:[%s1 + $0x8] sm:$0xf]
      %v309 = vld [vmem:[%s1 + $0xc] sm:$0xf]
      %v310 = vld [vmem:[%s1 + $0x10] sm:$0xf]
      %v311 = vld [vmem:[%s1 + $0x14] sm:$0xf]
      %v312 = vld [vmem:[%s1 + $0x18] sm:$0xf]
      %v313 = vld [vmem:[%s1 + $0x1c] sm:$0xf]
      %v314 = vld [vmem:[%s1 + $0x20] sm:$0xf]
      %v315 = vld [vmem:[%s1 + $0x24] sm:$0xf]
      %v316 = vld [vmem:[%s1 + $0x28] sm:$0xf]
      %v317 = vld [vmem:[%s1 + $0x2c] sm:$0xf]
      %v318 = vld [vmem:[%s1 + $0x30] sm:$0xf]
      %v319 = vld [vmem:[%s1 + $0x34] sm:$0xf]
      %v320 = vld [vmem:[%s1 + $0x38] sm:$0xf]
      %v321 = vld [vmem:[%s1 + $0x3c] sm:$0xf]
      %vm370 = vcmask 1046528
      %v371 = vrot.slane %v236, 1
      %v372 = vrot.slane %v237, 1
      %v373 = vsel %vm370, %v371, %v372
      %v374 = vrot.slane %v238, 1
      %v375 = vsel %vm370, %v372, %v374
      %v376 = vrot.slane %v239, 1
      %v377 = vrot.slane %v240, 1
      %v378 = vsel %vm370, %v376, %v377
      %v379 = vrot.slane %v241, 1
      %v380 = vsel %vm370, %v377, %v379
      %v381 = vrot.slane %v242, 1
      %v382 = vrot.slane %v243, 1
      %v383 = vsel %vm370, %v381, %v382
      %v384 = vrot.slane %v244, 1
      %v385 = vsel %vm370, %v382, %v384
      %v386 = vrot.slane %v245, 1
      %v387 = vrot.slane %v246, 1
      %v388 = vsel %vm370, %v386, %v387
      %v389 = vrot.slane %v247, 1
      %v390 = vsel %vm370, %v387, %v389
      %v391 = vrot.slane %v248, 1
      %v392 = vrot.slane %v249, 1
      %v393 = vsel %vm370, %v391, %v392
      %v394 = vrot.slane %v250, 1
      %v395 = vsel %vm370, %v392, %v394
      %v396 = vrot.slane %v251, 1
      %v397 = vrot.slane %v252, 1
      %v398 = vsel %vm370, %v396, %v397
      %v399 = vrot.slane %v253, 1
      %v400 = vsel %vm370, %v397, %v399
      %v401 = vrot.slane %v254, 1
      %v402 = vrot.slane %v255, 1
      %v403 = vsel %vm370, %v401, %v402
      %v404 = vrot.slane %v256, 1
      %v405 = vsel %vm370, %v402, %v404
      %v406 = vrot.slane %v257, 1
      %v407 = vrot.slane %v258, 1
      %v408 = vsel %vm370, %v406, %v407
      %v409 = vrot.slane %v259, 1
      %v410 = vsel %vm370, %v407, %v409
      %v411 = vrot.slane %v260, 1
      %v412 = vrot.slane %v261, 1
      %v413 = vsel %vm370, %v411, %v412
      %v414 = vrot.slane %v262, 1
      %v415 = vsel %vm370, %v412, %v414
      %v416 = vrot.slane %v263, 1
      %v417 = vrot.slane %v264, 1
      %v418 = vsel %vm370, %v416, %v417
      %v419 = vrot.slane %v265, 1
      %v420 = vsel %vm370, %v417, %v419
      %v421 = vrot.slane %v266, 1
      %v422 = vrot.slane %v267, 1
      %v423 = vsel %vm370, %v421, %v422
      %v424 = vrot.slane %v268, 1
      %v425 = vsel %vm370, %v422, %v424
      %v426 = vrot.slane %v269, 1
      %v427 = vrot.slane %v270, 1
      %v428 = vsel %vm370, %v426, %v427
      %v429 = vrot.slane %v271, 1
      %v430 = vsel %vm370, %v427, %v429
      %v431 = vrot.slane %v272, 1
      %v432 = vrot.slane %v273, 1
      %v433 = vsel %vm370, %v431, %v432
      %v434 = vrot.slane %v274, 1
      %v435 = vsel %vm370, %v432, %v434
      %v436 = vrot.slane %v275, 1
      %v437 = vrot.slane %v276, 1
      %v438 = vsel %vm370, %v436, %v437
      %v439 = vrot.slane %v277, 1
      %v440 = vsel %vm370, %v437, %v439
      %v441 = vrot.slane %v278, 1
      %v442 = vrot.slane %v279, 1
      %v443 = vsel %vm370, %v441, %v442
      %v444 = vrot.slane %v280, 1
      %v445 = vsel %vm370, %v442, %v444
      %v446 = vrot.slane %v281, 1
      %v447 = vrot.slane %v282, 1
      %v448 = vsel %vm370, %v446, %v447
      %v449 = vrot.slane %v283, 1
      %v450 = vsel %vm370, %v447, %v449
      %v483 = vpack.c.bf16 %v375, %v373
      %v484 = vpack.c.bf16 %v380, %v378
      %v485 = vpack.c.bf16 %v385, %v383
      %v486 = vpack.c.bf16 %v390, %v388
      %v487 = vpack.c.bf16 %v395, %v393
      %v488 = vpack.c.bf16 %v400, %v398
      %v489 = vpack.c.bf16 %v405, %v403
      %v490 = vpack.c.bf16 %v410, %v408
      %v491 = vpack.c.bf16 %v415, %v413
      %v492 = vpack.c.bf16 %v420, %v418
      %v493 = vpack.c.bf16 %v425, %v423
      %v494 = vpack.c.bf16 %v430, %v428
      %v495 = vpack.c.bf16 %v435, %v433
      %v496 = vpack.c.bf16 %v440, %v438
      %v497 = vpack.c.bf16 %v445, %v443
      %v498 = vpack.c.bf16 %v450, %v448
      %s499 = scalar_lea.vmem %s1, 64
      %v500 = vld [vmem:[%s499] sm:$0xf]
      %v501 = vld [vmem:[%s499 + $0x4] sm:$0xf]
      %v502 = vld [vmem:[%s499 + $0x8] sm:$0xf]
      %v503 = vld [vmem:[%s499 + $0xc] sm:$0xf]
      %v504 = vld [vmem:[%s499 + $0x10] sm:$0xf]
      %v505 = vld [vmem:[%s499 + $0x14] sm:$0xf]
      %v506 = vld [vmem:[%s499 + $0x18] sm:$0xf]
      %v507 = vld [vmem:[%s499 + $0x1c] sm:$0xf]
      %v508 = vld [vmem:[%s499 + $0x20] sm:$0xf]
      %v509 = vld [vmem:[%s499 + $0x24] sm:$0xf]
      %v510 = vld [vmem:[%s499 + $0x28] sm:$0xf]
      %v511 = vld [vmem:[%s499 + $0x2c] sm:$0xf]
      %v512 = vld [vmem:[%s499 + $0x30] sm:$0xf]
      %v513 = vld [vmem:[%s499 + $0x34] sm:$0xf]
      %v514 = vld [vmem:[%s499 + $0x38] sm:$0xf]
      %v515 = vld [vmem:[%s499 + $0x3c] sm:$0xf]
      %v532 = vunpack.c.l.b16 %v500
      %v533 = vunpack.c.l.b16 %v501
      %v534 = vunpack.c.l.b16 %v502
      %v535 = vunpack.c.l.b16 %v503
      %v536 = vunpack.c.l.b16 %v504
      %v537 = vunpack.c.l.b16 %v505
      %v538 = vunpack.c.l.b16 %v506
      %v539 = vunpack.c.l.b16 %v507
      %v540 = vunpack.c.l.b16 %v508
      %v541 = vunpack.c.l.b16 %v509
      %v542 = vunpack.c.l.b16 %v510
      %v543 = vunpack.c.l.b16 %v511
      %v544 = vunpack.c.l.b16 %v512
      %v545 = vunpack.c.l.b16 %v513
      %v546 = vunpack.c.l.b16 %v514
      %v547 = vunpack.c.l.b16 %v515
      %v548 = vpack.c.b16 %v533, %v532
      %v549 = vpack.c.b16 %v535, %v534
      %v550 = vpack.c.b16 %v537, %v536
      %v551 = vpack.c.b16 %v539, %v538
      %v552 = vpack.c.b16 %v541, %v540
      %v553 = vpack.c.b16 %v543, %v542
      %v554 = vpack.c.b16 %v545, %v544
      %v555 = vpack.c.b16 %v547, %v546
      %564 = vmatpush.bf16.msra.mxu0 %v555
      %565 = vmatpush.bf16.msra.mxu0 %v554
      %566 = vmatpush.bf16.msra.mxu0 %v553
      %567 = vmatpush.bf16.msra.mxu0 %v552
      %568 = vmatpush.bf16.msra.mxu0 %v551
      %569 = vmatpush.bf16.msra.mxu0 %v550
      %570 = vmatpush.bf16.msra.mxu0 %v549
      %571 = vmatpush.bf16.msra.mxu0 %v548
      %572 = vmatmul.bf16.gmra.mxu0 %v483
      %v573 = vpop.f32.mrf.mxu0
      %v574 = vadd.f32 0.0, %v573
      %v575 = vpop.f32.mrf.mxu0
      %v576 = vadd.f32 0.0, %v575
      %577 = vmatmul.bf16.gmra.mxu0 %v484
      %v578 = vpop.f32.mrf.mxu0
      %v579 = vadd.f32 0.0, %v578
      %v580 = vpop.f32.mrf.mxu0
      %v581 = vadd.f32 0.0, %v580
      %582 = vmatmul.bf16.gmra.mxu0 %v485
      %v583 = vpop.f32.mrf.mxu0
      %v584 = vadd.f32 0.0, %v583
      %v585 = vpop.f32.mrf.mxu0
      %v586 = vadd.f32 0.0, %v585
      %587 = vmatmul.bf16.gmra.mxu0 %v486
      %v588 = vpop.f32.mrf.mxu0
      %v589 = vadd.f32 0.0, %v588
      %v590 = vpop.f32.mrf.mxu0
      %v591 = vadd.f32 0.0, %v590
      %592 = vmatmul.bf16.gmra.mxu0 %v487
      %v593 = vpop.f32.mrf.mxu0
      %v594 = vadd.f32 0.0, %v593
      %v595 = vpop.f32.mrf.mxu0
      %v596 = vadd.f32 0.0, %v595
      %597 = vmatmul.bf16.gmra.mxu0 %v488
      %v598 = vpop.f32.mrf.mxu0
      %v599 = vadd.f32 0.0, %v598
      %v600 = vpop.f32.mrf.mxu0
      %v601 = vadd.f32 0.0, %v600
      %602 = vmatmul.bf16.gmra.mxu0 %v489
      %v603 = vpop.f32.mrf.mxu0
      %v604 = vadd.f32 0.0, %v603
      %v605 = vpop.f32.mrf.mxu0
      %v606 = vadd.f32 0.0, %v605
      %607 = vmatmul.bf16.gmra.mxu0 %v490
      %v608 = vpop.f32.mrf.mxu0
      %v609 = vadd.f32 0.0, %v608
      %v610 = vpop.f32.mrf.mxu0
      %v611 = vadd.f32 0.0, %v610
      %612 = vmatmul.bf16.gmra.mxu0 %v491
      %v613 = vpop.f32.mrf.mxu0
      %v614 = vadd.f32 0.0, %v613
      %v615 = vpop.f32.mrf.mxu0
      %v616 = vadd.f32 0.0, %v615
      %617 = vmatmul.bf16.gmra.mxu0 %v492
      %v618 = vpop.f32.mrf.mxu0
      %v619 = vadd.f32 0.0, %v618
      %v620 = vpop.f32.mrf.mxu0
      %v621 = vadd.f32 0.0, %v620
      %622 = vmatmul.bf16.gmra.mxu0 %v493
      %v623 = vpop.f32.mrf.mxu0
      %v624 = vadd.f32 0.0, %v623
      %v625 = vpop.f32.mrf.mxu0
      %v626 = vadd.f32 0.0, %v625
      %627 = vmatmul.bf16.gmra.mxu0 %v494
      %v628 = vpop.f32.mrf.mxu0
      %v629 = vadd.f32 0.0, %v628
      %v630 = vpop.f32.mrf.mxu0
      %v631 = vadd.f32 0.0, %v630
      %632 = vmatmul.bf16.gmra.mxu0 %v495
      %v633 = vpop.f32.mrf.mxu0
      %v634 = vadd.f32 0.0, %v633
      %v635 = vpop.f32.mrf.mxu0
      %v636 = vadd.f32 0.0, %v635
      %637 = vmatmul.bf16.gmra.mxu0 %v496
      %v638 = vpop.f32.mrf.mxu0
      %v639 = vadd.f32 0.0, %v638
      %v640 = vpop.f32.mrf.mxu0
      %v641 = vadd.f32 0.0, %v640
      %642 = vmatmul.bf16.gmra.mxu0 %v497
      %v643 = vpop.f32.mrf.mxu0
      %v644 = vadd.f32 0.0, %v643
      %v645 = vpop.f32.mrf.mxu0
      %v646 = vadd.f32 0.0, %v645
      %647 = vmatmul.bf16.gmra.mxu0 %v498
      %v648 = vpop.f32.mrf.mxu0
      %v649 = vadd.f32 0.0, %v648
      %v650 = vpop.f32.mrf.mxu0
      %v651 = vadd.f32 0.0, %v650
      %652 = vdwg.mxu0
      %v669 = vunpack.c.l.b16 %v306
      %v670 = vunpack.c.l.b16 %v307
      %v671 = vunpack.c.l.b16 %v308
      %v672 = vunpack.c.l.b16 %v309
      %v673 = vunpack.c.l.b16 %v310
      %v674 = vunpack.c.l.b16 %v311
      %v675 = vunpack.c.l.b16 %v312
      %v676 = vunpack.c.l.b16 %v313
      %v677 = vunpack.c.l.b16 %v314
      %v678 = vunpack.c.l.b16 %v315
      %v679 = vunpack.c.l.b16 %v316
      %v680 = vunpack.c.l.b16 %v317
      %v681 = vunpack.c.l.b16 %v318
      %v682 = vunpack.c.l.b16 %v319
      %v683 = vunpack.c.l.b16 %v320
      %v684 = vunpack.c.l.b16 %v321
      %v685 = vpack.c.b16 %v670, %v669
      %v686 = vpack.c.b16 %v672, %v671
      %v687 = vpack.c.b16 %v674, %v673
      %v688 = vpack.c.b16 %v676, %v675
      %v689 = vpack.c.b16 %v678, %v677
      %v690 = vpack.c.b16 %v680, %v679
      %v691 = vpack.c.b16 %v682, %v681
      %v692 = vpack.c.b16 %v684, %v683
      %701 = vmatpush.bf16.msra.mxu0 %v692
      %702 = vmatpush.bf16.msra.mxu0 %v691
      %703 = vmatpush.bf16.msra.mxu0 %v690
      %704 = vmatpush.bf16.msra.mxu0 %v689
      %705 = vmatpush.bf16.msra.mxu0 %v688
      %706 = vmatpush.bf16.msra.mxu0 %v687
      %707 = vmatpush.bf16.msra.mxu0 %v686
      %708 = vmatpush.bf16.msra.mxu0 %v685
      %709 = vmatmul.bf16.gmra.mxu0 %v290
      %v710 = vpop.f32.mrf.mxu0
      %v711 = vadd.f32 %v574, %v710
      %v712 = vpop.f32.mrf.mxu0
      %v713 = vadd.f32 %v576, %v712
      %714 = vmatmul.bf16.gmra.mxu0 %v291
      %v715 = vpop.f32.mrf.mxu0
      %v716 = vadd.f32 %v579, %v715
      %v717 = vpop.f32.mrf.mxu0
      %v718 = vadd.f32 %v581, %v717
      %719 = vmatmul.bf16.gmra.mxu0 %v292
      %v720 = vpop.f32.mrf.mxu0
      %v721 = vadd.f32 %v584, %v720
      %v722 = vpop.f32.mrf.mxu0
      %v723 = vadd.f32 %v586, %v722
      %724 = vmatmul.bf16.gmra.mxu0 %v293
      %v725 = vpop.f32.mrf.mxu0
      %v726 = vadd.f32 %v589, %v725
      %v727 = vpop.f32.mrf.mxu0
      %v728 = vadd.f32 %v591, %v727
      %729 = vmatmul.bf16.gmra.mxu0 %v294
      %v730 = vpop.f32.mrf.mxu0
      %v731 = vadd.f32 %v594, %v730
      %v732 = vpop.f32.mrf.mxu0
      %v733 = vadd.f32 %v596, %v732
      %734 = vmatmul.bf16.gmra.mxu0 %v295
      %v735 = vpop.f32.mrf.mxu0
      %v736 = vadd.f32 %v599, %v735
      %v737 = vpop.f32.mrf.mxu0
      %v738 = vadd.f32 %v601, %v737
      %739 = vmatmul.bf16.gmra.mxu0 %v296
      %v740 = vpop.f32.mrf.mxu0
      %v741 = vadd.f32 %v604, %v740
      %v742 = vpop.f32.mrf.mxu0
      %v743 = vadd.f32 %v606, %v742
      %744 = vmatmul.bf16.gmra.mxu0 %v297
      %v745 = vpop.f32.mrf.mxu0
      %v746 = vadd.f32 %v609, %v745
      %v747 = vpop.f32.mrf.mxu0
      %v748 = vadd.f32 %v611, %v747
      %749 = vmatmul.bf16.gmra.mxu0 %v298
      %v750 = vpop.f32.mrf.mxu0
      %v751 = vadd.f32 %v614, %v750
      %v752 = vpop.f32.mrf.mxu0
      %v753 = vadd.f32 %v616, %v752
      %754 = vmatmul.bf16.gmra.mxu0 %v299
      %v755 = vpop.f32.mrf.mxu0
      %v756 = vadd.f32 %v619, %v755
      %v757 = vpop.f32.mrf.mxu0
      %v758 = vadd.f32 %v621, %v757
      %759 = vmatmul.bf16.gmra.mxu0 %v300
      %v760 = vpop.f32.mrf.mxu0
      %v761 = vadd.f32 %v624, %v760
      %v762 = vpop.f32.mrf.mxu0
      %v763 = vadd.f32 %v626, %v762
      %764 = vmatmul.bf16.gmra.mxu0 %v301
      %v765 = vpop.f32.mrf.mxu0
      %v766 = vadd.f32 %v629, %v765
      %v767 = vpop.f32.mrf.mxu0
      %v768 = vadd.f32 %v631, %v767
      %769 = vmatmul.bf16.gmra.mxu0 %v302
      %v770 = vpop.f32.mrf.mxu0
      %v771 = vadd.f32 %v634, %v770
      %v772 = vpop.f32.mrf.mxu0
      %v773 = vadd.f32 %v636, %v772
      %774 = vmatmul.bf16.gmra.mxu0 %v303
      %v775 = vpop.f32.mrf.mxu0
      %v776 = vadd.f32 %v639, %v775
      %v777 = vpop.f32.mrf.mxu0
      %v778 = vadd.f32 %v641, %v777
      %779 = vmatmul.bf16.gmra.mxu0 %v304
      %v780 = vpop.f32.mrf.mxu0
      %v781 = vadd.f32 %v644, %v780
      %v782 = vpop.f32.mrf.mxu0
      %v783 = vadd.f32 %v646, %v782
      %784 = vmatmul.bf16.gmra.mxu0 %v305
      %v785 = vpop.f32.mrf.mxu0
      %v786 = vadd.f32 %v649, %v785
      %v787 = vpop.f32.mrf.mxu0
      %v788 = vadd.f32 %v651, %v787
      %789 = vdwg.mxu0
      %vm790 = vcmask 1045504
      %v791 = vrot.slane %v236, 2
      %v792 = vrot.slane %v237, 2
      %v793 = vsel %vm790, %v791, %v792
      %v794 = vrot.slane %v238, 2
      %v795 = vsel %vm790, %v792, %v794
      %v796 = vrot.slane %v239, 2
      %v797 = vrot.slane %v240, 2
      %v798 = vsel %vm790, %v796, %v797
      %v799 = vrot.slane %v241, 2
      %v800 = vsel %vm790, %v797, %v799
      %v801 = vrot.slane %v242, 2
      %v802 = vrot.slane %v243, 2
      %v803 = vsel %vm790, %v801, %v802
      %v804 = vrot.slane %v244, 2
      %v805 = vsel %vm790, %v802, %v804
      %v806 = vrot.slane %v245, 2
      %v807 = vrot.slane %v246, 2
      %v808 = vsel %vm790, %v806, %v807
      %v809 = vrot.slane %v247, 2
      %v810 = vsel %vm790, %v807, %v809
      %v811 = vrot.slane %v248, 2
      %v812 = vrot.slane %v249, 2
      %v813 = vsel %vm790, %v811, %v812
      %v814 = vrot.slane %v250, 2
      %v815 = vsel %vm790, %v812, %v814
      %v816 = vrot.slane %v251, 2
      %v817 = vrot.slane %v252, 2
      %v818 = vsel %vm790, %v816, %v817
      %v819 = vrot.slane %v253, 2
      %v820 = vsel %vm790, %v817, %v819
      %v821 = vrot.slane %v254, 2
      %v822 = vrot.slane %v255, 2
      %v823 = vsel %vm790, %v821, %v822
      %v824 = vrot.slane %v256, 2
      %v825 = vsel %vm790, %v822, %v824
      %v826 = vrot.slane %v257, 2
      %v827 = vrot.slane %v258, 2
      %v828 = vsel %vm790, %v826, %v827
      %v829 = vrot.slane %v259, 2
      %v830 = vsel %vm790, %v827, %v829
      %v831 = vrot.slane %v260, 2
      %v832 = vrot.slane %v261, 2
      %v833 = vsel %vm790, %v831, %v832
      %v834 = vrot.slane %v262, 2
      %v835 = vsel %vm790, %v832, %v834
      %v836 = vrot.slane %v263, 2
      %v837 = vrot.slane %v264, 2
      %v838 = vsel %vm790, %v836, %v837
      %v839 = vrot.slane %v265, 2
      %v840 = vsel %vm790, %v837, %v839
      %v841 = vrot.slane %v266, 2
      %v842 = vrot.slane %v267, 2
      %v843 = vsel %vm790, %v841, %v842
      %v844 = vrot.slane %v268, 2
      %v845 = vsel %vm790, %v842, %v844
      %v846 = vrot.slane %v269, 2
      %v847 = vrot.slane %v270, 2
      %v848 = vsel %vm790, %v846, %v847
      %v849 = vrot.slane %v271, 2
      %v850 = vsel %vm790, %v847, %v849
      %v851 = vrot.slane %v272, 2
      %v852 = vrot.slane %v273, 2
      %v853 = vsel %vm790, %v851, %v852
      %v854 = vrot.slane %v274, 2
      %v855 = vsel %vm790, %v852, %v854
      %v856 = vrot.slane %v275, 2
      %v857 = vrot.slane %v276, 2
      %v858 = vsel %vm790, %v856, %v857
      %v859 = vrot.slane %v277, 2
      %v860 = vsel %vm790, %v857, %v859
      %v861 = vrot.slane %v278, 2
      %v862 = vrot.slane %v279, 2
      %v863 = vsel %vm790, %v861, %v862
      %v864 = vrot.slane %v280, 2
      %v865 = vsel %vm790, %v862, %v864
      %v866 = vrot.slane %v281, 2
      %v867 = vrot.slane %v282, 2
      %v868 = vsel %vm790, %v866, %v867
      %v869 = vrot.slane %v283, 2
      %v870 = vsel %vm790, %v867, %v869
      %v903 = vpack.c.bf16 %v795, %v793
      %v904 = vpack.c.bf16 %v800, %v798
      %v905 = vpack.c.bf16 %v805, %v803
      %v906 = vpack.c.bf16 %v810, %v808
      %v907 = vpack.c.bf16 %v815, %v813
      %v908 = vpack.c.bf16 %v820, %v818
      %v909 = vpack.c.bf16 %v825, %v823
      %v910 = vpack.c.bf16 %v830, %v828
      %v911 = vpack.c.bf16 %v835, %v833
      %v912 = vpack.c.bf16 %v840, %v838
      %v913 = vpack.c.bf16 %v845, %v843
      %v914 = vpack.c.bf16 %v850, %v848
      %v915 = vpack.c.bf16 %v855, %v853
      %v916 = vpack.c.bf16 %v860, %v858
      %v917 = vpack.c.bf16 %v865, %v863
      %v918 = vpack.c.bf16 %v870, %v868
      %s919 = scalar_lea.vmem %s1, 128
      %v920 = vld [vmem:[%s919] sm:$0xf]
      %v921 = vld [vmem:[%s919 + $0x4] sm:$0xf]
      %v922 = vld [vmem:[%s919 + $0x8] sm:$0xf]
      %v923 = vld [vmem:[%s919 + $0xc] sm:$0xf]
      %v924 = vld [vmem:[%s919 + $0x10] sm:$0xf]
      %v925 = vld [vmem:[%s919 + $0x14] sm:$0xf]
      %v926 = vld [vmem:[%s919 + $0x18] sm:$0xf]
      %v927 = vld [vmem:[%s919 + $0x1c] sm:$0xf]
      %v928 = vld [vmem:[%s919 + $0x20] sm:$0xf]
      %v929 = vld [vmem:[%s919 + $0x24] sm:$0xf]
      %v930 = vld [vmem:[%s919 + $0x28] sm:$0xf]
      %v931 = vld [vmem:[%s919 + $0x2c] sm:$0xf]
      %v932 = vld [vmem:[%s919 + $0x30] sm:$0xf]
      %v933 = vld [vmem:[%s919 + $0x34] sm:$0xf]
      %v934 = vld [vmem:[%s919 + $0x38] sm:$0xf]
      %v935 = vld [vmem:[%s919 + $0x3c] sm:$0xf]
      %v952 = vunpack.c.l.b16 %v920
      %v953 = vunpack.c.l.b16 %v921
      %v954 = vunpack.c.l.b16 %v922
      %v955 = vunpack.c.l.b16 %v923
      %v956 = vunpack.c.l.b16 %v924
      %v957 = vunpack.c.l.b16 %v925
      %v958 = vunpack.c.l.b16 %v926
      %v959 = vunpack.c.l.b16 %v927
      %v960 = vunpack.c.l.b16 %v928
      %v961 = vunpack.c.l.b16 %v929
      %v962 = vunpack.c.l.b16 %v930
      %v963 = vunpack.c.l.b16 %v931
      %v964 = vunpack.c.l.b16 %v932
      %v965 = vunpack.c.l.b16 %v933
      %v966 = vunpack.c.l.b16 %v934
      %v967 = vunpack.c.l.b16 %v935
      %v968 = vpack.c.b16 %v953, %v952
      %v969 = vpack.c.b16 %v955, %v954
      %v970 = vpack.c.b16 %v957, %v956
      %v971 = vpack.c.b16 %v959, %v958
      %v972 = vpack.c.b16 %v961, %v960
      %v973 = vpack.c.b16 %v963, %v962
      %v974 = vpack.c.b16 %v965, %v964
      %v975 = vpack.c.b16 %v967, %v966
      %984 = vmatpush.bf16.msra.mxu0 %v975
      %985 = vmatpush.bf16.msra.mxu0 %v974
      %986 = vmatpush.bf16.msra.mxu0 %v973
      %987 = vmatpush.bf16.msra.mxu0 %v972
      %988 = vmatpush.bf16.msra.mxu0 %v971
      %989 = vmatpush.bf16.msra.mxu0 %v970
      %990 = vmatpush.bf16.msra.mxu0 %v969
      %991 = vmatpush.bf16.msra.mxu0 %v968
      %992 = vmatmul.bf16.gmra.mxu0 %v903
      %v993 = vpop.f32.mrf.mxu0
      %v994 = vadd.f32 0.0, %v993
      %v995 = vpop.f32.mrf.mxu0
      %v996 = vadd.f32 0.0, %v995
      %997 = vmatmul.bf16.gmra.mxu0 %v904
      %v998 = vpop.f32.mrf.mxu0
      %v999 = vadd.f32 0.0, %v998
      %v1000 = vpop.f32.mrf.mxu0
      %v1001 = vadd.f32 0.0, %v1000
      %1002 = vmatmul.bf16.gmra.mxu0 %v905
      %v1003 = vpop.f32.mrf.mxu0
      %v1004 = vadd.f32 0.0, %v1003
      %v1005 = vpop.f32.mrf.mxu0
      %v1006 = vadd.f32 0.0, %v1005
      %1007 = vmatmul.bf16.gmra.mxu0 %v906
      %v1008 = vpop.f32.mrf.mxu0
      %v1009 = vadd.f32 0.0, %v1008
      %v1010 = vpop.f32.mrf.mxu0
      %v1011 = vadd.f32 0.0, %v1010
      %1012 = vmatmul.bf16.gmra.mxu0 %v907
      %v1013 = vpop.f32.mrf.mxu0
      %v1014 = vadd.f32 0.0, %v1013
      %v1015 = vpop.f32.mrf.mxu0
      %v1016 = vadd.f32 0.0, %v1015
      %1017 = vmatmul.bf16.gmra.mxu0 %v908
      %v1018 = vpop.f32.mrf.mxu0
      %v1019 = vadd.f32 0.0, %v1018
      %v1020 = vpop.f32.mrf.mxu0
      %v1021 = vadd.f32 0.0, %v1020
      %1022 = vmatmul.bf16.gmra.mxu0 %v909
      %v1023 = vpop.f32.mrf.mxu0
      %v1024 = vadd.f32 0.0, %v1023
      %v1025 = vpop.f32.mrf.mxu0
      %v1026 = vadd.f32 0.0, %v1025
      %1027 = vmatmul.bf16.gmra.mxu0 %v910
      %v1028 = vpop.f32.mrf.mxu0
      %v1029 = vadd.f32 0.0, %v1028
      %v1030 = vpop.f32.mrf.mxu0
      %v1031 = vadd.f32 0.0, %v1030
      %1032 = vmatmul.bf16.gmra.mxu0 %v911
      %v1033 = vpop.f32.mrf.mxu0
      %v1034 = vadd.f32 0.0, %v1033
      %v1035 = vpop.f32.mrf.mxu0
      %v1036 = vadd.f32 0.0, %v1035
      %1037 = vmatmul.bf16.gmra.mxu0 %v912
      %v1038 = vpop.f32.mrf.mxu0
      %v1039 = vadd.f32 0.0, %v1038
      %v1040 = vpop.f32.mrf.mxu0
      %v1041 = vadd.f32 0.0, %v1040
      %1042 = vmatmul.bf16.gmra.mxu0 %v913
      %v1043 = vpop.f32.mrf.mxu0
      %v1044 = vadd.f32 0.0, %v1043
      %v1045 = vpop.f32.mrf.mxu0
      %v1046 = vadd.f32 0.0, %v1045
      %1047 = vmatmul.bf16.gmra.mxu0 %v914
      %v1048 = vpop.f32.mrf.mxu0
      %v1049 = vadd.f32 0.0, %v1048
      %v1050 = vpop.f32.mrf.mxu0
      %v1051 = vadd.f32 0.0, %v1050
      %1052 = vmatmul.bf16.gmra.mxu0 %v915
      %v1053 = vpop.f32.mrf.mxu0
      %v1054 = vadd.f32 0.0, %v1053
      %v1055 = vpop.f32.mrf.mxu0
      %v1056 = vadd.f32 0.0, %v1055
      %1057 = vmatmul.bf16.gmra.mxu0 %v916
      %v1058 = vpop.f32.mrf.mxu0
      %v1059 = vadd.f32 0.0, %v1058
      %v1060 = vpop.f32.mrf.mxu0
      %v1061 = vadd.f32 0.0, %v1060
      %1062 = vmatmul.bf16.gmra.mxu0 %v917
      %v1063 = vpop.f32.mrf.mxu0
      %v1064 = vadd.f32 0.0, %v1063
      %v1065 = vpop.f32.mrf.mxu0
      %v1066 = vadd.f32 0.0, %v1065
      %1067 = vmatmul.bf16.gmra.mxu0 %v918
      %v1068 = vpop.f32.mrf.mxu0
      %v1069 = vadd.f32 0.0, %v1068
      %v1070 = vpop.f32.mrf.mxu0
      %v1071 = vadd.f32 0.0, %v1070
      %1072 = vdwg.mxu0
      %v1073 = vadd.f32 %v711, %v994
      %v1074 = vadd.f32 %v713, %v996
      %v1075 = vadd.f32 %v716, %v999
      %v1076 = vadd.f32 %v718, %v1001
      %v1077 = vadd.f32 %v721, %v1004
      %v1078 = vadd.f32 %v723, %v1006
      %v1079 = vadd.f32 %v726, %v1009
      %v1080 = vadd.f32 %v728, %v1011
      %v1081 = vadd.f32 %v731, %v1014
      %v1082 = vadd.f32 %v733, %v1016
      %v1083 = vadd.f32 %v736, %v1019
      %v1084 = vadd.f32 %v738, %v1021
      %v1085 = vadd.f32 %v741, %v1024
      %v1086 = vadd.f32 %v743, %v1026
      %v1087 = vadd.f32 %v746, %v1029
      %v1088 = vadd.f32 %v748, %v1031
      %v1089 = vadd.f32 %v751, %v1034
      %v1090 = vadd.f32 %v753, %v1036
      %v1091 = vadd.f32 %v756, %v1039
      %v1092 = vadd.f32 %v758, %v1041
      %v1093 = vadd.f32 %v761, %v1044
      %v1094 = vadd.f32 %v763, %v1046
      %v1095 = vadd.f32 %v766, %v1049
      %v1096 = vadd.f32 %v768, %v1051
      %v1097 = vadd.f32 %v771, %v1054
      %v1098 = vadd.f32 %v773, %v1056
      %v1099 = vadd.f32 %v776, %v1059
      %v1100 = vadd.f32 %v778, %v1061
      %v1101 = vadd.f32 %v781, %v1064
      %v1102 = vadd.f32 %v783, %v1066
      %v1103 = vadd.f32 %v786, %v1069
      %v1104 = vadd.f32 %v788, %v1071
      %v1105 = vpack.c.bf16 %v285, %v284
      %s1106 = scalar_lea.vmem %s1, 192
      %v1107 = vld [vmem:[%s1106] sm:$0xf]
      %v1108 = vld [vmem:[%s1106 + $0x4] sm:$0xf]
      %v1109 = vld [vmem:[%s1106 + $0x8] sm:$0xf]
      %v1110 = vld [vmem:[%s1106 + $0xc] sm:$0xf]
      %v1111 = vld [vmem:[%s1106 + $0x10] sm:$0xf]
      %v1112 = vld [vmem:[%s1106 + $0x14] sm:$0xf]
      %v1113 = vld [vmem:[%s1106 + $0x18] sm:$0xf]
      %v1114 = vld [vmem:[%s1106 + $0x1c] sm:$0xf]
      %v1115 = vld [vmem:[%s1106 + $0x20] sm:$0xf]
      %v1116 = vld [vmem:[%s1106 + $0x24] sm:$0xf]
      %v1117 = vld [vmem:[%s1106 + $0x28] sm:$0xf]
      %v1118 = vld [vmem:[%s1106 + $0x2c] sm:$0xf]
      %v1119 = vld [vmem:[%s1106 + $0x30] sm:$0xf]
      %v1120 = vld [vmem:[%s1106 + $0x34] sm:$0xf]
      %v1121 = vld [vmem:[%s1106 + $0x38] sm:$0xf]
      %v1122 = vld [vmem:[%s1106 + $0x3c] sm:$0xf]
      %v1139 = vunpack.c.l.b16 %v1107
      %v1140 = vunpack.c.l.b16 %v1108
      %v1141 = vunpack.c.l.b16 %v1109
      %v1142 = vunpack.c.l.b16 %v1110
      %v1143 = vunpack.c.l.b16 %v1111
      %v1144 = vunpack.c.l.b16 %v1112
      %v1145 = vunpack.c.l.b16 %v1113
      %v1146 = vunpack.c.l.b16 %v1114
      %v1147 = vunpack.c.l.b16 %v1115
      %v1148 = vunpack.c.l.b16 %v1116
      %v1149 = vunpack.c.l.b16 %v1117
      %v1150 = vunpack.c.l.b16 %v1118
      %v1151 = vunpack.c.l.b16 %v1119
      %v1152 = vunpack.c.l.b16 %v1120
      %v1153 = vunpack.c.l.b16 %v1121
      %v1154 = vunpack.c.l.b16 %v1122
      %v1155 = vpack.c.b16 %v1140, %v1139
      %v1156 = vpack.c.b16 %v1142, %v1141
      %v1157 = vpack.c.b16 %v1144, %v1143
      %v1158 = vpack.c.b16 %v1146, %v1145
      %v1159 = vpack.c.b16 %v1148, %v1147
      %v1160 = vpack.c.b16 %v1150, %v1149
      %v1161 = vpack.c.b16 %v1152, %v1151
      %v1162 = vpack.c.b16 %v1154, %v1153
      %1171 = vmatpush.bf16.msra.mxu0 %v1162
      %1172 = vmatpush.bf16.msra.mxu0 %v1161
      %1173 = vmatpush.bf16.msra.mxu0 %v1160
      %1174 = vmatpush.bf16.msra.mxu0 %v1159
      %1175 = vmatpush.bf16.msra.mxu0 %v1158
      %1176 = vmatpush.bf16.msra.mxu0 %v1157
      %1177 = vmatpush.bf16.msra.mxu0 %v1156
      %1178 = vmatpush.bf16.msra.mxu0 %v1155
      %1179 = vmatmul.bf16.gmra.mxu0 %v291
      %v1180 = vpop.f32.mrf.mxu0
      %v1181 = vadd.f32 0.0, %v1180
      %v1182 = vpop.f32.mrf.mxu0
      %v1183 = vadd.f32 0.0, %v1182
      %1184 = vmatmul.bf16.gmra.mxu0 %v292
      %v1185 = vpop.f32.mrf.mxu0
      %v1186 = vadd.f32 0.0, %v1185
      %v1187 = vpop.f32.mrf.mxu0
      %v1188 = vadd.f32 0.0, %v1187
      %1189 = vmatmul.bf16.gmra.mxu0 %v293
      %v1190 = vpop.f32.mrf.mxu0
      %v1191 = vadd.f32 0.0, %v1190
      %v1192 = vpop.f32.mrf.mxu0
      %v1193 = vadd.f32 0.0, %v1192
      %1194 = vmatmul.bf16.gmra.mxu0 %v294
      %v1195 = vpop.f32.mrf.mxu0
      %v1196 = vadd.f32 0.0, %v1195
      %v1197 = vpop.f32.mrf.mxu0
      %v1198 = vadd.f32 0.0, %v1197
      %1199 = vmatmul.bf16.gmra.mxu0 %v295
      %v1200 = vpop.f32.mrf.mxu0
      %v1201 = vadd.f32 0.0, %v1200
      %v1202 = vpop.f32.mrf.mxu0
      %v1203 = vadd.f32 0.0, %v1202
      %1204 = vmatmul.bf16.gmra.mxu0 %v296
      %v1205 = vpop.f32.mrf.mxu0
      %v1206 = vadd.f32 0.0, %v1205
      %v1207 = vpop.f32.mrf.mxu0
      %v1208 = vadd.f32 0.0, %v1207
      %1209 = vmatmul.bf16.gmra.mxu0 %v297
      %v1210 = vpop.f32.mrf.mxu0
      %v1211 = vadd.f32 0.0, %v1210
      %v1212 = vpop.f32.mrf.mxu0
      %v1213 = vadd.f32 0.0, %v1212
      %1214 = vmatmul.bf16.gmra.mxu0 %v298
      %v1215 = vpop.f32.mrf.mxu0
      %v1216 = vadd.f32 0.0, %v1215
      %v1217 = vpop.f32.mrf.mxu0
      %v1218 = vadd.f32 0.0, %v1217
      %1219 = vmatmul.bf16.gmra.mxu0 %v299
      %v1220 = vpop.f32.mrf.mxu0
      %v1221 = vadd.f32 0.0, %v1220
      %v1222 = vpop.f32.mrf.mxu0
      %v1223 = vadd.f32 0.0, %v1222
      %1224 = vmatmul.bf16.gmra.mxu0 %v300
      %v1225 = vpop.f32.mrf.mxu0
      %v1226 = vadd.f32 0.0, %v1225
      %v1227 = vpop.f32.mrf.mxu0
      %v1228 = vadd.f32 0.0, %v1227
      %1229 = vmatmul.bf16.gmra.mxu0 %v301
      %v1230 = vpop.f32.mrf.mxu0
      %v1231 = vadd.f32 0.0, %v1230
      %v1232 = vpop.f32.mrf.mxu0
      %v1233 = vadd.f32 0.0, %v1232
      %1234 = vmatmul.bf16.gmra.mxu0 %v302
      %v1235 = vpop.f32.mrf.mxu0
      %v1236 = vadd.f32 0.0, %v1235
      %v1237 = vpop.f32.mrf.mxu0
      %v1238 = vadd.f32 0.0, %v1237
      %1239 = vmatmul.bf16.gmra.mxu0 %v303
      %v1240 = vpop.f32.mrf.mxu0
      %v1241 = vadd.f32 0.0, %v1240
      %v1242 = vpop.f32.mrf.mxu0
      %v1243 = vadd.f32 0.0, %v1242
      %1244 = vmatmul.bf16.gmra.mxu0 %v304
      %v1245 = vpop.f32.mrf.mxu0
      %v1246 = vadd.f32 0.0, %v1245
      %v1247 = vpop.f32.mrf.mxu0
      %v1248 = vadd.f32 0.0, %v1247
      %1249 = vmatmul.bf16.gmra.mxu0 %v305
      %v1250 = vpop.f32.mrf.mxu0
      %v1251 = vadd.f32 0.0, %v1250
      %v1252 = vpop.f32.mrf.mxu0
      %v1253 = vadd.f32 0.0, %v1252
      %1254 = vmatmul.bf16.gmra.mxu0 %v1105
      %v1255 = vpop.f32.mrf.mxu0
      %v1256 = vadd.f32 0.0, %v1255
      %v1257 = vpop.f32.mrf.mxu0
      %v1258 = vadd.f32 0.0, %v1257
      %1259 = vdwg.mxu0
      %v1260 = vadd.f32 %v1073, %v1181
      %v1261 = vadd.f32 %v1074, %v1183
      %v1262 = vadd.f32 %v1075, %v1186
      %v1263 = vadd.f32 %v1076, %v1188
      %v1264 = vadd.f32 %v1077, %v1191
      %v1265 = vadd.f32 %v1078, %v1193
      %v1266 = vadd.f32 %v1079, %v1196
      %v1267 = vadd.f32 %v1080, %v1198
      %v1268 = vadd.f32 %v1081, %v1201
      %v1269 = vadd.f32 %v1082, %v1203
      %v1270 = vadd.f32 %v1083, %v1206
      %v1271 = vadd.f32 %v1084, %v1208
      %v1272 = vadd.f32 %v1085, %v1211
      %v1273 = vadd.f32 %v1086, %v1213
      %v1274 = vadd.f32 %v1087, %v1216
      %v1275 = vadd.f32 %v1088, %v1218
      %v1276 = vadd.f32 %v1089, %v1221
      %v1277 = vadd.f32 %v1090, %v1223
      %v1278 = vadd.f32 %v1091, %v1226
      %v1279 = vadd.f32 %v1092, %v1228
      %v1280 = vadd.f32 %v1093, %v1231
      %v1281 = vadd.f32 %v1094, %v1233
      %v1282 = vadd.f32 %v1095, %v1236
      %v1283 = vadd.f32 %v1096, %v1238
      %v1284 = vadd.f32 %v1097, %v1241
      %v1285 = vadd.f32 %v1098, %v1243
      %v1286 = vadd.f32 %v1099, %v1246
      %v1287 = vadd.f32 %v1100, %v1248
      %v1288 = vadd.f32 %v1101, %v1251
      %v1289 = vadd.f32 %v1102, %v1253
      %v1290 = vadd.f32 %v1103, %v1256
      %v1291 = vadd.f32 %v1104, %v1258
      %v1295 = vrot.slane %v284, 1
      %v1296 = vrot.slane %v285, 1
      %v1297 = vsel %vm370, %v1295, %v1296
      %v1298 = vrot.slane %v286, 1
      %v1299 = vsel %vm370, %v1296, %v1298
      %v1302 = vpack.c.bf16 %v1299, %v1297
      %s1303 = scalar_lea.vmem %s1, 256
      %v1304 = vld [vmem:[%s1303] sm:$0xf]
      %v1305 = vld [vmem:[%s1303 + $0x4] sm:$0xf]
      %v1306 = vld [vmem:[%s1303 + $0x8] sm:$0xf]
      %v1307 = vld [vmem:[%s1303 + $0xc] sm:$0xf]
      %v1308 = vld [vmem:[%s1303 + $0x10] sm:$0xf]
      %v1309 = vld [vmem:[%s1303 + $0x14] sm:$0xf]
      %v1310 = vld [vmem:[%s1303 + $0x18] sm:$0xf]
      %v1311 = vld [vmem:[%s1303 + $0x1c] sm:$0xf]
      %v1312 = vld [vmem:[%s1303 + $0x20] sm:$0xf]
      %v1313 = vld [vmem:[%s1303 + $0x24] sm:$0xf]
      %v1314 = vld [vmem:[%s1303 + $0x28] sm:$0xf]
      %v1315 = vld [vmem:[%s1303 + $0x2c] sm:$0xf]
      %v1316 = vld [vmem:[%s1303 + $0x30] sm:$0xf]
      %v1317 = vld [vmem:[%s1303 + $0x34] sm:$0xf]
      %v1318 = vld [vmem:[%s1303 + $0x38] sm:$0xf]
      %v1319 = vld [vmem:[%s1303 + $0x3c] sm:$0xf]
      %v1336 = vunpack.c.l.b16 %v1304
      %v1337 = vunpack.c.l.b16 %v1305
      %v1338 = vunpack.c.l.b16 %v1306
      %v1339 = vunpack.c.l.b16 %v1307
      %v1340 = vunpack.c.l.b16 %v1308
      %v1341 = vunpack.c.l.b16 %v1309
      %v1342 = vunpack.c.l.b16 %v1310
      %v1343 = vunpack.c.l.b16 %v1311
      %v1344 = vunpack.c.l.b16 %v1312
      %v1345 = vunpack.c.l.b16 %v1313
      %v1346 = vunpack.c.l.b16 %v1314
      %v1347 = vunpack.c.l.b16 %v1315
      %v1348 = vunpack.c.l.b16 %v1316
      %v1349 = vunpack.c.l.b16 %v1317
      %v1350 = vunpack.c.l.b16 %v1318
      %v1351 = vunpack.c.l.b16 %v1319
      %v1352 = vpack.c.b16 %v1337, %v1336
      %v1353 = vpack.c.b16 %v1339, %v1338
      %v1354 = vpack.c.b16 %v1341, %v1340
      %v1355 = vpack.c.b16 %v1343, %v1342
      %v1356 = vpack.c.b16 %v1345, %v1344
      %v1357 = vpack.c.b16 %v1347, %v1346
      %v1358 = vpack.c.b16 %v1349, %v1348
      %v1359 = vpack.c.b16 %v1351, %v1350
      %1368 = vmatpush.bf16.msra.mxu0 %v1359
      %1369 = vmatpush.bf16.msra.mxu0 %v1358
      %1370 = vmatpush.bf16.msra.mxu0 %v1357
      %1371 = vmatpush.bf16.msra.mxu0 %v1356
      %1372 = vmatpush.bf16.msra.mxu0 %v1355
      %1373 = vmatpush.bf16.msra.mxu0 %v1354
      %1374 = vmatpush.bf16.msra.mxu0 %v1353
      %1375 = vmatpush.bf16.msra.mxu0 %v1352
      %1376 = vmatmul.bf16.gmra.mxu0 %v484
      %v1377 = vpop.f32.mrf.mxu0
      %v1378 = vadd.f32 0.0, %v1377
      %v1379 = vpop.f32.mrf.mxu0
      %v1380 = vadd.f32 0.0, %v1379
      %1381 = vmatmul.bf16.gmra.mxu0 %v485
      %v1382 = vpop.f32.mrf.mxu0
      %v1383 = vadd.f32 0.0, %v1382
      %v1384 = vpop.f32.mrf.mxu0
      %v1385 = vadd.f32 0.0, %v1384
      %1386 = vmatmul.bf16.gmra.mxu0 %v486
      %v1387 = vpop.f32.mrf.mxu0
      %v1388 = vadd.f32 0.0, %v1387
      %v1389 = vpop.f32.mrf.mxu0
      %v1390 = vadd.f32 0.0, %v1389
      %1391 = vmatmul.bf16.gmra.mxu0 %v487
      %v1392 = vpop.f32.mrf.mxu0
      %v1393 = vadd.f32 0.0, %v1392
      %v1394 = vpop.f32.mrf.mxu0
      %v1395 = vadd.f32 0.0, %v1394
      %1396 = vmatmul.bf16.gmra.mxu0 %v488
      %v1397 = vpop.f32.mrf.mxu0
      %v1398 = vadd.f32 0.0, %v1397
      %v1399 = vpop.f32.mrf.mxu0
      %v1400 = vadd.f32 0.0, %v1399
      %1401 = vmatmul.bf16.gmra.mxu0 %v489
      %v1402 = vpop.f32.mrf.mxu0
      %v1403 = vadd.f32 0.0, %v1402
      %v1404 = vpop.f32.mrf.mxu0
      %v1405 = vadd.f32 0.0, %v1404
      %1406 = vmatmul.bf16.gmra.mxu0 %v490
      %v1407 = vpop.f32.mrf.mxu0
      %v1408 = vadd.f32 0.0, %v1407
      %v1409 = vpop.f32.mrf.mxu0
      %v1410 = vadd.f32 0.0, %v1409
      %1411 = vmatmul.bf16.gmra.mxu0 %v491
      %v1412 = vpop.f32.mrf.mxu0
      %v1413 = vadd.f32 0.0, %v1412
      %v1414 = vpop.f32.mrf.mxu0
      %v1415 = vadd.f32 0.0, %v1414
      %1416 = vmatmul.bf16.gmra.mxu0 %v492
      %v1417 = vpop.f32.mrf.mxu0
      %v1418 = vadd.f32 0.0, %v1417
      %v1419 = vpop.f32.mrf.mxu0
      %v1420 = vadd.f32 0.0, %v1419
      %1421 = vmatmul.bf16.gmra.mxu0 %v493
      %v1422 = vpop.f32.mrf.mxu0
      %v1423 = vadd.f32 0.0, %v1422
      %v1424 = vpop.f32.mrf.mxu0
      %v1425 = vadd.f32 0.0, %v1424
      %1426 = vmatmul.bf16.gmra.mxu0 %v494
      %v1427 = vpop.f32.mrf.mxu0
      %v1428 = vadd.f32 0.0, %v1427
      %v1429 = vpop.f32.mrf.mxu0
      %v1430 = vadd.f32 0.0, %v1429
      %1431 = vmatmul.bf16.gmra.mxu0 %v495
      %v1432 = vpop.f32.mrf.mxu0
      %v1433 = vadd.f32 0.0, %v1432
      %v1434 = vpop.f32.mrf.mxu0
      %v1435 = vadd.f32 0.0, %v1434
      %1436 = vmatmul.bf16.gmra.mxu0 %v496
      %v1437 = vpop.f32.mrf.mxu0
      %v1438 = vadd.f32 0.0, %v1437
      %v1439 = vpop.f32.mrf.mxu0
      %v1440 = vadd.f32 0.0, %v1439
      %1441 = vmatmul.bf16.gmra.mxu0 %v497
      %v1442 = vpop.f32.mrf.mxu0
      %v1443 = vadd.f32 0.0, %v1442
      %v1444 = vpop.f32.mrf.mxu0
      %v1445 = vadd.f32 0.0, %v1444
      %1446 = vmatmul.bf16.gmra.mxu0 %v498
      %v1447 = vpop.f32.mrf.mxu0
      %v1448 = vadd.f32 0.0, %v1447
      %v1449 = vpop.f32.mrf.mxu0
      %v1450 = vadd.f32 0.0, %v1449
      %1451 = vmatmul.bf16.gmra.mxu0 %v1302
      %v1452 = vpop.f32.mrf.mxu0
      %v1453 = vadd.f32 0.0, %v1452
      %v1454 = vpop.f32.mrf.mxu0
      %v1455 = vadd.f32 0.0, %v1454
      %1456 = vdwg.mxu0
      %v1457 = vadd.f32 %v1260, %v1378
      %v1458 = vadd.f32 %v1261, %v1380
      %v1459 = vadd.f32 %v1262, %v1383
      %v1460 = vadd.f32 %v1263, %v1385
      %v1461 = vadd.f32 %v1264, %v1388
      %v1462 = vadd.f32 %v1265, %v1390
      %v1463 = vadd.f32 %v1266, %v1393
      %v1464 = vadd.f32 %v1267, %v1395
      %v1465 = vadd.f32 %v1268, %v1398
      %v1466 = vadd.f32 %v1269, %v1400
      %v1467 = vadd.f32 %v1270, %v1403
      %v1468 = vadd.f32 %v1271, %v1405
      %v1469 = vadd.f32 %v1272, %v1408
      %v1470 = vadd.f32 %v1273, %v1410
      %v1471 = vadd.f32 %v1274, %v1413
      %v1472 = vadd.f32 %v1275, %v1415
      %v1473 = vadd.f32 %v1276, %v1418
      %v1474 = vadd.f32 %v1277, %v1420
      %v1475 = vadd.f32 %v1278, %v1423
      %v1476 = vadd.f32 %v1279, %v1425
      %v1477 = vadd.f32 %v1280, %v1428
      %v1478 = vadd.f32 %v1281, %v1430
      %v1479 = vadd.f32 %v1282, %v1433
      %v1480 = vadd.f32 %v1283, %v1435
      %v1481 = vadd.f32 %v1284, %v1438
      %v1482 = vadd.f32 %v1285, %v1440
      %v1483 = vadd.f32 %v1286, %v1443
      %v1484 = vadd.f32 %v1287, %v1445
      %v1485 = vadd.f32 %v1288, %v1448
      %v1486 = vadd.f32 %v1289, %v1450
      %v1487 = vadd.f32 %v1290, %v1453
      %v1488 = vadd.f32 %v1291, %v1455
      %v1489 = vrot.slane %v284, 2
      %v1490 = vrot.slane %v285, 2
      %v1491 = vsel %vm790, %v1489, %v1490
      %v1492 = vrot.slane %v286, 2
      %v1493 = vsel %vm790, %v1490, %v1492
      %v1496 = vpack.c.bf16 %v1493, %v1491
      %s1497 = scalar_lea.vmem %s1, 320
      %v1498 = vld [vmem:[%s1497] sm:$0xf]
      %v1499 = vld [vmem:[%s1497 + $0x4] sm:$0xf]
      %v1500 = vld [vmem:[%s1497 + $0x8] sm:$0xf]
      %v1501 = vld [vmem:[%s1497 + $0xc] sm:$0xf]
      %v1502 = vld [vmem:[%s1497 + $0x10] sm:$0xf]
      %v1503 = vld [vmem:[%s1497 + $0x14] sm:$0xf]
      %v1504 = vld [vmem:[%s1497 + $0x18] sm:$0xf]
      %v1505 = vld [vmem:[%s1497 + $0x1c] sm:$0xf]
      %v1506 = vld [vmem:[%s1497 + $0x20] sm:$0xf]
      %v1507 = vld [vmem:[%s1497 + $0x24] sm:$0xf]
      %v1508 = vld [vmem:[%s1497 + $0x28] sm:$0xf]
      %v1509 = vld [vmem:[%s1497 + $0x2c] sm:$0xf]
      %v1510 = vld [vmem:[%s1497 + $0x30] sm:$0xf]
      %v1511 = vld [vmem:[%s1497 + $0x34] sm:$0xf]
      %v1512 = vld [vmem:[%s1497 + $0x38] sm:$0xf]
      %v1513 = vld [vmem:[%s1497 + $0x3c] sm:$0xf]
      %v1530 = vunpack.c.l.b16 %v1498
      %v1531 = vunpack.c.l.b16 %v1499
      %v1532 = vunpack.c.l.b16 %v1500
      %v1533 = vunpack.c.l.b16 %v1501
      %v1534 = vunpack.c.l.b16 %v1502
      %v1535 = vunpack.c.l.b16 %v1503
      %v1536 = vunpack.c.l.b16 %v1504
      %v1537 = vunpack.c.l.b16 %v1505
      %v1538 = vunpack.c.l.b16 %v1506
      %v1539 = vunpack.c.l.b16 %v1507
      %v1540 = vunpack.c.l.b16 %v1508
      %v1541 = vunpack.c.l.b16 %v1509
      %v1542 = vunpack.c.l.b16 %v1510
      %v1543 = vunpack.c.l.b16 %v1511
      %v1544 = vunpack.c.l.b16 %v1512
      %v1545 = vunpack.c.l.b16 %v1513
      %v1546 = vpack.c.b16 %v1531, %v1530
      %v1547 = vpack.c.b16 %v1533, %v1532
      %v1548 = vpack.c.b16 %v1535, %v1534
      %v1549 = vpack.c.b16 %v1537, %v1536
      %v1550 = vpack.c.b16 %v1539, %v1538
      %v1551 = vpack.c.b16 %v1541, %v1540
      %v1552 = vpack.c.b16 %v1543, %v1542
      %v1553 = vpack.c.b16 %v1545, %v1544
      %1562 = vmatpush.bf16.msra.mxu0 %v1553
      %1563 = vmatpush.bf16.msra.mxu0 %v1552
      %1564 = vmatpush.bf16.msra.mxu0 %v1551
      %1565 = vmatpush.bf16.msra.mxu0 %v1550
      %1566 = vmatpush.bf16.msra.mxu0 %v1549
      %1567 = vmatpush.bf16.msra.mxu0 %v1548
      %1568 = vmatpush.bf16.msra.mxu0 %v1547
      %1569 = vmatpush.bf16.msra.mxu0 %v1546
      %1570 = vmatmul.bf16.gmra.mxu0 %v904
      %v1571 = vpop.f32.mrf.mxu0
      %v1572 = vadd.f32 0.0, %v1571
      %v1573 = vpop.f32.mrf.mxu0
      %v1574 = vadd.f32 0.0, %v1573
      %1575 = vmatmul.bf16.gmra.mxu0 %v905
      %v1576 = vpop.f32.mrf.mxu0
      %v1577 = vadd.f32 0.0, %v1576
      %v1578 = vpop.f32.mrf.mxu0
      %v1579 = vadd.f32 0.0, %v1578
      %1580 = vmatmul.bf16.gmra.mxu0 %v906
      %v1581 = vpop.f32.mrf.mxu0
      %v1582 = vadd.f32 0.0, %v1581
      %v1583 = vpop.f32.mrf.mxu0
      %v1584 = vadd.f32 0.0, %v1583
      %1585 = vmatmul.bf16.gmra.mxu0 %v907
      %v1586 = vpop.f32.mrf.mxu0
      %v1587 = vadd.f32 0.0, %v1586
      %v1588 = vpop.f32.mrf.mxu0
      %v1589 = vadd.f32 0.0, %v1588
      %1590 = vmatmul.bf16.gmra.mxu0 %v908
      %v1591 = vpop.f32.mrf.mxu0
      %v1592 = vadd.f32 0.0, %v1591
      %v1593 = vpop.f32.mrf.mxu0
      %v1594 = vadd.f32 0.0, %v1593
      %1595 = vmatmul.bf16.gmra.mxu0 %v909
      %v1596 = vpop.f32.mrf.mxu0
      %v1597 = vadd.f32 0.0, %v1596
      %v1598 = vpop.f32.mrf.mxu0
      %v1599 = vadd.f32 0.0, %v1598
      %1600 = vmatmul.bf16.gmra.mxu0 %v910
      %v1601 = vpop.f32.mrf.mxu0
      %v1602 = vadd.f32 0.0, %v1601
      %v1603 = vpop.f32.mrf.mxu0
      %v1604 = vadd.f32 0.0, %v1603
      %1605 = vmatmul.bf16.gmra.mxu0 %v911
      %v1606 = vpop.f32.mrf.mxu0
      %v1607 = vadd.f32 0.0, %v1606
      %v1608 = vpop.f32.mrf.mxu0
      %v1609 = vadd.f32 0.0, %v1608
      %1610 = vmatmul.bf16.gmra.mxu0 %v912
      %v1611 = vpop.f32.mrf.mxu0
      %v1612 = vadd.f32 0.0, %v1611
      %v1613 = vpop.f32.mrf.mxu0
      %v1614 = vadd.f32 0.0, %v1613
      %1615 = vmatmul.bf16.gmra.mxu0 %v913
      %v1616 = vpop.f32.mrf.mxu0
      %v1617 = vadd.f32 0.0, %v1616
      %v1618 = vpop.f32.mrf.mxu0
      %v1619 = vadd.f32 0.0, %v1618
      %1620 = vmatmul.bf16.gmra.mxu0 %v914
      %v1621 = vpop.f32.mrf.mxu0
      %v1622 = vadd.f32 0.0, %v1621
      %v1623 = vpop.f32.mrf.mxu0
      %v1624 = vadd.f32 0.0, %v1623
      %1625 = vmatmul.bf16.gmra.mxu0 %v915
      %v1626 = vpop.f32.mrf.mxu0
      %v1627 = vadd.f32 0.0, %v1626
      %v1628 = vpop.f32.mrf.mxu0
      %v1629 = vadd.f32 0.0, %v1628
      %1630 = vmatmul.bf16.gmra.mxu0 %v916
      %v1631 = vpop.f32.mrf.mxu0
      %v1632 = vadd.f32 0.0, %v1631
      %v1633 = vpop.f32.mrf.mxu0
      %v1634 = vadd.f32 0.0, %v1633
      %1635 = vmatmul.bf16.gmra.mxu0 %v917
      %v1636 = vpop.f32.mrf.mxu0
      %v1637 = vadd.f32 0.0, %v1636
      %v1638 = vpop.f32.mrf.mxu0
      %v1639 = vadd.f32 0.0, %v1638
      %1640 = vmatmul.bf16.gmra.mxu0 %v918
      %v1641 = vpop.f32.mrf.mxu0
      %v1642 = vadd.f32 0.0, %v1641
      %v1643 = vpop.f32.mrf.mxu0
      %v1644 = vadd.f32 0.0, %v1643
      %1645 = vmatmul.bf16.gmra.mxu0 %v1496
      %v1646 = vpop.f32.mrf.mxu0
      %v1647 = vadd.f32 0.0, %v1646
      %v1648 = vpop.f32.mrf.mxu0
      %v1649 = vadd.f32 0.0, %v1648
      %1650 = vdwg.mxu0
      %v1651 = vadd.f32 %v1457, %v1572
      %v1652 = vadd.f32 %v1458, %v1574
      %v1653 = vadd.f32 %v1459, %v1577
      %v1654 = vadd.f32 %v1460, %v1579
      %v1655 = vadd.f32 %v1461, %v1582
      %v1656 = vadd.f32 %v1462, %v1584
      %v1657 = vadd.f32 %v1463, %v1587
      %v1658 = vadd.f32 %v1464, %v1589
      %v1659 = vadd.f32 %v1465, %v1592
      %v1660 = vadd.f32 %v1466, %v1594
      %v1661 = vadd.f32 %v1467, %v1597
      %v1662 = vadd.f32 %v1468, %v1599
      %v1663 = vadd.f32 %v1469, %v1602
      %v1664 = vadd.f32 %v1470, %v1604
      %v1665 = vadd.f32 %v1471, %v1607
      %v1666 = vadd.f32 %v1472, %v1609
      %v1667 = vadd.f32 %v1473, %v1612
      %v1668 = vadd.f32 %v1474, %v1614
      %v1669 = vadd.f32 %v1475, %v1617
      %v1670 = vadd.f32 %v1476, %v1619
      %v1671 = vadd.f32 %v1477, %v1622
      %v1672 = vadd.f32 %v1478, %v1624
      %v1673 = vadd.f32 %v1479, %v1627
      %v1674 = vadd.f32 %v1480, %v1629
      %v1675 = vadd.f32 %v1481, %v1632
      %v1676 = vadd.f32 %v1482, %v1634
      %v1677 = vadd.f32 %v1483, %v1637
      %v1678 = vadd.f32 %v1484, %v1639
      %v1679 = vadd.f32 %v1485, %v1642
      %v1680 = vadd.f32 %v1486, %v1644
      %v1681 = vadd.f32 %v1487, %v1647
      %v1682 = vadd.f32 %v1488, %v1649
      %v1683 = vpack.c.bf16 %v288, %v287
      %s1684 = scalar_lea.vmem %s1, 384
      %v1685 = vld [vmem:[%s1684] sm:$0xf]
      %v1686 = vld [vmem:[%s1684 + $0x4] sm:$0xf]
      %v1687 = vld [vmem:[%s1684 + $0x8] sm:$0xf]
      %v1688 = vld [vmem:[%s1684 + $0xc] sm:$0xf]
      %v1689 = vld [vmem:[%s1684 + $0x10] sm:$0xf]
      %v1690 = vld [vmem:[%s1684 + $0x14] sm:$0xf]
      %v1691 = vld [vmem:[%s1684 + $0x18] sm:$0xf]
      %v1692 = vld [vmem:[%s1684 + $0x1c] sm:$0xf]
      %v1693 = vld [vmem:[%s1684 + $0x20] sm:$0xf]
      %v1694 = vld [vmem:[%s1684 + $0x24] sm:$0xf]
      %v1695 = vld [vmem:[%s1684 + $0x28] sm:$0xf]
      %v1696 = vld [vmem:[%s1684 + $0x2c] sm:$0xf]
      %v1697 = vld [vmem:[%s1684 + $0x30] sm:$0xf]
      %v1698 = vld [vmem:[%s1684 + $0x34] sm:$0xf]
      %v1699 = vld [vmem:[%s1684 + $0x38] sm:$0xf]
      %v1700 = vld [vmem:[%s1684 + $0x3c] sm:$0xf]
      %v1717 = vunpack.c.l.b16 %v1685
      %v1718 = vunpack.c.l.b16 %v1686
      %v1719 = vunpack.c.l.b16 %v1687
      %v1720 = vunpack.c.l.b16 %v1688
      %v1721 = vunpack.c.l.b16 %v1689
      %v1722 = vunpack.c.l.b16 %v1690
      %v1723 = vunpack.c.l.b16 %v1691
      %v1724 = vunpack.c.l.b16 %v1692
      %v1725 = vunpack.c.l.b16 %v1693
      %v1726 = vunpack.c.l.b16 %v1694
      %v1727 = vunpack.c.l.b16 %v1695
      %v1728 = vunpack.c.l.b16 %v1696
      %v1729 = vunpack.c.l.b16 %v1697
      %v1730 = vunpack.c.l.b16 %v1698
      %v1731 = vunpack.c.l.b16 %v1699
      %v1732 = vunpack.c.l.b16 %v1700
      %v1733 = vpack.c.b16 %v1718, %v1717
      %v1734 = vpack.c.b16 %v1720, %v1719
      %v1735 = vpack.c.b16 %v1722, %v1721
      %v1736 = vpack.c.b16 %v1724, %v1723
      %v1737 = vpack.c.b16 %v1726, %v1725
      %v1738 = vpack.c.b16 %v1728, %v1727
      %v1739 = vpack.c.b16 %v1730, %v1729
      %v1740 = vpack.c.b16 %v1732, %v1731
      %1749 = vmatpush.bf16.msra.mxu0 %v1740
      %1750 = vmatpush.bf16.msra.mxu0 %v1739
      %1751 = vmatpush.bf16.msra.mxu0 %v1738
      %1752 = vmatpush.bf16.msra.mxu0 %v1737
      %1753 = vmatpush.bf16.msra.mxu0 %v1736
      %1754 = vmatpush.bf16.msra.mxu0 %v1735
      %1755 = vmatpush.bf16.msra.mxu0 %v1734
      %1756 = vmatpush.bf16.msra.mxu0 %v1733
      %1757 = vmatmul.bf16.gmra.mxu0 %v292
      %v1758 = vpop.f32.mrf.mxu0
      %v1759 = vadd.f32 0.0, %v1758
      %v1760 = vpop.f32.mrf.mxu0
      %v1761 = vadd.f32 0.0, %v1760
      %1762 = vmatmul.bf16.gmra.mxu0 %v293
      %v1763 = vpop.f32.mrf.mxu0
      %v1764 = vadd.f32 0.0, %v1763
      %v1765 = vpop.f32.mrf.mxu0
      %v1766 = vadd.f32 0.0, %v1765
      %1767 = vmatmul.bf16.gmra.mxu0 %v294
      %v1768 = vpop.f32.mrf.mxu0
      %v1769 = vadd.f32 0.0, %v1768
      %v1770 = vpop.f32.mrf.mxu0
      %v1771 = vadd.f32 0.0, %v1770
      %1772 = vmatmul.bf16.gmra.mxu0 %v295
      %v1773 = vpop.f32.mrf.mxu0
      %v1774 = vadd.f32 0.0, %v1773
      %v1775 = vpop.f32.mrf.mxu0
      %v1776 = vadd.f32 0.0, %v1775
      %1777 = vmatmul.bf16.gmra.mxu0 %v296
      %v1778 = vpop.f32.mrf.mxu0
      %v1779 = vadd.f32 0.0, %v1778
      %v1780 = vpop.f32.mrf.mxu0
      %v1781 = vadd.f32 0.0, %v1780
      %1782 = vmatmul.bf16.gmra.mxu0 %v297
      %v1783 = vpop.f32.mrf.mxu0
      %v1784 = vadd.f32 0.0, %v1783
      %v1785 = vpop.f32.mrf.mxu0
      %v1786 = vadd.f32 0.0, %v1785
      %1787 = vmatmul.bf16.gmra.mxu0 %v298
      %v1788 = vpop.f32.mrf.mxu0
      %v1789 = vadd.f32 0.0, %v1788
      %v1790 = vpop.f32.mrf.mxu0
      %v1791 = vadd.f32 0.0, %v1790
      %1792 = vmatmul.bf16.gmra.mxu0 %v299
      %v1793 = vpop.f32.mrf.mxu0
      %v1794 = vadd.f32 0.0, %v1793
      %v1795 = vpop.f32.mrf.mxu0
      %v1796 = vadd.f32 0.0, %v1795
      %1797 = vmatmul.bf16.gmra.mxu0 %v300
      %v1798 = vpop.f32.mrf.mxu0
      %v1799 = vadd.f32 0.0, %v1798
      %v1800 = vpop.f32.mrf.mxu0
      %v1801 = vadd.f32 0.0, %v1800
      %1802 = vmatmul.bf16.gmra.mxu0 %v301
      %v1803 = vpop.f32.mrf.mxu0
      %v1804 = vadd.f32 0.0, %v1803
      %v1805 = vpop.f32.mrf.mxu0
      %v1806 = vadd.f32 0.0, %v1805
      %1807 = vmatmul.bf16.gmra.mxu0 %v302
      %v1808 = vpop.f32.mrf.mxu0
      %v1809 = vadd.f32 0.0, %v1808
      %v1810 = vpop.f32.mrf.mxu0
      %v1811 = vadd.f32 0.0, %v1810
      %1812 = vmatmul.bf16.gmra.mxu0 %v303
      %v1813 = vpop.f32.mrf.mxu0
      %v1814 = vadd.f32 0.0, %v1813
      %v1815 = vpop.f32.mrf.mxu0
      %v1816 = vadd.f32 0.0, %v1815
      %1817 = vmatmul.bf16.gmra.mxu0 %v304
      %v1818 = vpop.f32.mrf.mxu0
      %v1819 = vadd.f32 0.0, %v1818
      %v1820 = vpop.f32.mrf.mxu0
      %v1821 = vadd.f32 0.0, %v1820
      %1822 = vmatmul.bf16.gmra.mxu0 %v305
      %v1823 = vpop.f32.mrf.mxu0
      %v1824 = vadd.f32 0.0, %v1823
      %v1825 = vpop.f32.mrf.mxu0
      %v1826 = vadd.f32 0.0, %v1825
      %1827 = vmatmul.bf16.gmra.mxu0 %v1105
      %v1828 = vpop.f32.mrf.mxu0
      %v1829 = vadd.f32 0.0, %v1828
      %v1830 = vpop.f32.mrf.mxu0
      %v1831 = vadd.f32 0.0, %v1830
      %1832 = vmatmul.bf16.gmra.mxu0 %v1683
      %v1833 = vpop.f32.mrf.mxu0
      %v1834 = vadd.f32 0.0, %v1833
      %v1835 = vpop.f32.mrf.mxu0
      %v1836 = vadd.f32 0.0, %v1835
      %1837 = vdwg.mxu0
      %v1838 = vadd.f32 %v1651, %v1759
      %v1839 = vadd.f32 %v1652, %v1761
      %v1840 = vadd.f32 %v1653, %v1764
      %v1841 = vadd.f32 %v1654, %v1766
      %v1842 = vadd.f32 %v1655, %v1769
      %v1843 = vadd.f32 %v1656, %v1771
      %v1844 = vadd.f32 %v1657, %v1774
      %v1845 = vadd.f32 %v1658, %v1776
      %v1846 = vadd.f32 %v1659, %v1779
      %v1847 = vadd.f32 %v1660, %v1781
      %v1848 = vadd.f32 %v1661, %v1784
      %v1849 = vadd.f32 %v1662, %v1786
      %v1850 = vadd.f32 %v1663, %v1789
      %v1851 = vadd.f32 %v1664, %v1791
      %v1852 = vadd.f32 %v1665, %v1794
      %v1853 = vadd.f32 %v1666, %v1796
      %v1854 = vadd.f32 %v1667, %v1799
      %v1855 = vadd.f32 %v1668, %v1801
      %v1856 = vadd.f32 %v1669, %v1804
      %v1857 = vadd.f32 %v1670, %v1806
      %v1858 = vadd.f32 %v1671, %v1809
      %v1859 = vadd.f32 %v1672, %v1811
      %v1860 = vadd.f32 %v1673, %v1814
      %v1861 = vadd.f32 %v1674, %v1816
      %v1862 = vadd.f32 %v1675, %v1819
      %v1863 = vadd.f32 %v1676, %v1821
      %v1864 = vadd.f32 %v1677, %v1824
      %v1865 = vadd.f32 %v1678, %v1826
      %v1866 = vadd.f32 %v1679, %v1829
      %v1867 = vadd.f32 %v1680, %v1831
      %v1868 = vadd.f32 %v1681, %v1834
      %v1869 = vadd.f32 %v1682, %v1836
      %v1873 = vrot.slane %v287, 1
      %v1874 = vrot.slane %v288, 1
      %v1875 = vsel %vm370, %v1873, %v1874
      %v1876 = vrot.slane %v289, 1
      %v1877 = vsel %vm370, %v1874, %v1876
      %v1880 = vpack.c.bf16 %v1877, %v1875
      %s1881 = scalar_lea.vmem %s1, 448
      %v1882 = vld [vmem:[%s1881] sm:$0xf]
      %v1883 = vld [vmem:[%s1881 + $0x4] sm:$0xf]
      %v1884 = vld [vmem:[%s1881 + $0x8] sm:$0xf]
      %v1885 = vld [vmem:[%s1881 + $0xc] sm:$0xf]
      %v1886 = vld [vmem:[%s1881 + $0x10] sm:$0xf]
      %v1887 = vld [vmem:[%s1881 + $0x14] sm:$0xf]
      %v1888 = vld [vmem:[%s1881 + $0x18] sm:$0xf]
      %v1889 = vld [vmem:[%s1881 + $0x1c] sm:$0xf]
      %v1890 = vld [vmem:[%s1881 + $0x20] sm:$0xf]
      %v1891 = vld [vmem:[%s1881 + $0x24] sm:$0xf]
      %v1892 = vld [vmem:[%s1881 + $0x28] sm:$0xf]
      %v1893 = vld [vmem:[%s1881 + $0x2c] sm:$0xf]
      %v1894 = vld [vmem:[%s1881 + $0x30] sm:$0xf]
      %v1895 = vld [vmem:[%s1881 + $0x34] sm:$0xf]
      %v1896 = vld [vmem:[%s1881 + $0x38] sm:$0xf]
      %v1897 = vld [vmem:[%s1881 + $0x3c] sm:$0xf]
      %v1914 = vunpack.c.l.b16 %v1882
      %v1915 = vunpack.c.l.b16 %v1883
      %v1916 = vunpack.c.l.b16 %v1884
      %v1917 = vunpack.c.l.b16 %v1885
      %v1918 = vunpack.c.l.b16 %v1886
      %v1919 = vunpack.c.l.b16 %v1887
      %v1920 = vunpack.c.l.b16 %v1888
      %v1921 = vunpack.c.l.b16 %v1889
      %v1922 = vunpack.c.l.b16 %v1890
      %v1923 = vunpack.c.l.b16 %v1891
      %v1924 = vunpack.c.l.b16 %v1892
      %v1925 = vunpack.c.l.b16 %v1893
      %v1926 = vunpack.c.l.b16 %v1894
      %v1927 = vunpack.c.l.b16 %v1895
      %v1928 = vunpack.c.l.b16 %v1896
      %v1929 = vunpack.c.l.b16 %v1897
      %v1930 = vpack.c.b16 %v1915, %v1914
      %v1931 = vpack.c.b16 %v1917, %v1916
      %v1932 = vpack.c.b16 %v1919, %v1918
      %v1933 = vpack.c.b16 %v1921, %v1920
      %v1934 = vpack.c.b16 %v1923, %v1922
      %v1935 = vpack.c.b16 %v1925, %v1924
      %v1936 = vpack.c.b16 %v1927, %v1926
      %v1937 = vpack.c.b16 %v1929, %v1928
      %1946 = vmatpush.bf16.msra.mxu0 %v1937
      %1947 = vmatpush.bf16.msra.mxu0 %v1936
      %1948 = vmatpush.bf16.msra.mxu0 %v1935
      %1949 = vmatpush.bf16.msra.mxu0 %v1934
      %1950 = vmatpush.bf16.msra.mxu0 %v1933
      %1951 = vmatpush.bf16.msra.mxu0 %v1932
      %1952 = vmatpush.bf16.msra.mxu0 %v1931
      %1953 = vmatpush.bf16.msra.mxu0 %v1930
      %1954 = vmatmul.bf16.gmra.mxu0 %v485
      %v1955 = vpop.f32.mrf.mxu0
      %v1956 = vadd.f32 0.0, %v1955
      %v1957 = vpop.f32.mrf.mxu0
      %v1958 = vadd.f32 0.0, %v1957
      %1959 = vmatmul.bf16.gmra.mxu0 %v486
      %v1960 = vpop.f32.mrf.mxu0
      %v1961 = vadd.f32 0.0, %v1960
      %v1962 = vpop.f32.mrf.mxu0
      %v1963 = vadd.f32 0.0, %v1962
      %1964 = vmatmul.bf16.gmra.mxu0 %v487
      %v1965 = vpop.f32.mrf.mxu0
      %v1966 = vadd.f32 0.0, %v1965
      %v1967 = vpop.f32.mrf.mxu0
      %v1968 = vadd.f32 0.0, %v1967
      %1969 = vmatmul.bf16.gmra.mxu0 %v488
      %v1970 = vpop.f32.mrf.mxu0
      %v1971 = vadd.f32 0.0, %v1970
      %v1972 = vpop.f32.mrf.mxu0
      %v1973 = vadd.f32 0.0, %v1972
      %1974 = vmatmul.bf16.gmra.mxu0 %v489
      %v1975 = vpop.f32.mrf.mxu0
      %v1976 = vadd.f32 0.0, %v1975
      %v1977 = vpop.f32.mrf.mxu0
      %v1978 = vadd.f32 0.0, %v1977
      %1979 = vmatmul.bf16.gmra.mxu0 %v490
      %v1980 = vpop.f32.mrf.mxu0
      %v1981 = vadd.f32 0.0, %v1980
      %v1982 = vpop.f32.mrf.mxu0
      %v1983 = vadd.f32 0.0, %v1982
      %1984 = vmatmul.bf16.gmra.mxu0 %v491
      %v1985 = vpop.f32.mrf.mxu0
      %v1986 = vadd.f32 0.0, %v1985
      %v1987 = vpop.f32.mrf.mxu0
      %v1988 = vadd.f32 0.0, %v1987
      %1989 = vmatmul.bf16.gmra.mxu0 %v492
      %v1990 = vpop.f32.mrf.mxu0
      %v1991 = vadd.f32 0.0, %v1990
      %v1992 = vpop.f32.mrf.mxu0
      %v1993 = vadd.f32 0.0, %v1992
      %1994 = vmatmul.bf16.gmra.mxu0 %v493
      %v1995 = vpop.f32.mrf.mxu0
      %v1996 = vadd.f32 0.0, %v1995
      %v1997 = vpop.f32.mrf.mxu0
      %v1998 = vadd.f32 0.0, %v1997
      %1999 = vmatmul.bf16.gmra.mxu0 %v494
      %v2000 = vpop.f32.mrf.mxu0
      %v2001 = vadd.f32 0.0, %v2000
      %v2002 = vpop.f32.mrf.mxu0
      %v2003 = vadd.f32 0.0, %v2002
      %2004 = vmatmul.bf16.gmra.mxu0 %v495
      %v2005 = vpop.f32.mrf.mxu0
      %v2006 = vadd.f32 0.0, %v2005
      %v2007 = vpop.f32.mrf.mxu0
      %v2008 = vadd.f32 0.0, %v2007
      %2009 = vmatmul.bf16.gmra.mxu0 %v496
      %v2010 = vpop.f32.mrf.mxu0
      %v2011 = vadd.f32 0.0, %v2010
      %v2012 = vpop.f32.mrf.mxu0
      %v2013 = vadd.f32 0.0, %v2012
      %2014 = vmatmul.bf16.gmra.mxu0 %v497
      %v2015 = vpop.f32.mrf.mxu0
      %v2016 = vadd.f32 0.0, %v2015
      %v2017 = vpop.f32.mrf.mxu0
      %v2018 = vadd.f32 0.0, %v2017
      %2019 = vmatmul.bf16.gmra.mxu0 %v498
      %v2020 = vpop.f32.mrf.mxu0
      %v2021 = vadd.f32 0.0, %v2020
      %v2022 = vpop.f32.mrf.mxu0
      %v2023 = vadd.f32 0.0, %v2022
      %2024 = vmatmul.bf16.gmra.mxu0 %v1302
      %v2025 = vpop.f32.mrf.mxu0
      %v2026 = vadd.f32 0.0, %v2025
      %v2027 = vpop.f32.mrf.mxu0
      %v2028 = vadd.f32 0.0, %v2027
      %2029 = vmatmul.bf16.gmra.mxu0 %v1880
      %v2030 = vpop.f32.mrf.mxu0
      %v2031 = vadd.f32 0.0, %v2030
      %v2032 = vpop.f32.mrf.mxu0
      %v2033 = vadd.f32 0.0, %v2032
      %2034 = vdwg.mxu0
      %v2035 = vadd.f32 %v1838, %v1956
      %v2036 = vadd.f32 %v1839, %v1958
      %v2037 = vadd.f32 %v1840, %v1961
      %v2038 = vadd.f32 %v1841, %v1963
      %v2039 = vadd.f32 %v1842, %v1966
      %v2040 = vadd.f32 %v1843, %v1968
      %v2041 = vadd.f32 %v1844, %v1971
      %v2042 = vadd.f32 %v1845, %v1973
      %v2043 = vadd.f32 %v1846, %v1976
      %v2044 = vadd.f32 %v1847, %v1978
      %v2045 = vadd.f32 %v1848, %v1981
      %v2046 = vadd.f32 %v1849, %v1983
      %v2047 = vadd.f32 %v1850, %v1986
      %v2048 = vadd.f32 %v1851, %v1988
      %v2049 = vadd.f32 %v1852, %v1991
      %v2050 = vadd.f32 %v1853, %v1993
      %v2051 = vadd.f32 %v1854, %v1996
      %v2052 = vadd.f32 %v1855, %v1998
      %v2053 = vadd.f32 %v1856, %v2001
      %v2054 = vadd.f32 %v1857, %v2003
      %v2055 = vadd.f32 %v1858, %v2006
      %v2056 = vadd.f32 %v1859, %v2008
      %v2057 = vadd.f32 %v1860, %v2011
      %v2058 = vadd.f32 %v1861, %v2013
      %v2059 = vadd.f32 %v1862, %v2016
      %v2060 = vadd.f32 %v1863, %v2018
      %v2061 = vadd.f32 %v1864, %v2021
      %v2062 = vadd.f32 %v1865, %v2023
      %v2063 = vadd.f32 %v1866, %v2026
      %v2064 = vadd.f32 %v1867, %v2028
      %v2065 = vadd.f32 %v1868, %v2031
      %v2066 = vadd.f32 %v1869, %v2033
      %v2067 = vrot.slane %v287, 2
      %v2068 = vrot.slane %v288, 2
      %v2069 = vsel %vm790, %v2067, %v2068
      %v2070 = vrot.slane %v289, 2
      %v2071 = vsel %vm790, %v2068, %v2070
      %v2074 = vpack.c.bf16 %v2071, %v2069
      %s2075 = scalar_lea.vmem %s1, 512
      %v2076 = vld [vmem:[%s2075] sm:$0xf]
      %v2077 = vld [vmem:[%s2075 + $0x4] sm:$0xf]
      %v2078 = vld [vmem:[%s2075 + $0x8] sm:$0xf]
      %v2079 = vld [vmem:[%s2075 + $0xc] sm:$0xf]
      %v2080 = vld [vmem:[%s2075 + $0x10] sm:$0xf]
      %v2081 = vld [vmem:[%s2075 + $0x14] sm:$0xf]
      %v2082 = vld [vmem:[%s2075 + $0x18] sm:$0xf]
      %v2083 = vld [vmem:[%s2075 + $0x1c] sm:$0xf]
      %v2084 = vld [vmem:[%s2075 + $0x20] sm:$0xf]
      %v2085 = vld [vmem:[%s2075 + $0x24] sm:$0xf]
      %v2086 = vld [vmem:[%s2075 + $0x28] sm:$0xf]
      %v2087 = vld [vmem:[%s2075 + $0x2c] sm:$0xf]
      %v2088 = vld [vmem:[%s2075 + $0x30] sm:$0xf]
      %v2089 = vld [vmem:[%s2075 + $0x34] sm:$0xf]
      %v2090 = vld [vmem:[%s2075 + $0x38] sm:$0xf]
      %v2091 = vld [vmem:[%s2075 + $0x3c] sm:$0xf]
      %v2108 = vunpack.c.l.b16 %v2076
      %v2109 = vunpack.c.l.b16 %v2077
      %v2110 = vunpack.c.l.b16 %v2078
      %v2111 = vunpack.c.l.b16 %v2079
      %v2112 = vunpack.c.l.b16 %v2080
      %v2113 = vunpack.c.l.b16 %v2081
      %v2114 = vunpack.c.l.b16 %v2082
      %v2115 = vunpack.c.l.b16 %v2083
      %v2116 = vunpack.c.l.b16 %v2084
      %v2117 = vunpack.c.l.b16 %v2085
      %v2118 = vunpack.c.l.b16 %v2086
      %v2119 = vunpack.c.l.b16 %v2087
      %v2120 = vunpack.c.l.b16 %v2088
      %v2121 = vunpack.c.l.b16 %v2089
      %v2122 = vunpack.c.l.b16 %v2090
      %v2123 = vunpack.c.l.b16 %v2091
      %v2124 = vpack.c.b16 %v2109, %v2108
      %v2125 = vpack.c.b16 %v2111, %v2110
      %v2126 = vpack.c.b16 %v2113, %v2112
      %v2127 = vpack.c.b16 %v2115, %v2114
      %v2128 = vpack.c.b16 %v2117, %v2116
      %v2129 = vpack.c.b16 %v2119, %v2118
      %v2130 = vpack.c.b16 %v2121, %v2120
      %v2131 = vpack.c.b16 %v2123, %v2122
      %2140 = vmatpush.bf16.msra.mxu0 %v2131
      %2141 = vmatpush.bf16.msra.mxu0 %v2130
      %2142 = vmatpush.bf16.msra.mxu0 %v2129
      %2143 = vmatpush.bf16.msra.mxu0 %v2128
      %2144 = vmatpush.bf16.msra.mxu0 %v2127
      %2145 = vmatpush.bf16.msra.mxu0 %v2126
      %2146 = vmatpush.bf16.msra.mxu0 %v2125
      %2147 = vmatpush.bf16.msra.mxu0 %v2124
      %2148 = vmatmul.bf16.gmra.mxu0 %v905
      %v2149 = vpop.f32.mrf.mxu0
      %v2150 = vadd.f32 0.0, %v2149
      %v2151 = vpop.f32.mrf.mxu0
      %v2152 = vadd.f32 0.0, %v2151
      %2153 = vmatmul.bf16.gmra.mxu0 %v906
      %v2154 = vpop.f32.mrf.mxu0
      %v2155 = vadd.f32 0.0, %v2154
      %v2156 = vpop.f32.mrf.mxu0
      %v2157 = vadd.f32 0.0, %v2156
      %2158 = vmatmul.bf16.gmra.mxu0 %v907
      %v2159 = vpop.f32.mrf.mxu0
      %v2160 = vadd.f32 0.0, %v2159
      %v2161 = vpop.f32.mrf.mxu0
      %v2162 = vadd.f32 0.0, %v2161
      %2163 = vmatmul.bf16.gmra.mxu0 %v908
      %v2164 = vpop.f32.mrf.mxu0
      %v2165 = vadd.f32 0.0, %v2164
      %v2166 = vpop.f32.mrf.mxu0
      %v2167 = vadd.f32 0.0, %v2166
      %2168 = vmatmul.bf16.gmra.mxu0 %v909
      %v2169 = vpop.f32.mrf.mxu0
      %v2170 = vadd.f32 0.0, %v2169
      %v2171 = vpop.f32.mrf.mxu0
      %v2172 = vadd.f32 0.0, %v2171
      %2173 = vmatmul.bf16.gmra.mxu0 %v910
      %v2174 = vpop.f32.mrf.mxu0
      %v2175 = vadd.f32 0.0, %v2174
      %v2176 = vpop.f32.mrf.mxu0
      %v2177 = vadd.f32 0.0, %v2176
      %2178 = vmatmul.bf16.gmra.mxu0 %v911
      %v2179 = vpop.f32.mrf.mxu0
      %v2180 = vadd.f32 0.0, %v2179
      %v2181 = vpop.f32.mrf.mxu0
      %v2182 = vadd.f32 0.0, %v2181
      %2183 = vmatmul.bf16.gmra.mxu0 %v912
      %v2184 = vpop.f32.mrf.mxu0
      %v2185 = vadd.f32 0.0, %v2184
      %v2186 = vpop.f32.mrf.mxu0
      %v2187 = vadd.f32 0.0, %v2186
      %2188 = vmatmul.bf16.gmra.mxu0 %v913
      %v2189 = vpop.f32.mrf.mxu0
      %v2190 = vadd.f32 0.0, %v2189
      %v2191 = vpop.f32.mrf.mxu0
      %v2192 = vadd.f32 0.0, %v2191
      %2193 = vmatmul.bf16.gmra.mxu0 %v914
      %v2194 = vpop.f32.mrf.mxu0
      %v2195 = vadd.f32 0.0, %v2194
      %v2196 = vpop.f32.mrf.mxu0
      %v2197 = vadd.f32 0.0, %v2196
      %2198 = vmatmul.bf16.gmra.mxu0 %v915
      %v2199 = vpop.f32.mrf.mxu0
      %v2200 = vadd.f32 0.0, %v2199
      %v2201 = vpop.f32.mrf.mxu0
      %v2202 = vadd.f32 0.0, %v2201
      %2203 = vmatmul.bf16.gmra.mxu0 %v916
      %v2204 = vpop.f32.mrf.mxu0
      %v2205 = vadd.f32 0.0, %v2204
      %v2206 = vpop.f32.mrf.mxu0
      %v2207 = vadd.f32 0.0, %v2206
      %2208 = vmatmul.bf16.gmra.mxu0 %v917
      %v2209 = vpop.f32.mrf.mxu0
      %v2210 = vadd.f32 0.0, %v2209
      %v2211 = vpop.f32.mrf.mxu0
      %v2212 = vadd.f32 0.0, %v2211
      %2213 = vmatmul.bf16.gmra.mxu0 %v918
      %v2214 = vpop.f32.mrf.mxu0
      %v2215 = vadd.f32 0.0, %v2214
      %v2216 = vpop.f32.mrf.mxu0
      %v2217 = vadd.f32 0.0, %v2216
      %2218 = vmatmul.bf16.gmra.mxu0 %v1496
      %v2219 = vpop.f32.mrf.mxu0
      %v2220 = vadd.f32 0.0, %v2219
      %v2221 = vpop.f32.mrf.mxu0
      %v2222 = vadd.f32 0.0, %v2221
      %2223 = vmatmul.bf16.gmra.mxu0 %v2074
      %v2224 = vpop.f32.mrf.mxu0
      %v2225 = vadd.f32 0.0, %v2224
      %v2226 = vpop.f32.mrf.mxu0
      %v2227 = vadd.f32 0.0, %v2226
      %2228 = vdwg.mxu0
      %v2229 = vadd.f32 %v2035, %v2150
      %v2230 = vadd.f32 %v2036, %v2152
      %v2231 = vadd.f32 %v2037, %v2155
      %v2232 = vadd.f32 %v2038, %v2157
      %v2233 = vadd.f32 %v2039, %v2160
      %v2234 = vadd.f32 %v2040, %v2162
      %v2235 = vadd.f32 %v2041, %v2165
      %v2236 = vadd.f32 %v2042, %v2167
      %v2237 = vadd.f32 %v2043, %v2170
      %v2238 = vadd.f32 %v2044, %v2172
      %v2239 = vadd.f32 %v2045, %v2175
      %v2240 = vadd.f32 %v2046, %v2177
      %v2241 = vadd.f32 %v2047, %v2180
      %v2242 = vadd.f32 %v2048, %v2182
      %v2243 = vadd.f32 %v2049, %v2185
      %v2244 = vadd.f32 %v2050, %v2187
      %v2245 = vadd.f32 %v2051, %v2190
      %v2246 = vadd.f32 %v2052, %v2192
      %v2247 = vadd.f32 %v2053, %v2195
      %v2248 = vadd.f32 %v2054, %v2197
      %v2249 = vadd.f32 %v2055, %v2200
      %v2250 = vadd.f32 %v2056, %v2202
      %v2251 = vadd.f32 %v2057, %v2205
      %v2252 = vadd.f32 %v2058, %v2207
      %v2253 = vadd.f32 %v2059, %v2210
      %v2254 = vadd.f32 %v2060, %v2212
      %v2255 = vadd.f32 %v2061, %v2215
      %v2256 = vadd.f32 %v2062, %v2217
      %v2257 = vadd.f32 %v2063, %v2220
      %v2258 = vadd.f32 %v2064, %v2222
      %v2259 = vadd.f32 %v2065, %v2225
      %v2260 = vadd.f32 %v2066, %v2227
      %v2261 = vpack.c.bf16 %v2229, %v2229
      %v2262 = vpack.c.bf16 %v2230, %v2230
      %v2263 = vpack.c.bf16 %v2231, %v2231
      %v2264 = vpack.c.bf16 %v2232, %v2232
      %v2265 = vpack.c.bf16 %v2233, %v2233
      %v2266 = vpack.c.bf16 %v2234, %v2234
      %v2267 = vpack.c.bf16 %v2235, %v2235
      %v2268 = vpack.c.bf16 %v2236, %v2236
      %v2269 = vpack.c.bf16 %v2237, %v2237
      %v2270 = vpack.c.bf16 %v2238, %v2238
      %v2271 = vpack.c.bf16 %v2239, %v2239
      %v2272 = vpack.c.bf16 %v2240, %v2240
      %v2273 = vpack.c.bf16 %v2241, %v2241
      %v2274 = vpack.c.bf16 %v2242, %v2242
      %v2275 = vpack.c.bf16 %v2243, %v2243
      %v2276 = vpack.c.bf16 %v2244, %v2244
      %v2277 = vpack.c.bf16 %v2245, %v2245
      %v2278 = vpack.c.bf16 %v2246, %v2246
      %v2279 = vpack.c.bf16 %v2247, %v2247
      %v2280 = vpack.c.bf16 %v2248, %v2248
      %v2281 = vpack.c.bf16 %v2249, %v2249
      %v2282 = vpack.c.bf16 %v2250, %v2250
      %v2283 = vpack.c.bf16 %v2251, %v2251
      %v2284 = vpack.c.bf16 %v2252, %v2252
      %v2285 = vpack.c.bf16 %v2253, %v2253
      %v2286 = vpack.c.bf16 %v2254, %v2254
      %v2287 = vpack.c.bf16 %v2255, %v2255
      %v2288 = vpack.c.bf16 %v2256, %v2256
      %v2289 = vpack.c.bf16 %v2257, %v2257
      %v2290 = vpack.c.bf16 %v2258, %v2258
      %v2291 = vpack.c.bf16 %v2259, %v2259
      %v2292 = vpack.c.bf16 %v2260, %v2260
      %2293 = vst [vmem:[%s177] sm:$0xf] %v2261
      %2294 = vst [vmem:[%s177 + $0x4] sm:$0xf] %v2262
      %2295 = vst [vmem:[%s177 + $0x8] sm:$0xf] %v2263
      %2296 = vst [vmem:[%s177 + $0xc] sm:$0xf] %v2264
      %2297 = vst [vmem:[%s177 + $0x10] sm:$0xf] %v2265
      %2298 = vst [vmem:[%s177 + $0x14] sm:$0xf] %v2266
      %2299 = vst [vmem:[%s177 + $0x18] sm:$0xf] %v2267
      %2300 = vst [vmem:[%s177 + $0x1c] sm:$0xf] %v2268
      %2301 = vst [vmem:[%s177 + $0x20] sm:$0xf] %v2269
      %2302 = vst [vmem:[%s177 + $0x24] sm:$0xf] %v2270
      %2303 = vst [vmem:[%s177 + $0x28] sm:$0xf] %v2271
      %2304 = vst [vmem:[%s177 + $0x2c] sm:$0xf] %v2272
      %2305 = vst [vmem:[%s177 + $0x30] sm:$0xf] %v2273
      %2306 = vst [vmem:[%s177 + $0x34] sm:$0xf] %v2274
      %2307 = vst [vmem:[%s177 + $0x38] sm:$0xf] %v2275
      %2308 = vst [vmem:[%s177 + $0x3c] sm:$0xf] %v2276
      %2309 = vst [vmem:[%s177 + $0x40] sm:$0xf] %v2277
      %2310 = vst [vmem:[%s177 + $0x44] sm:$0xf] %v2278
      %2311 = vst [vmem:[%s177 + $0x48] sm:$0xf] %v2279
      %2312 = vst [vmem:[%s177 + $0x4c] sm:$0xf] %v2280
      %2313 = vst [vmem:[%s177 + $0x50] sm:$0xf] %v2281
      %2314 = vst [vmem:[%s177 + $0x54] sm:$0xf] %v2282
      %2315 = vst [vmem:[%s177 + $0x58] sm:$0xf] %v2283
      %2316 = vst [vmem:[%s177 + $0x5c] sm:$0xf] %v2284
      %2317 = vst [vmem:[%s177 + $0x60] sm:$0xf] %v2285
      %2318 = vst [vmem:[%s177 + $0x64] sm:$0xf] %v2286
      %2319 = vst [vmem:[%s177 + $0x68] sm:$0xf] %v2287
      %2320 = vst [vmem:[%s177 + $0x6c] sm:$0xf] %v2288
      %2321 = vst [vmem:[%s177 + $0x70] sm:$0xf] %v2289
      %2322 = vst [vmem:[%s177 + $0x74] sm:$0xf] %v2290
      %2323 = vst [vmem:[%s177 + $0x78] sm:$0xf] %v2291
      %2324 = vst [vmem:[%s177 + $0x7c] sm:$0xf] %v2292
      %v2325 = vadd.f32 %v2229, %v2230
      %v2326 = vadd.f32 %v2325, %v2231
      %v2327 = vadd.f32 %v2326, %v2232
      %v2328 = vadd.f32 %v2327, %v2233
      %v2329 = vadd.f32 %v2328, %v2234
      %v2330 = vadd.f32 %v2329, %v2235
      %v2331 = vadd.f32 %v2330, %v2236
      %v2332 = vadd.f32 %v2331, %v2237
      %v2333 = vadd.f32 %v2332, %v2238
      %v2334 = vadd.f32 %v2333, %v2239
      %v2335 = vadd.f32 %v2334, %v2240
      %v2336 = vadd.f32 %v2335, %v2241
      %v2337 = vadd.f32 %v2336, %v2242
      %v2338 = vadd.f32 %v2337, %v2243
      %v2339 = vadd.f32 %v2338, %v2244
      %v2340 = vadd.f32 %v2339, %v2245
      %v2341 = vadd.f32 %v2340, %v2246
      %v2342 = vadd.f32 %v2341, %v2247
      %v2343 = vadd.f32 %v2342, %v2248
      %v2344 = vadd.f32 %v2343, %v2249
      %v2345 = vadd.f32 %v2344, %v2250
      %v2346 = vadd.f32 %v2345, %v2251
      %v2347 = vadd.f32 %v2346, %v2252
      %v2348 = vadd.f32 %v2347, %v2253
      %v2349 = vadd.f32 %v2348, %v2254
      %v2350 = vadd.f32 %v2349, %v2255
      %v2351 = vadd.f32 %v2350, %v2256
      %v2352 = vadd.f32 %v2351, %v2257
      %v2353 = vadd.f32 %v2352, %v2258
      %v2354 = vadd.f32 %v2353, %v2259
      %v2355 = vadd.f32 %v2354, %v2260
      %v2356 = vrot.slane %v2355, 4
      %v2357 = vadd.f32 %v2355, %v2356
      %v2358 = vrot.slane %v2357, 2
      %v2359 = vadd.f32 %v2357, %v2358
      %v2360 = vrot.slane %v2359, 1
      %v2361 = vadd.f32 %v2359, %v2360
      %v2362 = vmul.f32 %v2229, %v2229
      %v2363 = vmul.f32 %v2230, %v2230
      %v2364 = vmul.f32 %v2231, %v2231
      %v2365 = vmul.f32 %v2232, %v2232
      %v2366 = vmul.f32 %v2233, %v2233
      %v2367 = vmul.f32 %v2234, %v2234
      %v2368 = vmul.f32 %v2235, %v2235
      %v2369 = vmul.f32 %v2236, %v2236
      %v2370 = vmul.f32 %v2237, %v2237
      %v2371 = vmul.f32 %v2238, %v2238
      %v2372 = vmul.f32 %v2239, %v2239
      %v2373 = vmul.f32 %v2240, %v2240
      %v2374 = vmul.f32 %v2241, %v2241
      %v2375 = vmul.f32 %v2242, %v2242
      %v2376 = vmul.f32 %v2243, %v2243
      %v2377 = vmul.f32 %v2244, %v2244
      %v2378 = vmul.f32 %v2245, %v2245
      %v2379 = vmul.f32 %v2246, %v2246
      %v2380 = vmul.f32 %v2247, %v2247
      %v2381 = vmul.f32 %v2248, %v2248
      %v2382 = vmul.f32 %v2249, %v2249
      %v2383 = vmul.f32 %v2250, %v2250
      %v2384 = vmul.f32 %v2251, %v2251
      %v2385 = vmul.f32 %v2252, %v2252
      %v2386 = vmul.f32 %v2253, %v2253
      %v2387 = vmul.f32 %v2254, %v2254
      %v2388 = vmul.f32 %v2255, %v2255
      %v2389 = vmul.f32 %v2256, %v2256
      %v2390 = vmul.f32 %v2257, %v2257
      %v2391 = vmul.f32 %v2258, %v2258
      %v2392 = vmul.f32 %v2259, %v2259
      %v2393 = vmul.f32 %v2260, %v2260
      %v2394 = vadd.f32 %v2362, %v2363
      %v2395 = vadd.f32 %v2394, %v2364
      %v2396 = vadd.f32 %v2395, %v2365
      %v2397 = vadd.f32 %v2396, %v2366
      %v2398 = vadd.f32 %v2397, %v2367
      %v2399 = vadd.f32 %v2398, %v2368
      %v2400 = vadd.f32 %v2399, %v2369
      %v2401 = vadd.f32 %v2400, %v2370
      %v2402 = vadd.f32 %v2401, %v2371
      %v2403 = vadd.f32 %v2402, %v2372
      %v2404 = vadd.f32 %v2403, %v2373
      %v2405 = vadd.f32 %v2404, %v2374
      %v2406 = vadd.f32 %v2405, %v2375
      %v2407 = vadd.f32 %v2406, %v2376
      %v2408 = vadd.f32 %v2407, %v2377
      %v2409 = vadd.f32 %v2408, %v2378
      %v2410 = vadd.f32 %v2409, %v2379
      %v2411 = vadd.f32 %v2410, %v2380
      %v2412 = vadd.f32 %v2411, %v2381
      %v2413 = vadd.f32 %v2412, %v2382
      %v2414 = vadd.f32 %v2413, %v2383
      %v2415 = vadd.f32 %v2414, %v2384
      %v2416 = vadd.f32 %v2415, %v2385
      %v2417 = vadd.f32 %v2416, %v2386
      %v2418 = vadd.f32 %v2417, %v2387
      %v2419 = vadd.f32 %v2418, %v2388
      %v2420 = vadd.f32 %v2419, %v2389
      %v2421 = vadd.f32 %v2420, %v2390
      %v2422 = vadd.f32 %v2421, %v2391
      %v2423 = vadd.f32 %v2422, %v2392
      %v2424 = vadd.f32 %v2423, %v2393
      %v2425 = vrot.slane %v2424, 4
      %v2426 = vadd.f32 %v2424, %v2425
      %v2427 = vrot.slane %v2426, 2
      %v2428 = vadd.f32 %v2426, %v2427
      %v2429 = vrot.slane %v2428, 1
      %v2430 = vadd.f32 %v2428, %v2429
      %vm2431 = vcmask 1040384
      %v2432 = vsel %vm2431, %v2361, %v2430
      %2433 = vst [vmem:[%s181] sm:$0x3] %v2432
      %p2434 = scmp.lt.s32.totalorder %s15, 1
      %s2435 = scalar_select %p2434, %s15, 1
      %s2436 = smul.addr %s2435, 32
      %s2437 = smul.addr %s2436, 4
      %s2438 = scalar_lea.vmem %s2, %s2437
      %p2439 = scmp.lt.s32.totalorder %s15, 1
      %s2440 = scalar_select %p2439, %s15, 1
      %s2441 = smul.addr %s2440, 2
      %s2442 = scalar_lea.vmem %s3, %s2441
      // Predicated region
      $region29: #{conv_block_forward.6} parent=27 // pred_check
        %p2443 = pneg %p80
      $region30: #{conv_block_forward.6} parent=27 // pred_check_branch
        %2445 = sbr.rel (%p2443) target = $region32
      $region31: #{conv_block_forward.6} parent=27 // pred_region
        _
      $region32: #{conv_block_forward.6} parent=27 // pred_fallthru
        _
      // Predicated region
      $region33: #{conv_block_forward.6} parent=27 // pred_check
        %p2446 = pneg %p106
      $region34: #{conv_block_forward.6} parent=27 // pred_check_branch
        %2448 = sbr.rel (%p2446) target = $region36
      $region35: #{conv_block_forward.6} parent=27 // pred_region
        _
      $region36: #{conv_block_forward.6} parent=27 // pred_fallthru
        _
    $region28: #{conv_block_forward.6} parent=5 // pred_fallthru
      _
    %p2449 = scmp.le.s32.totalorder 2, %s10
    // Predicated region
    $region37: #{conv_block_forward.6} parent=5 // pred_check
      %p2450 = pneg %p2449
    $region38: #{conv_block_forward.6} parent=5 // pred_check_branch
      %2452 = sbr.rel (%p2450) target = $region40
    $region39: #{conv_block_forward.6} parent=5 // pred_region
      %s2453 = ssub.s32 %s10, 2
      // Predicated region
      $region41: #{conv_block_forward.6} parent=39 // pred_check
        %p2454 = pneg %p86
      $region42: #{conv_block_forward.6} parent=39 // pred_check_branch
        %2456 = sbr.rel (%p2454) target = $region44
      $region43: #{conv_block_forward.6} parent=39 // pred_region
        %p2457 = scmp.lt.s32.totalorder %s16, 1
        %s2458 = scalar_select %p2457, %s16, 1
        %s2459 = smul.addr %s2458, 32
        %s2460 = smul.addr %s2459, 4
        %s2461 = scalar_lea.vmem %s2, %s2460
      $region44: #{conv_block_forward.6} parent=39 // pred_fallthru
        _
      // Predicated region
      $region45: #{conv_block_forward.6} parent=39 // pred_check
        %p2462 = pneg %p112
      $region46: #{conv_block_forward.6} parent=39 // pred_check_branch
        %2464 = sbr.rel (%p2462) target = $region48
      $region47: #{conv_block_forward.6} parent=39 // pred_region
        %p2465 = scmp.lt.s32.totalorder %s16, 1
        %s2466 = scalar_select %p2465, %s16, 1
        %s2467 = smul.addr %s2466, 2
        %s2468 = scalar_lea.vmem %s3, %s2467
      $region48: #{conv_block_forward.6} parent=39 // pred_fallthru
        _
    $region40: #{conv_block_forward.6} parent=5 // pred_fallthru
      _
  $region6: #{conv_block_forward.6} parent=0 // loop_footer
    %s14 = sadd.s32 1, %s10
  $region7: #{conv_block_forward.6} parent=0 // loop_footer_branch
    %9 = sbr.rel target = $region3
  $region8: #{conv_block_forward.6} parent=0 // loop_exit
    _

</llo_original>
